<compile_context>
chip_gen: v6e
topology: v6e:2x2x1
jax: 0.10.0
libtpu: 0.0.40
codegen_flags: <defaults>
</compile_context>

<pallas_src>
import math
import functools
import numpy as np
import jax
import jax.numpy as jnp
from jax.experimental import pallas as pl
from jax.experimental.pallas import tpu as pltpu

# ---- small synthetic GPT-2-style config (lane-dense) ----
VOCAB = 256                 # multiple of 128 -> lane-dense lm_head
BLOCK_SIZE = 16
N_LAYER = 2
N_HEAD = 2
N_EMBD = 128                # full 128-lane vregs everywhere
HEAD_DIM = N_EMBD // N_HEAD # 64 (GPT-2 head dim)
LN_EPS = 1e-5               # nn.LayerNorm(eps=1e-05)
NEG_INF = -1e30             # finite mask constant (no -inf/NaN edge cases)


def _layernorm(h, w, b):
    # f32 statistics; w, b are (1, E) rows broadcast over the row axis.
    mu = jnp.mean(h, axis=-1, keepdims=True)
    var = jnp.mean(jnp.square(h - mu), axis=-1, keepdims=True)
    return (h - mu) * jax.lax.rsqrt(var + LN_EPS) * w + b


def gpt_kernel(ids_ref,                                   # (B, T) int32, SMEM (scalar prefetch)
               wte_ref,                                   # (V, E) f32, HBM (pl.ANY)
               wpe_ref,                                   # (T, E) f32, grid-constant
               wqkv_ref, bqkv_ref,                        # (1, E, 3E) bf16 / (1, 1, 3E) f32
               wproj_ref, bproj_ref,                      # (1, E, E) bf16 / (1, 1, E) f32
               ln1w_ref, ln1b_ref, ln2w_ref, ln2b_ref,    # (1, 1, E) f32
               wfc_ref, bfc_ref, wmp_ref, bmp_ref,        # MLP weights (per-layer blocks)
               lnfw_ref, lnfb_ref, lmw_ref,               # final LN + lm_head (grid-constant)
               out_ref,                                   # (T, V) f32 block (per batch)
               x_scratch, emb_sem,
               *, seq_len, n_head, head_dim):
    b = pl.program_id(0)            # batch element ("parallel")
    l = pl.program_id(1)            # layer        ("arbitrary", carries scratch state)
    bf16 = jnp.bfloat16
    E = x_scratch.shape[-1]
    T = seq_len

    # ---- layer 0: token-embedding row gather (DMA from HBM, ids from SMEM) + wpe ----
    @pl.when(l == 0)
    def _():
        copies = []
        for t in range(T):          # static unroll (tiny T); one row DMA per token
            tok = ids_ref[b, t]
            cp = pltpu.make_async_copy(
                wte_ref.at[pl.ds(tok, 1), :],
                x_scratch.at[pl.ds(t, 1), :],
                emb_sem.at[t])
            cp.start()
            copies.append(cp)
        for cp in copies:
            cp.wait()
        x_scratch[...] = x_scratch[...] + wpe_ref[...]    # + positional embedding

    x = x_scratch[...]              # (T, E) f32 residual stream (persists across layers)

    # causal additive mask rebuilt inline (no quadratic mask scratch)
    ri = jax.lax.broadcasted_iota(jnp.int32, (T, T), 0)
    ci = jax.lax.broadcasted_iota(jnp.int32, (T, T), 1)
    addmask = jnp.where(ci <= ri, 0.0, NEG_INF).astype(jnp.float32)

    # ---------------- attention: fused QKV, per-head scores, fused c_proj ----------------
    h = _layernorm(x, ln1w_ref[0], ln1b_ref[0])
    # 1/sqrt(head_dim) is pre-folded into the q columns of wqkv/bqkv host-side.
    qkv = jnp.dot(h.astype(bf16), wqkv_ref[0],
                  preferred_element_type=jnp.float32) + bqkv_ref[0]        # (T, 3E)
    heads = []
    for hd in range(n_head):        # static unroll; heads split only for (T,T) matmuls
        lo, hi = hd * head_dim, (hd + 1) * head_dim
        q_h = qkv[:, lo:hi]
        k_h = qkv[:, E + lo:E + hi]
        v_h = qkv[:, 2 * E + lo:2 * E + hi]
        s = jax.lax.dot_general(q_h.astype(bf16), k_h.astype(bf16),
                                (((1,), (1,)), ((), ())),
                                preferred_element_type=jnp.float32)        # (T, T)
        s = s + addmask
        s = s - jnp.max(s, axis=-1, keepdims=True)
        p = jnp.exp(s)
        p = p * pl.reciprocal(jnp.sum(p, axis=-1, keepdims=True), approx=True)
        heads.append(jnp.dot(p.astype(bf16), v_h.astype(bf16),
                             preferred_element_type=jnp.float32))          # (T, HD)
    att = jnp.concatenate(heads, axis=-1)                                  # (T, E)
    att = jnp.dot(att.astype(bf16), wproj_ref[0],
                  preferred_element_type=jnp.float32) + bproj_ref[0]
    x = x + att

    # ---------------- MLP ----------------
    h = _layernorm(x, ln2w_ref[0], ln2b_ref[0])
    h1 = jnp.dot(h.astype(bf16), wfc_ref[0],
                 preferred_element_type=jnp.float32) + bfc_ref[0]
    g = 0.5 * h1 * (1.0 + jax.lax.erf(h1 * (1.0 / math.sqrt(2.0))))        # exact GELU
    h2 = jnp.dot(g.astype(bf16), wmp_ref[0],
                 preferred_element_type=jnp.float32) + bmp_ref[0]
    x = x + h2

    x_scratch[...] = x

    # ---- last layer: final LayerNorm + lm_head ----
    @pl.when(l == pl.num_programs(1) - 1)
    def _():
        xf = _layernorm(x, lnfw_ref[...], lnfb_ref[...])
        out_ref[...] = jnp.dot(xf.astype(bf16), lmw_ref[...],
                               preferred_element_type=jnp.float32)         # (T, VOCAB)


def gpt_forward(token_ids, params):
    B, T = token_ids.shape
    L, H, E, HD, V = N_LAYER, N_HEAD, N_EMBD, HEAD_DIM, VOCAB
    bf16 = jnp.bfloat16
    scale = 1.0 / math.sqrt(HD)

    ids = token_ids.astype(jnp.int32)                      # (B, T) -> SMEM scalar prefetch
    wte = params['wte']                                    # (V, E) f32, stays in HBM
    wpe = params['wpe'][:T]                                # (T, E) f32, tiny constant

    # fold 1/sqrt(head_dim) into the q columns of c_attn (weight + bias)
    qscale = jnp.concatenate([jnp.full((E,), scale, jnp.float32),
                              jnp.ones((2 * E,), jnp.float32)])
    wqkv = (params['wqkv'] * qscale).astype(bf16)          # (L, E, 3E)
    bqkv = (params['bqkv'] * qscale).reshape(L, 1, 3 * E)  # (L, 1, 3E) f32
    wproj = params['wao'].astype(bf16)                     # (L, E, E)
    bproj = params['bao'].reshape(L, 1, E)
    ln1w = params['ln1w'].reshape(L, 1, E)
    ln1b = params['ln1b'].reshape(L, 1, E)
    ln2w = params['ln2w'].reshape(L, 1, E)
    ln2b = params['ln2b'].reshape(L, 1, E)
    wfc = params['wfc'].astype(bf16)                       # (L, E, 4E)
    bfc = params['bfc'].reshape(L, 1, 4 * E)
    wmp = params['wmp'].astype(bf16)                       # (L, 4E, E)
    bmp = params['bmp'].reshape(L, 1, E)
    lnfw = params['lnfw'].reshape(1, E)
    lnfb = params['lnfb'].reshape(1, E)
    lmw = params['lmw'].astype(bf16)                       # (E, V)

    inputs = (wte, wpe,
              wqkv, bqkv, wproj, bproj,
              ln1w, ln1b, ln2w, ln2b,
              wfc, bfc, wmp, bmp,
              lnfw, lnfb, lmw)
    per_layer = set(range(2, 14))                          # wqkv .. bmp

    def layer_spec(a):
        n = a.ndim
        return pl.BlockSpec((1,) + a.shape[1:],
                            lambda b, l, ids_ref, _n=n: (l,) + (0,) * (_n - 1))

    def const_spec(a):
        n = a.ndim
        return pl.BlockSpec(a.shape, lambda b, l, ids_ref, _n=n: (0,) * _n)

    in_specs = [pl.BlockSpec(memory_space=pl.ANY)]                         # wte in HBM
    in_specs += [layer_spec(a) if i + 1 in per_layer else const_spec(a)
                 for i, a in enumerate(inputs[1:], start=0)]
    # fix indices: inputs[1] is wpe (const), inputs[2..13] per-layer, inputs[14..16] const
    in_specs = [pl.BlockSpec(memory_space=pl.ANY)]
    for i, a in enumerate(inputs):
        if i == 0:
            continue
        in_specs.append(layer_spec(a) if i in per_layer else const_spec(a))

    out_spec = pl.BlockSpec((T, V), lambda b, l, ids_ref: (b, 0))          # lane-dense

    # advisory cost estimate (no one-hot embedding matmul anymore)
    flops = B * (L * (2 * T * E * 3 * E          # fused qkv
                      + 2 * T * T * E            # scores (all heads)
                      + 2 * T * T * E            # probs @ v
                      + 2 * T * E * E            # attention out proj
                      + 2 * T * E * 4 * E * 2)   # mlp c_fc + c_proj
                 + 2 * T * E * V)                # lm_head
    transcendentals = B * (L * (H * T * T + T * 4 * E) + (2 * L + 1) * T)
    bytes_accessed = int(sum(a.size * a.dtype.itemsize for a in inputs)
                         + ids.size * 4 + B * T * V * 4)
    cost = pl.CostEstimate(flops=int(flops),
                           transcendentals=int(transcendentals),
                           bytes_accessed=bytes_accessed)

    out = pl.pallas_call(
        functools.partial(gpt_kernel, seq_len=T, n_head=H, head_dim=HD),
        out_shape=jax.ShapeDtypeStruct((B * T, V), jnp.float32),
        grid_spec=pltpu.PrefetchScalarGridSpec(
            num_scalar_prefetch=1,                         # ids -> SMEM
            grid=(B, L),                                   # batch parallel, layers sequential
            in_specs=in_specs,
            out_specs=out_spec,
            scratch_shapes=[pltpu.VMEM((T, E), jnp.float32),       # residual stream
                            pltpu.SemaphoreType.DMA((T,))]),       # embedding row gather
        compiler_params=pltpu.CompilerParams(
            dimension_semantics=("parallel", "arbitrary"),  # layer axis MUST stay arbitrary
            vmem_limit_bytes=32 * 1024 * 1024),
        cost_estimate=cost,
    )(ids, *inputs)
    return out.reshape(B, T, V)


# ---------------- pure-JAX f32 reference (PyTorch-equivalent semantics) ----------------
def gpt_reference(token_ids, params):
    B, T = token_ids.shape
    pos = jnp.arange(T, dtype=jnp.int32)
    x = params['wte'][token_ids] + params['wpe'][pos][None, :, :]

    def ln(h, w, b):
        mu = h.mean(-1, keepdims=True)
        var = ((h - mu) ** 2).mean(-1, keepdims=True)
        return (h - mu) / jnp.sqrt(var + LN_EPS) * w + b

    mask = jnp.tril(jnp.ones((T, T), bool))
    for l in range(N_LAYER):
        h = ln(x, params['ln1w'][l], params['ln1b'][l])
        qkv = h @ params['wqkv'][l] + params['bqkv'][l]
        q, k, v = jnp.split(qkv, 3, axis=-1)
        q = q.reshape(B, T, N_HEAD, HEAD_DIM).transpose(0, 2, 1, 3)
        k = k.reshape(B, T, N_HEAD, HEAD_DIM).transpose(0, 2, 1, 3)
        v = v.reshape(B, T, N_HEAD, HEAD_DIM).transpose(0, 2, 1, 3)
        s = (q @ k.transpose(0, 1, 3, 2)) / math.sqrt(HEAD_DIM)
        s = jnp.where(mask, s, -jnp.inf)
        p = jax.nn.softmax(s, axis=-1)
        a = (p @ v).transpose(0, 2, 1, 3).reshape(B, T, N_EMBD)
        x = x + a @ params['wao'][l] + params['bao'][l]
        h = ln(x, params['ln2w'][l], params['ln2b'][l])
        h = h @ params['wfc'][l] + params['bfc'][l]
        h = 0.5 * h * (1.0 + jax.lax.erf(h / math.sqrt(2.0)))
        x = x + h @ params['wmp'][l] + params['bmp'][l]
    x = ln(x, params['lnfw'], params['lnfb'])
    return x @ params['lmw']


def init_params(key):
    ks = jax.random.split(key, 16)
    E, L = N_EMBD, N_LAYER
    std = 0.02
    return {
        'wte': std * jax.random.normal(ks[0], (VOCAB, E), jnp.float32),
        'wpe': std * jax.random.normal(ks[1], (BLOCK_SIZE, E), jnp.float32),
        'ln1w': jnp.ones((L, E), jnp.float32),
        'ln1b': jnp.zeros((L, E), jnp.float32),
        'wqkv': std * jax.random.normal(ks[2], (L, E, 3 * E), jnp.float32),
        'bqkv': std * jax.random.normal(ks[3], (L, 3 * E), jnp.float32),
        'wao': std * jax.random.normal(ks[4], (L, E, E), jnp.float32),
        'bao': std * jax.random.normal(ks[5], (L, E), jnp.float32),
        'ln2w': jnp.ones((L, E), jnp.float32),
        'ln2b': jnp.zeros((L, E), jnp.float32),
        'wfc': std * jax.random.normal(ks[6], (L, E, 4 * E), jnp.float32),
        'bfc': std * jax.random.normal(ks[7], (L, 4 * E), jnp.float32),
        'wmp': std * jax.random.normal(ks[8], (L, 4 * E, E), jnp.float32),
        'bmp': std * jax.random.normal(ks[9], (L, E), jnp.float32),
        'lnfw': jnp.ones((E,), jnp.float32),
        'lnfb': jnp.zeros((E,), jnp.float32),
        'lmw': std * jax.random.normal(ks[10], (E, VOCAB), jnp.float32),
    }


if __name__ == "__main__":
    key = jax.random.PRNGKey(0)
    kp, kx = jax.random.split(key)
    params = init_params(kp)

    B, T = 2, 8
    token_ids = jax.random.randint(kx, (B, T), 0, VOCAB, dtype=jnp.int32)

    logits = jax.block_until_ready(gpt_forward(token_ids, params))
    ref = jax.block_until_ready(gpt_reference(token_ids, params))

    assert logits.shape == (B, T, VOCAB)
    # bf16 MXU weight inputs + approx reciprocal in softmax => compare against
    # the f32 reference with a tolerance comfortably above the ~1e-3 deviation.
    np.testing.assert_allclose(np.asarray(logits), np.asarray(ref),
                               rtol=3e-2, atol=3e-2)
    print("KERNEL_OK")
</pallas_src>

<mosaic_0001>
module attributes {stable_mosaic.version = 11 : i64} {
  func.func @gpt_kernel(%arg0: i32, %arg1: i32, %arg2: memref<2x8xi32, #tpu.memory_space<smem>>, %arg3: memref<256x128xf32, #tpu.memory_space<any>>, %arg4: memref<8x128xf32, #tpu.memory_space<vmem>>, %arg5: memref<1x128x384xbf16, #tpu.memory_space<vmem>>, %arg6: memref<1x1x384xf32, #tpu.memory_space<vmem>>, %arg7: memref<1x128x128xbf16, #tpu.memory_space<vmem>>, %arg8: memref<1x1x128xf32, #tpu.memory_space<vmem>>, %arg9: memref<1x1x128xf32, #tpu.memory_space<vmem>>, %arg10: memref<1x1x128xf32, #tpu.memory_space<vmem>>, %arg11: memref<1x1x128xf32, #tpu.memory_space<vmem>>, %arg12: memref<1x1x128xf32, #tpu.memory_space<vmem>>, %arg13: memref<1x128x512xbf16, #tpu.memory_space<vmem>>, %arg14: memref<1x1x512xf32, #tpu.memory_space<vmem>>, %arg15: memref<1x512x128xbf16, #tpu.memory_space<vmem>>, %arg16: memref<1x1x128xf32, #tpu.memory_space<vmem>>, %arg17: memref<1x128xf32, #tpu.memory_space<vmem>>, %arg18: memref<1x128xf32, #tpu.memory_space<vmem>>, %arg19: memref<128x256xbf16, #tpu.memory_space<vmem>>, %arg20: memref<8x256xf32, #tpu.memory_space<vmem>>, %arg21: memref<8x128xf32, #tpu.memory_space<vmem>>, %arg22: memref<8x!tpu.dma_semaphore, #tpu.memory_space<semaphore_mem>>) attributes {dimension_semantics = [#tpu.dimension_semantics<parallel>, #tpu.dimension_semantics<arbitrary>], iteration_bounds = array<i64: 2, 2>, scalar_prefetch = 1 : i64, scratch_operands = 2 : i64, tpu.core_type = #tpu.core_type<tc>, window_params = [{}, {pipeline_mode = #tpu.pipeline_mode<synchronous>, transform_indices = @transform_1, window_bounds = array<i64: 8, 128>}, {transform_indices = @transform_2, window_bounds = array<i64: 1, 128, 384>}, {transform_indices = @transform_3, window_bounds = array<i64: 1, 1, 384>}, {transform_indices = @transform_4, window_bounds = array<i64: 1, 128, 128>}, {transform_indices = @transform_5, window_bounds = array<i64: 1, 1, 128>}, {transform_indices = @transform_6, window_bounds = array<i64: 1, 1, 128>}, {transform_indices = @transform_7, window_bounds = array<i64: 1, 1, 128>}, {transform_indices = @transform_8, window_bounds = array<i64: 1, 1, 128>}, {transform_indices = @transform_9, window_bounds = array<i64: 1, 1, 128>}, {transform_indices = @transform_10, window_bounds = array<i64: 1, 128, 512>}, {transform_indices = @transform_11, window_bounds = array<i64: 1, 1, 512>}, {transform_indices = @transform_12, window_bounds = array<i64: 1, 512, 128>}, {transform_indices = @transform_13, window_bounds = array<i64: 1, 1, 128>}, {pipeline_mode = #tpu.pipeline_mode<synchronous>, transform_indices = @transform_14, window_bounds = array<i64: 1, 128>}, {pipeline_mode = #tpu.pipeline_mode<synchronous>, transform_indices = @transform_15, window_bounds = array<i64: 1, 128>}, {pipeline_mode = #tpu.pipeline_mode<synchronous>, transform_indices = @transform_16, window_bounds = array<i64: 128, 256>}, {transform_indices = @transform_17, window_bounds = array<i64: 8, 256>}]} {
    %c0_i32 = arith.constant 0 : i32
    %0 = arith.cmpi eq, %arg1, %c0_i32 : i32
    %1 = arith.extui %0 : i1 to i32
    %c0_i32_0 = arith.constant 0 : i32
    %2 = arith.cmpi ne, %1, %c0_i32_0 : i32
    scf.if %2 {
      %149 = arith.index_cast %arg0 : i32 to index
      %c0_67 = arith.constant 0 : index
      %150 = memref.load %arg2[%149, %c0_67] : memref<2x8xi32, #tpu.memory_space<smem>>
      %c0_i32_68 = arith.constant 0 : i32
      %c0_i32_69 = arith.constant 0 : i32
      %151 = tpu.memref_slice %arg3[%150, %c0_i32_69] : memref<256x128xf32, #tpu.memory_space<any>> -> memref<1x128xf32, #tpu.memory_space<any>>
      %c0_i32_70 = arith.constant 0 : i32
      %c0_i32_71 = arith.constant 0 : i32
      %152 = tpu.memref_slice %arg21[%c0_i32_70, %c0_i32_71] : memref<8x128xf32, #tpu.memory_space<vmem>> -> memref<1x128xf32, #tpu.memory_space<vmem>>
      %153 = tpu.memref_slice %arg22[%c0_i32_68] : memref<8x!tpu.dma_semaphore, #tpu.memory_space<semaphore_mem>> -> memref<1x!tpu.dma_semaphore, #tpu.memory_space<semaphore_mem>>
      %154 = tpu.memref_squeeze %153 : memref<1x!tpu.dma_semaphore, #tpu.memory_space<semaphore_mem>> -> memref<!tpu.dma_semaphore, #tpu.memory_space<semaphore_mem>>
      tpu.enqueue_dma source(%151 : memref<1x128xf32, #tpu.memory_space<any>>) target(%152 : memref<1x128xf32, #tpu.memory_space<vmem>>) target_semaphore(%154 : memref<!tpu.dma_semaphore, #tpu.memory_space<semaphore_mem>>)
      %155 = arith.index_cast %arg0 : i32 to index
      %c1 = arith.constant 1 : index
      %156 = memref.load %arg2[%155, %c1] : memref<2x8xi32, #tpu.memory_space<smem>>
      %c1_i32_72 = arith.constant 1 : i32
      %c0_i32_73 = arith.constant 0 : i32
      %157 = tpu.memref_slice %arg3[%156, %c0_i32_73] : memref<256x128xf32, #tpu.memory_space<any>> -> memref<1x128xf32, #tpu.memory_space<any>>
      %c1_i32_74 = arith.constant 1 : i32
      %c0_i32_75 = arith.constant 0 : i32
      %158 = tpu.memref_slice %arg21[%c1_i32_74, %c0_i32_75] : memref<8x128xf32, #tpu.memory_space<vmem>> -> memref<1x128xf32, #tpu.memory_space<vmem>>
      %159 = tpu.memref_slice %arg22[%c1_i32_72] : memref<8x!tpu.dma_semaphore, #tpu.memory_space<semaphore_mem>> -> memref<1x!tpu.dma_semaphore, #tpu.memory_space<semaphore_mem>>
      %160 = tpu.memref_squeeze %159 : memref<1x!tpu.dma_semaphore, #tpu.memory_space<semaphore_mem>> -> memref<!tpu.dma_semaphore, #tpu.memory_space<semaphore_mem>>
      tpu.enqueue_dma source(%157 : memref<1x128xf32, #tpu.memory_space<any>>) target(%158 : memref<1x128xf32, #tpu.memory_space<vmem>>) target_semaphore(%160 : memref<!tpu.dma_semaphore, #tpu.memory_space<semaphore_mem>>)
      %161 = arith.index_cast %arg0 : i32 to index
      %c2 = arith.constant 2 : index
      %162 = memref.load %arg2[%161, %c2] : memref<2x8xi32, #tpu.memory_space<smem>>
      %c2_i32 = arith.constant 2 : i32
      %c0_i32_76 = arith.constant 0 : i32
      %163 = tpu.memref_slice %arg3[%162, %c0_i32_76] : memref<256x128xf32, #tpu.memory_space<any>> -> memref<1x128xf32, #tpu.memory_space<any>>
      %c2_i32_77 = arith.constant 2 : i32
      %c0_i32_78 = arith.constant 0 : i32
      %164 = tpu.memref_slice %arg21[%c2_i32_77, %c0_i32_78] : memref<8x128xf32, #tpu.memory_space<vmem>> -> memref<1x128xf32, #tpu.memory_space<vmem>>
      %165 = tpu.memref_slice %arg22[%c2_i32] : memref<8x!tpu.dma_semaphore, #tpu.memory_space<semaphore_mem>> -> memref<1x!tpu.dma_semaphore, #tpu.memory_space<semaphore_mem>>
      %166 = tpu.memref_squeeze %165 : memref<1x!tpu.dma_semaphore, #tpu.memory_space<semaphore_mem>> -> memref<!tpu.dma_semaphore, #tpu.memory_space<semaphore_mem>>
      tpu.enqueue_dma source(%163 : memref<1x128xf32, #tpu.memory_space<any>>) target(%164 : memref<1x128xf32, #tpu.memory_space<vmem>>) target_semaphore(%166 : memref<!tpu.dma_semaphore, #tpu.memory_space<semaphore_mem>>)
      %167 = arith.index_cast %arg0 : i32 to index
      %c3 = arith.constant 3 : index
      %168 = memref.load %arg2[%167, %c3] : memref<2x8xi32, #tpu.memory_space<smem>>
      %c3_i32 = arith.constant 3 : i32
      %c0_i32_79 = arith.constant 0 : i32
      %169 = tpu.memref_slice %arg3[%168, %c0_i32_79] : memref<256x128xf32, #tpu.memory_space<any>> -> memref<1x128xf32, #tpu.memory_space<any>>
      %c3_i32_80 = arith.constant 3 : i32
      %c0_i32_81 = arith.constant 0 : i32
      %170 = tpu.memref_slice %arg21[%c3_i32_80, %c0_i32_81] : memref<8x128xf32, #tpu.memory_space<vmem>> -> memref<1x128xf32, #tpu.memory_space<vmem>>
      %171 = tpu.memref_slice %arg22[%c3_i32] : memref<8x!tpu.dma_semaphore, #tpu.memory_space<semaphore_mem>> -> memref<1x!tpu.dma_semaphore, #tpu.memory_space<semaphore_mem>>
      %172 = tpu.memref_squeeze %171 : memref<1x!tpu.dma_semaphore, #tpu.memory_space<semaphore_mem>> -> memref<!tpu.dma_semaphore, #tpu.memory_space<semaphore_mem>>
      tpu.enqueue_dma source(%169 : memref<1x128xf32, #tpu.memory_space<any>>) target(%170 : memref<1x128xf32, #tpu.memory_space<vmem>>) target_semaphore(%172 : memref<!tpu.dma_semaphore, #tpu.memory_space<semaphore_mem>>)
      %173 = arith.index_cast %arg0 : i32 to index
      %c4 = arith.constant 4 : index
      %174 = memref.load %arg2[%173, %c4] : memref<2x8xi32, #tpu.memory_space<smem>>
      %c4_i32 = arith.constant 4 : i32
      %c0_i32_82 = arith.constant 0 : i32
      %175 = tpu.memref_slice %arg3[%174, %c0_i32_82] : memref<256x128xf32, #tpu.memory_space<any>> -> memref<1x128xf32, #tpu.memory_space<any>>
      %c4_i32_83 = arith.constant 4 : i32
      %c0_i32_84 = arith.constant 0 : i32
      %176 = tpu.memref_slice %arg21[%c4_i32_83, %c0_i32_84] : memref<8x128xf32, #tpu.memory_space<vmem>> -> memref<1x128xf32, #tpu.memory_space<vmem>>
      %177 = tpu.memref_slice %arg22[%c4_i32] : memref<8x!tpu.dma_semaphore, #tpu.memory_space<semaphore_mem>> -> memref<1x!tpu.dma_semaphore, #tpu.memory_space<semaphore_mem>>
      %178 = tpu.memref_squeeze %177 : memref<1x!tpu.dma_semaphore, #tpu.memory_space<semaphore_mem>> -> memref<!tpu.dma_semaphore, #tpu.memory_space<semaphore_mem>>
      tpu.enqueue_dma source(%175 : memref<1x128xf32, #tpu.memory_space<any>>) target(%176 : memref<1x128xf32, #tpu.memory_space<vmem>>) target_semaphore(%178 : memref<!tpu.dma_semaphore, #tpu.memory_space<semaphore_mem>>)
      %179 = arith.index_cast %arg0 : i32 to index
      %c5 = arith.constant 5 : index
      %180 = memref.load %arg2[%179, %c5] : memref<2x8xi32, #tpu.memory_space<smem>>
      %c5_i32 = arith.constant 5 : i32
      %c0_i32_85 = arith.constant 0 : i32
      %181 = tpu.memref_slice %arg3[%180, %c0_i32_85] : memref<256x128xf32, #tpu.memory_space<any>> -> memref<1x128xf32, #tpu.memory_space<any>>
      %c5_i32_86 = arith.constant 5 : i32
      %c0_i32_87 = arith.constant 0 : i32
      %182 = tpu.memref_slice %arg21[%c5_i32_86, %c0_i32_87] : memref<8x128xf32, #tpu.memory_space<vmem>> -> memref<1x128xf32, #tpu.memory_space<vmem>>
      %183 = tpu.memref_slice %arg22[%c5_i32] : memref<8x!tpu.dma_semaphore, #tpu.memory_space<semaphore_mem>> -> memref<1x!tpu.dma_semaphore, #tpu.memory_space<semaphore_mem>>
      %184 = tpu.memref_squeeze %183 : memref<1x!tpu.dma_semaphore, #tpu.memory_space<semaphore_mem>> -> memref<!tpu.dma_semaphore, #tpu.memory_space<semaphore_mem>>
      tpu.enqueue_dma source(%181 : memref<1x128xf32, #tpu.memory_space<any>>) target(%182 : memref<1x128xf32, #tpu.memory_space<vmem>>) target_semaphore(%184 : memref<!tpu.dma_semaphore, #tpu.memory_space<semaphore_mem>>)
      %185 = arith.index_cast %arg0 : i32 to index
      %c6 = arith.constant 6 : index
      %186 = memref.load %arg2[%185, %c6] : memref<2x8xi32, #tpu.memory_space<smem>>
      %c6_i32 = arith.constant 6 : i32
      %c0_i32_88 = arith.constant 0 : i32
      %187 = tpu.memref_slice %arg3[%186, %c0_i32_88] : memref<256x128xf32, #tpu.memory_space<any>> -> memref<1x128xf32, #tpu.memory_space<any>>
      %c6_i32_89 = arith.constant 6 : i32
      %c0_i32_90 = arith.constant 0 : i32
      %188 = tpu.memref_slice %arg21[%c6_i32_89, %c0_i32_90] : memref<8x128xf32, #tpu.memory_space<vmem>> -> memref<1x128xf32, #tpu.memory_space<vmem>>
      %189 = tpu.memref_slice %arg22[%c6_i32] : memref<8x!tpu.dma_semaphore, #tpu.memory_space<semaphore_mem>> -> memref<1x!tpu.dma_semaphore, #tpu.memory_space<semaphore_mem>>
      %190 = tpu.memref_squeeze %189 : memref<1x!tpu.dma_semaphore, #tpu.memory_space<semaphore_mem>> -> memref<!tpu.dma_semaphore, #tpu.memory_space<semaphore_mem>>
      tpu.enqueue_dma source(%187 : memref<1x128xf32, #tpu.memory_space<any>>) target(%188 : memref<1x128xf32, #tpu.memory_space<vmem>>) target_semaphore(%190 : memref<!tpu.dma_semaphore, #tpu.memory_space<semaphore_mem>>)
      %191 = arith.index_cast %arg0 : i32 to index
      %c7 = arith.constant 7 : index
      %192 = memref.load %arg2[%191, %c7] : memref<2x8xi32, #tpu.memory_space<smem>>
      %c7_i32 = arith.constant 7 : i32
      %c0_i32_91 = arith.constant 0 : i32
      %193 = tpu.memref_slice %arg3[%192, %c0_i32_91] : memref<256x128xf32, #tpu.memory_space<any>> -> memref<1x128xf32, #tpu.memory_space<any>>
      %c7_i32_92 = arith.constant 7 : i32
      %c0_i32_93 = arith.constant 0 : i32
      %194 = tpu.memref_slice %arg21[%c7_i32_92, %c0_i32_93] : memref<8x128xf32, #tpu.memory_space<vmem>> -> memref<1x128xf32, #tpu.memory_space<vmem>>
      %195 = tpu.memref_slice %arg22[%c7_i32] : memref<8x!tpu.dma_semaphore, #tpu.memory_space<semaphore_mem>> -> memref<1x!tpu.dma_semaphore, #tpu.memory_space<semaphore_mem>>
      %196 = tpu.memref_squeeze %195 : memref<1x!tpu.dma_semaphore, #tpu.memory_space<semaphore_mem>> -> memref<!tpu.dma_semaphore, #tpu.memory_space<semaphore_mem>>
      tpu.enqueue_dma source(%193 : memref<1x128xf32, #tpu.memory_space<any>>) target(%194 : memref<1x128xf32, #tpu.memory_space<vmem>>) target_semaphore(%196 : memref<!tpu.dma_semaphore, #tpu.memory_space<semaphore_mem>>)
      %c0_i32_94 = arith.constant 0 : i32
      %c0_i32_95 = arith.constant 0 : i32
      %197 = tpu.memref_slice %arg3[%150, %c0_i32_95] : memref<256x128xf32, #tpu.memory_space<any>> -> memref<1x128xf32, #tpu.memory_space<any>>
      %c0_i32_96 = arith.constant 0 : i32
      %c0_i32_97 = arith.constant 0 : i32
      %198 = tpu.memref_slice %arg21[%c0_i32_96, %c0_i32_97] : memref<8x128xf32, #tpu.memory_space<vmem>> -> memref<1x128xf32, #tpu.memory_space<vmem>>
      %199 = tpu.memref_slice %arg22[%c0_i32_94] : memref<8x!tpu.dma_semaphore, #tpu.memory_space<semaphore_mem>> -> memref<1x!tpu.dma_semaphore, #tpu.memory_space<semaphore_mem>>
      %200 = tpu.memref_squeeze %199 : memref<1x!tpu.dma_semaphore, #tpu.memory_space<semaphore_mem>> -> memref<!tpu.dma_semaphore, #tpu.memory_space<semaphore_mem>>
      tpu.wait_dma2 semaphore(%200 : memref<!tpu.dma_semaphore, #tpu.memory_space<semaphore_mem>>) src(%197 : memref<1x128xf32, #tpu.memory_space<any>>) dst(%198 : memref<1x128xf32, #tpu.memory_space<vmem>>)
      %c1_i32_98 = arith.constant 1 : i32
      %c0_i32_99 = arith.constant 0 : i32
      %201 = tpu.memref_slice %arg3[%156, %c0_i32_99] : memref<256x128xf32, #tpu.memory_space<any>> -> memref<1x128xf32, #tpu.memory_space<any>>
      %c1_i32_100 = arith.constant 1 : i32
      %c0_i32_101 = arith.constant 0 : i32
      %202 = tpu.memref_slice %arg21[%c1_i32_100, %c0_i32_101] : memref<8x128xf32, #tpu.memory_space<vmem>> -> memref<1x128xf32, #tpu.memory_space<vmem>>
      %203 = tpu.memref_slice %arg22[%c1_i32_98] : memref<8x!tpu.dma_semaphore, #tpu.memory_space<semaphore_mem>> -> memref<1x!tpu.dma_semaphore, #tpu.memory_space<semaphore_mem>>
      %204 = tpu.memref_squeeze %203 : memref<1x!tpu.dma_semaphore, #tpu.memory_space<semaphore_mem>> -> memref<!tpu.dma_semaphore, #tpu.memory_space<semaphore_mem>>
      tpu.wait_dma2 semaphore(%204 : memref<!tpu.dma_semaphore, #tpu.memory_space<semaphore_mem>>) src(%201 : memref<1x128xf32, #tpu.memory_space<any>>) dst(%202 : memref<1x128xf32, #tpu.memory_space<vmem>>)
      %c2_i32_102 = arith.constant 2 : i32
      %c0_i32_103 = arith.constant 0 : i32
      %205 = tpu.memref_slice %arg3[%162, %c0_i32_103] : memref<256x128xf32, #tpu.memory_space<any>> -> memref<1x128xf32, #tpu.memory_space<any>>
      %c2_i32_104 = arith.constant 2 : i32
      %c0_i32_105 = arith.constant 0 : i32
      %206 = tpu.memref_slice %arg21[%c2_i32_104, %c0_i32_105] : memref<8x128xf32, #tpu.memory_space<vmem>> -> memref<1x128xf32, #tpu.memory_space<vmem>>
      %207 = tpu.memref_slice %arg22[%c2_i32_102] : memref<8x!tpu.dma_semaphore, #tpu.memory_space<semaphore_mem>> -> memref<1x!tpu.dma_semaphore, #tpu.memory_space<semaphore_mem>>
      %208 = tpu.memref_squeeze %207 : memref<1x!tpu.dma_semaphore, #tpu.memory_space<semaphore_mem>> -> memref<!tpu.dma_semaphore, #tpu.memory_space<semaphore_mem>>
      tpu.wait_dma2 semaphore(%208 : memref<!tpu.dma_semaphore, #tpu.memory_space<semaphore_mem>>) src(%205 : memref<1x128xf32, #tpu.memory_space<any>>) dst(%206 : memref<1x128xf32, #tpu.memory_space<vmem>>)
      %c3_i32_106 = arith.constant 3 : i32
      %c0_i32_107 = arith.constant 0 : i32
      %209 = tpu.memref_slice %arg3[%168, %c0_i32_107] : memref<256x128xf32, #tpu.memory_space<any>> -> memref<1x128xf32, #tpu.memory_space<any>>
      %c3_i32_108 = arith.constant 3 : i32
      %c0_i32_109 = arith.constant 0 : i32
      %210 = tpu.memref_slice %arg21[%c3_i32_108, %c0_i32_109] : memref<8x128xf32, #tpu.memory_space<vmem>> -> memref<1x128xf32, #tpu.memory_space<vmem>>
      %211 = tpu.memref_slice %arg22[%c3_i32_106] : memref<8x!tpu.dma_semaphore, #tpu.memory_space<semaphore_mem>> -> memref<1x!tpu.dma_semaphore, #tpu.memory_space<semaphore_mem>>
      %212 = tpu.memref_squeeze %211 : memref<1x!tpu.dma_semaphore, #tpu.memory_space<semaphore_mem>> -> memref<!tpu.dma_semaphore, #tpu.memory_space<semaphore_mem>>
      tpu.wait_dma2 semaphore(%212 : memref<!tpu.dma_semaphore, #tpu.memory_space<semaphore_mem>>) src(%209 : memref<1x128xf32, #tpu.memory_space<any>>) dst(%210 : memref<1x128xf32, #tpu.memory_space<vmem>>)
      %c4_i32_110 = arith.constant 4 : i32
      %c0_i32_111 = arith.constant 0 : i32
      %213 = tpu.memref_slice %arg3[%174, %c0_i32_111] : memref<256x128xf32, #tpu.memory_space<any>> -> memref<1x128xf32, #tpu.memory_space<any>>
      %c4_i32_112 = arith.constant 4 : i32
      %c0_i32_113 = arith.constant 0 : i32
      %214 = tpu.memref_slice %arg21[%c4_i32_112, %c0_i32_113] : memref<8x128xf32, #tpu.memory_space<vmem>> -> memref<1x128xf32, #tpu.memory_space<vmem>>
      %215 = tpu.memref_slice %arg22[%c4_i32_110] : memref<8x!tpu.dma_semaphore, #tpu.memory_space<semaphore_mem>> -> memref<1x!tpu.dma_semaphore, #tpu.memory_space<semaphore_mem>>
      %216 = tpu.memref_squeeze %215 : memref<1x!tpu.dma_semaphore, #tpu.memory_space<semaphore_mem>> -> memref<!tpu.dma_semaphore, #tpu.memory_space<semaphore_mem>>
      tpu.wait_dma2 semaphore(%216 : memref<!tpu.dma_semaphore, #tpu.memory_space<semaphore_mem>>) src(%213 : memref<1x128xf32, #tpu.memory_space<any>>) dst(%214 : memref<1x128xf32, #tpu.memory_space<vmem>>)
      %c5_i32_114 = arith.constant 5 : i32
      %c0_i32_115 = arith.constant 0 : i32
      %217 = tpu.memref_slice %arg3[%180, %c0_i32_115] : memref<256x128xf32, #tpu.memory_space<any>> -> memref<1x128xf32, #tpu.memory_space<any>>
      %c5_i32_116 = arith.constant 5 : i32
      %c0_i32_117 = arith.constant 0 : i32
      %218 = tpu.memref_slice %arg21[%c5_i32_116, %c0_i32_117] : memref<8x128xf32, #tpu.memory_space<vmem>> -> memref<1x128xf32, #tpu.memory_space<vmem>>
      %219 = tpu.memref_slice %arg22[%c5_i32_114] : memref<8x!tpu.dma_semaphore, #tpu.memory_space<semaphore_mem>> -> memref<1x!tpu.dma_semaphore, #tpu.memory_space<semaphore_mem>>
      %220 = tpu.memref_squeeze %219 : memref<1x!tpu.dma_semaphore, #tpu.memory_space<semaphore_mem>> -> memref<!tpu.dma_semaphore, #tpu.memory_space<semaphore_mem>>
      tpu.wait_dma2 semaphore(%220 : memref<!tpu.dma_semaphore, #tpu.memory_space<semaphore_mem>>) src(%217 : memref<1x128xf32, #tpu.memory_space<any>>) dst(%218 : memref<1x128xf32, #tpu.memory_space<vmem>>)
      %c6_i32_118 = arith.constant 6 : i32
      %c0_i32_119 = arith.constant 0 : i32
      %221 = tpu.memref_slice %arg3[%186, %c0_i32_119] : memref<256x128xf32, #tpu.memory_space<any>> -> memref<1x128xf32, #tpu.memory_space<any>>
      %c6_i32_120 = arith.constant 6 : i32
      %c0_i32_121 = arith.constant 0 : i32
      %222 = tpu.memref_slice %arg21[%c6_i32_120, %c0_i32_121] : memref<8x128xf32, #tpu.memory_space<vmem>> -> memref<1x128xf32, #tpu.memory_space<vmem>>
      %223 = tpu.memref_slice %arg22[%c6_i32_118] : memref<8x!tpu.dma_semaphore, #tpu.memory_space<semaphore_mem>> -> memref<1x!tpu.dma_semaphore, #tpu.memory_space<semaphore_mem>>
      %224 = tpu.memref_squeeze %223 : memref<1x!tpu.dma_semaphore, #tpu.memory_space<semaphore_mem>> -> memref<!tpu.dma_semaphore, #tpu.memory_space<semaphore_mem>>
      tpu.wait_dma2 semaphore(%224 : memref<!tpu.dma_semaphore, #tpu.memory_space<semaphore_mem>>) src(%221 : memref<1x128xf32, #tpu.memory_space<any>>) dst(%222 : memref<1x128xf32, #tpu.memory_space<vmem>>)
      %c7_i32_122 = arith.constant 7 : i32
      %c0_i32_123 = arith.constant 0 : i32
      %225 = tpu.memref_slice %arg3[%192, %c0_i32_123] : memref<256x128xf32, #tpu.memory_space<any>> -> memref<1x128xf32, #tpu.memory_space<any>>
      %c7_i32_124 = arith.constant 7 : i32
      %c0_i32_125 = arith.constant 0 : i32
      %226 = tpu.memref_slice %arg21[%c7_i32_124, %c0_i32_125] : memref<8x128xf32, #tpu.memory_space<vmem>> -> memref<1x128xf32, #tpu.memory_space<vmem>>
      %227 = tpu.memref_slice %arg22[%c7_i32_122] : memref<8x!tpu.dma_semaphore, #tpu.memory_space<semaphore_mem>> -> memref<1x!tpu.dma_semaphore, #tpu.memory_space<semaphore_mem>>
      %228 = tpu.memref_squeeze %227 : memref<1x!tpu.dma_semaphore, #tpu.memory_space<semaphore_mem>> -> memref<!tpu.dma_semaphore, #tpu.memory_space<semaphore_mem>>
      tpu.wait_dma2 semaphore(%228 : memref<!tpu.dma_semaphore, #tpu.memory_space<semaphore_mem>>) src(%225 : memref<1x128xf32, #tpu.memory_space<any>>) dst(%226 : memref<1x128xf32, #tpu.memory_space<vmem>>)
      %c0_126 = arith.constant 0 : index
      %c0_127 = arith.constant 0 : index
      %229 = vector.load %arg21[%c0_126, %c0_127] : memref<8x128xf32, #tpu.memory_space<vmem>>, vector<8x128xf32>
      %c0_128 = arith.constant 0 : index
      %c0_129 = arith.constant 0 : index
      %230 = vector.load %arg4[%c0_128, %c0_129] : memref<8x128xf32, #tpu.memory_space<vmem>>, vector<8x128xf32>
      %231 = arith.addf %229, %230 : vector<8x128xf32>
      %c0_130 = arith.constant 0 : index
      %c0_131 = arith.constant 0 : index
      %232 = vector.load %arg21[%c0_130, %c0_131] : memref<8x128xf32, #tpu.memory_space<vmem>>, vector<8x128xf32>
      tpu.vector_store %arg21[%c0_130, %c0_131], %231 {strides = array<i32>} : memref<8x128xf32, #tpu.memory_space<vmem>>, vector<8x128xf32>,
    } else {
    }
    %c0 = arith.constant 0 : index
    %c0_1 = arith.constant 0 : index
    %3 = vector.load %arg21[%c0, %c0_1] : memref<8x128xf32, #tpu.memory_space<vmem>>, vector<8x128xf32>
    %4 = tpu.iota {dimensions = array<i32: 0>} : vector<8x8xi32>
    %5 = tpu.iota {dimensions = array<i32: 1>} : vector<8x8xi32>
    %6 = arith.cmpi sle, %5, %4 : vector<8x8xi32>
    %cst = arith.constant 0.000000e+00 : f32
    %cst_2 = arith.constant -1.000000e+30 : f32
    %7 = vector.broadcast %cst : f32 to vector<8x8xf32>
    %8 = vector.broadcast %cst_2 : f32 to vector<8x8xf32>
    %9 = arith.select %6, %7, %8 : vector<8x8xi1>, vector<8x8xf32>
    %c0_3 = arith.constant 0 : index
    %c0_4 = arith.constant 0 : index
    %c0_5 = arith.constant 0 : index
    %10 = vector.load %arg9[%c0_3, %c0_4, %c0_5] : memref<1x1x128xf32, #tpu.memory_space<vmem>>, vector<1x1x128xf32>
    %11 = vector.shape_cast %10 : vector<1x1x128xf32> to vector<1x128xf32>
    %c0_6 = arith.constant 0 : index
    %c0_7 = arith.constant 0 : index
    %c0_8 = arith.constant 0 : index
    %12 = vector.load %arg10[%c0_6, %c0_7, %c0_8] : memref<1x1x128xf32, #tpu.memory_space<vmem>>, vector<1x1x128xf32>
    %13 = vector.shape_cast %12 : vector<1x1x128xf32> to vector<1x128xf32>
    %cst_9 = arith.constant dense<0.000000e+00> : vector<8xf32>
    %14 = vector.multi_reduction <add>, %3, %cst_9 [1] : vector<8x128xf32> to vector<8xf32>
    %15 = vector.shape_cast %14 : vector<8xf32> to vector<8x1xf32>
    %cst_10 = arith.constant 1.280000e+02 : f32
    %16 = vector.broadcast %cst_10 : f32 to vector<8x1xf32>
    %17 = arith.divf %15, %16 : vector<8x1xf32>
    %18 = vector.broadcast %17 : vector<8x1xf32> to vector<8x128xf32>
    %19 = arith.subf %3, %18 : vector<8x128xf32>
    %20 = arith.mulf %19, %19 : vector<8x128xf32>
    %cst_11 = arith.constant dense<0.000000e+00> : vector<8xf32>
    %21 = vector.multi_reduction <add>, %20, %cst_11 [1] : vector<8x128xf32> to vector<8xf32>
    %22 = vector.shape_cast %21 : vector<8xf32> to vector<8x1xf32>
    %cst_12 = arith.constant 1.280000e+02 : f32
    %23 = vector.broadcast %cst_12 : f32 to vector<8x1xf32>
    %24 = arith.divf %22, %23 : vector<8x1xf32>
    %25 = vector.broadcast %17 : vector<8x1xf32> to vector<8x128xf32>
    %26 = arith.subf %3, %25 : vector<8x128xf32>
    %cst_13 = arith.constant 9.99999974E-6 : f32
    %27 = vector.broadcast %cst_13 : f32 to vector<8x1xf32>
    %28 = arith.addf %24, %27 : vector<8x1xf32>
    %29 = math.rsqrt %28 : vector<8x1xf32>
    %30 = vector.broadcast %29 : vector<8x1xf32> to vector<8x128xf32>
    %31 = arith.mulf %26, %30 : vector<8x128xf32>
    %32 = vector.broadcast %11 : vector<1x128xf32> to vector<8x128xf32>
    %33 = arith.mulf %31, %32 : vector<8x128xf32>
    %34 = vector.broadcast %13 : vector<1x128xf32> to vector<8x128xf32>
    %35 = arith.addf %33, %34 : vector<8x128xf32>
    %36 = arith.truncf %35 : vector<8x128xf32> to vector<8x128xbf16>
    %c0_14 = arith.constant 0 : index
    %c0_15 = arith.constant 0 : index
    %c0_16 = arith.constant 0 : index
    %37 = vector.load %arg5[%c0_14, %c0_15, %c0_16] : memref<1x128x384xbf16, #tpu.memory_space<vmem>>, vector<1x128x384xbf16>
    %38 = vector.shape_cast %37 : vector<1x128x384xbf16> to vector<128x384xbf16>
    %cst_17 = arith.constant dense<0.000000e+00> : vector<8x384xf32>
    %39 = tpu.matmul %36, %38, %cst_17 {dimension_numbers = #tpu.dot_dimension_numbers<[1], [0], [0], [1], [0, 0, 1, 1], [], []>} : vector<8x128xbf16>, vector<128x384xbf16>, vector<8x384xf32> -> vector<8x384xf32>
    %c0_18 = arith.constant 0 : index
    %c0_19 = arith.constant 0 : index
    %c0_20 = arith.constant 0 : index
    %40 = vector.load %arg6[%c0_18, %c0_19, %c0_20] : memref<1x1x384xf32, #tpu.memory_space<vmem>>, vector<1x1x384xf32>
    %41 = vector.shape_cast %40 : vector<1x1x384xf32> to vector<1x384xf32>
    %42 = vector.broadcast %41 : vector<1x384xf32> to vector<8x384xf32>
    %43 = arith.addf %39, %42 : vector<8x384xf32>
    %44 = vector.extract_strided_slice %43 {offsets = [0, 0], sizes = [8, 64], strides = [1, 1]} : vector<8x384xf32> to vector<8x64xf32>
    %45 = vector.extract_strided_slice %43 {offsets = [0, 128], sizes = [8, 64], strides = [1, 1]} : vector<8x384xf32> to vector<8x64xf32>
    %46 = vector.extract_strided_slice %43 {offsets = [0, 256], sizes = [8, 64], strides = [1, 1]} : vector<8x384xf32> to vector<8x64xf32>
    %47 = arith.truncf %44 : vector<8x64xf32> to vector<8x64xbf16>
    %48 = arith.truncf %45 : vector<8x64xf32> to vector<8x64xbf16>
    %cst_21 = arith.constant dense<0.000000e+00> : vector<8x8xf32>
    %49 = tpu.matmul %47, %48, %cst_21 {dimension_numbers = #tpu.dot_dimension_numbers<[1], [1], [0], [0], [0, 0, 1, 0], [], []>} : vector<8x64xbf16>, vector<8x64xbf16>, vector<8x8xf32> -> vector<8x8xf32>
    %50 = arith.addf %49, %9 : vector<8x8xf32>
    %cst_22 = arith.constant dense<0xFF800000> : vector<8xf32>
    %51 = vector.multi_reduction <maximumf>, %50, %cst_22 [1] : vector<8x8xf32> to vector<8xf32>
    %52 = vector.shape_cast %51 : vector<8xf32> to vector<8x1xf32>
    %53 = vector.broadcast %52 : vector<8x1xf32> to vector<8x8xf32>
    %54 = arith.subf %50, %53 : vector<8x8xf32>
    %55 = math.exp %54 : vector<8x8xf32>
    %cst_23 = arith.constant dense<0.000000e+00> : vector<8xf32>
    %56 = vector.multi_reduction <add>, %55, %cst_23 [1] : vector<8x8xf32> to vector<8xf32>
    %57 = vector.shape_cast %56 : vector<8xf32> to vector<8x1xf32>
    %58 = tpu.reciprocal %57 {approx = true} : vector<8x1xf32> -> vector<8x1xf32>
    %59 = vector.broadcast %58 : vector<8x1xf32> to vector<8x8xf32>
    %60 = arith.mulf %55, %59 : vector<8x8xf32>
    %61 = arith.truncf %60 : vector<8x8xf32> to vector<8x8xbf16>
    %62 = arith.truncf %46 : vector<8x64xf32> to vector<8x64xbf16>
    %cst_24 = arith.constant dense<0.000000e+00> : vector<8x64xf32>
    %63 = tpu.matmul %61, %62, %cst_24 {dimension_numbers = #tpu.dot_dimension_numbers<[1], [0], [0], [1], [0, 0, 1, 1], [], []>} : vector<8x8xbf16>, vector<8x64xbf16>, vector<8x64xf32> -> vector<8x64xf32>
    %64 = vector.extract_strided_slice %43 {offsets = [0, 64], sizes = [8, 64], strides = [1, 1]} : vector<8x384xf32> to vector<8x64xf32>
    %65 = vector.extract_strided_slice %43 {offsets = [0, 192], sizes = [8, 64], strides = [1, 1]} : vector<8x384xf32> to vector<8x64xf32>
    %66 = vector.extract_strided_slice %43 {offsets = [0, 320], sizes = [8, 64], strides = [1, 1]} : vector<8x384xf32> to vector<8x64xf32>
    %67 = arith.truncf %64 : vector<8x64xf32> to vector<8x64xbf16>
    %68 = arith.truncf %65 : vector<8x64xf32> to vector<8x64xbf16>
    %cst_25 = arith.constant dense<0.000000e+00> : vector<8x8xf32>
    %69 = tpu.matmul %67, %68, %cst_25 {dimension_numbers = #tpu.dot_dimension_numbers<[1], [1], [0], [0], [0, 0, 1, 0], [], []>} : vector<8x64xbf16>, vector<8x64xbf16>, vector<8x8xf32> -> vector<8x8xf32>
    %70 = arith.addf %69, %9 : vector<8x8xf32>
    %cst_26 = arith.constant dense<0xFF800000> : vector<8xf32>
    %71 = vector.multi_reduction <maximumf>, %70, %cst_26 [1] : vector<8x8xf32> to vector<8xf32>
    %72 = vector.shape_cast %71 : vector<8xf32> to vector<8x1xf32>
    %73 = vector.broadcast %72 : vector<8x1xf32> to vector<8x8xf32>
    %74 = arith.subf %70, %73 : vector<8x8xf32>
    %75 = math.exp %74 : vector<8x8xf32>
    %cst_27 = arith.constant dense<0.000000e+00> : vector<8xf32>
    %76 = vector.multi_reduction <add>, %75, %cst_27 [1] : vector<8x8xf32> to vector<8xf32>
    %77 = vector.shape_cast %76 : vector<8xf32> to vector<8x1xf32>
    %78 = tpu.reciprocal %77 {approx = true} : vector<8x1xf32> -> vector<8x1xf32>
    %79 = vector.broadcast %78 : vector<8x1xf32> to vector<8x8xf32>
    %80 = arith.mulf %75, %79 : vector<8x8xf32>
    %81 = arith.truncf %80 : vector<8x8xf32> to vector<8x8xbf16>
    %82 = arith.truncf %66 : vector<8x64xf32> to vector<8x64xbf16>
    %cst_28 = arith.constant dense<0.000000e+00> : vector<8x64xf32>
    %83 = tpu.matmul %81, %82, %cst_28 {dimension_numbers = #tpu.dot_dimension_numbers<[1], [0], [0], [1], [0, 0, 1, 1], [], []>} : vector<8x8xbf16>, vector<8x64xbf16>, vector<8x64xf32> -> vector<8x64xf32>
    %84 = tpu.concatenate %63, %83 in 1 : vector<8x64xf32>, vector<8x64xf32> -> vector<8x128xf32>
    %85 = arith.truncf %84 : vector<8x128xf32> to vector<8x128xbf16>
    %c0_29 = arith.constant 0 : index
    %c0_30 = arith.constant 0 : index
    %c0_31 = arith.constant 0 : index
    %86 = vector.load %arg7[%c0_29, %c0_30, %c0_31] : memref<1x128x128xbf16, #tpu.memory_space<vmem>>, vector<1x128x128xbf16>
    %87 = vector.shape_cast %86 : vector<1x128x128xbf16> to vector<128x128xbf16>
    %cst_32 = arith.constant dense<0.000000e+00> : vector<8x128xf32>
    %88 = tpu.matmul %85, %87, %cst_32 {dimension_numbers = #tpu.dot_dimension_numbers<[1], [0], [0], [1], [0, 0, 1, 1], [], []>} : vector<8x128xbf16>, vector<128x128xbf16>, vector<8x128xf32> -> vector<8x128xf32>
    %c0_33 = arith.constant 0 : index
    %c0_34 = arith.constant 0 : index
    %c0_35 = arith.constant 0 : index
    %89 = vector.load %arg8[%c0_33, %c0_34, %c0_35] : memref<1x1x128xf32, #tpu.memory_space<vmem>>, vector<1x1x128xf32>
    %90 = vector.shape_cast %89 : vector<1x1x128xf32> to vector<1x128xf32>
    %91 = vector.broadcast %90 : vector<1x128xf32> to vector<8x128xf32>
    %92 = arith.addf %88, %91 : vector<8x128xf32>
    %93 = arith.addf %3, %92 : vector<8x128xf32>
    %c0_36 = arith.constant 0 : index
    %c0_37 = arith.constant 0 : index
    %c0_38 = arith.constant 0 : index
    %94 = vector.load %arg11[%c0_36, %c0_37, %c0_38] : memref<1x1x128xf32, #tpu.memory_space<vmem>>, vector<1x1x128xf32>
    %95 = vector.shape_cast %94 : vector<1x1x128xf32> to vector<1x128xf32>
    %c0_39 = arith.constant 0 : index
    %c0_40 = arith.constant 0 : index
    %c0_41 = arith.constant 0 : index
    %96 = vector.load %arg12[%c0_39, %c0_40, %c0_41] : memref<1x1x128xf32, #tpu.memory_space<vmem>>, vector<1x1x128xf32>
    %97 = vector.shape_cast %96 : vector<1x1x128xf32> to vector<1x128xf32>
    %cst_42 = arith.constant dense<0.000000e+00> : vector<8xf32>
    %98 = vector.multi_reduction <add>, %93, %cst_42 [1] : vector<8x128xf32> to vector<8xf32>
    %99 = vector.shape_cast %98 : vector<8xf32> to vector<8x1xf32>
    %cst_43 = arith.constant 1.280000e+02 : f32
    %100 = vector.broadcast %cst_43 : f32 to vector<8x1xf32>
    %101 = arith.divf %99, %100 : vector<8x1xf32>
    %102 = vector.broadcast %101 : vector<8x1xf32> to vector<8x128xf32>
    %103 = arith.subf %93, %102 : vector<8x128xf32>
    %104 = arith.mulf %103, %103 : vector<8x128xf32>
    %cst_44 = arith.constant dense<0.000000e+00> : vector<8xf32>
    %105 = vector.multi_reduction <add>, %104, %cst_44 [1] : vector<8x128xf32> to vector<8xf32>
    %106 = vector.shape_cast %105 : vector<8xf32> to vector<8x1xf32>
    %cst_45 = arith.constant 1.280000e+02 : f32
    %107 = vector.broadcast %cst_45 : f32 to vector<8x1xf32>
    %108 = arith.divf %106, %107 : vector<8x1xf32>
    %109 = vector.broadcast %101 : vector<8x1xf32> to vector<8x128xf32>
    %110 = arith.subf %93, %109 : vector<8x128xf32>
    %cst_46 = arith.constant 9.99999974E-6 : f32
    %111 = vector.broadcast %cst_46 : f32 to vector<8x1xf32>
    %112 = arith.addf %108, %111 : vector<8x1xf32>
    %113 = math.rsqrt %112 : vector<8x1xf32>
    %114 = vector.broadcast %113 : vector<8x1xf32> to vector<8x128xf32>
    %115 = arith.mulf %110, %114 : vector<8x128xf32>
    %116 = vector.broadcast %95 : vector<1x128xf32> to vector<8x128xf32>
    %117 = arith.mulf %115, %116 : vector<8x128xf32>
    %118 = vector.broadcast %97 : vector<1x128xf32> to vector<8x128xf32>
    %119 = arith.addf %117, %118 : vector<8x128xf32>
    %120 = arith.truncf %119 : vector<8x128xf32> to vector<8x128xbf16>
    %c0_47 = arith.constant 0 : index
    %c0_48 = arith.constant 0 : index
    %c0_49 = arith.constant 0 : index
    %121 = vector.load %arg13[%c0_47, %c0_48, %c0_49] : memref<1x128x512xbf16, #tpu.memory_space<vmem>>, vector<1x128x512xbf16>
    %122 = vector.shape_cast %121 : vector<1x128x512xbf16> to vector<128x512xbf16>
    %cst_50 = arith.constant dense<0.000000e+00> : vector<8x512xf32>
    %123 = tpu.matmul %120, %122, %cst_50 {dimension_numbers = #tpu.dot_dimension_numbers<[1], [0], [0], [1], [0, 0, 1, 1], [], []>} : vector<8x128xbf16>, vector<128x512xbf16>, vector<8x512xf32> -> vector<8x512xf32>
    %c0_51 = arith.constant 0 : index
    %c0_52 = arith.constant 0 : index
    %c0_53 = arith.constant 0 : index
    %124 = vector.load %arg14[%c0_51, %c0_52, %c0_53] : memref<1x1x512xf32, #tpu.memory_space<vmem>>, vector<1x1x512xf32>
    %125 = vector.shape_cast %124 : vector<1x1x512xf32> to vector<1x512xf32>
    %126 = vector.broadcast %125 : vector<1x512xf32> to vector<8x512xf32>
    %127 = arith.addf %123, %126 : vector<8x512xf32>
    %cst_54 = arith.constant 5.000000e-01 : f32
    %128 = vector.broadcast %cst_54 : f32 to vector<8x512xf32>
    %129 = arith.mulf %128, %127 : vector<8x512xf32>
    %cst_55 = arith.constant 0.707106769 : f32
    %130 = vector.broadcast %cst_55 : f32 to vector<8x512xf32>
    %131 = arith.mulf %127, %130 : vector<8x512xf32>
    %132 = math.erf %131 : vector<8x512xf32>
    %cst_56 = arith.constant 1.000000e+00 : f32
    %133 = vector.broadcast %cst_56 : f32 to vector<8x512xf32>
    %134 = arith.addf %133, %132 : vector<8x512xf32>
    %135 = arith.mulf %129, %134 : vector<8x512xf32>
    %136 = arith.truncf %135 : vector<8x512xf32> to vector<8x512xbf16>
    %c0_57 = arith.constant 0 : index
    %c0_58 = arith.constant 0 : index
    %c0_59 = arith.constant 0 : index
    %137 = vector.load %arg15[%c0_57, %c0_58, %c0_59] : memref<1x512x128xbf16, #tpu.memory_space<vmem>>, vector<1x512x128xbf16>
    %138 = vector.shape_cast %137 : vector<1x512x128xbf16> to vector<512x128xbf16>
    %cst_60 = arith.constant dense<0.000000e+00> : vector<8x128xf32>
    %139 = tpu.matmul %136, %138, %cst_60 {dimension_numbers = #tpu.dot_dimension_numbers<[1], [0], [0], [1], [0, 0, 1, 1], [], []>} : vector<8x512xbf16>, vector<512x128xbf16>, vector<8x128xf32> -> vector<8x128xf32>
    %c0_61 = arith.constant 0 : index
    %c0_62 = arith.constant 0 : index
    %c0_63 = arith.constant 0 : index
    %140 = vector.load %arg16[%c0_61, %c0_62, %c0_63] : memref<1x1x128xf32, #tpu.memory_space<vmem>>, vector<1x1x128xf32>
    %141 = vector.shape_cast %140 : vector<1x1x128xf32> to vector<1x128xf32>
    %142 = vector.broadcast %141 : vector<1x128xf32> to vector<8x128xf32>
    %143 = arith.addf %139, %142 : vector<8x128xf32>
    %144 = arith.addf %93, %143 : vector<8x128xf32>
    %c0_64 = arith.constant 0 : index
    %c0_65 = arith.constant 0 : index
    %145 = vector.load %arg21[%c0_64, %c0_65] : memref<8x128xf32, #tpu.memory_space<vmem>>, vector<8x128xf32>
    tpu.vector_store %arg21[%c0_64, %c0_65], %144 {strides = array<i32>} : memref<8x128xf32, #tpu.memory_space<vmem>>, vector<8x128xf32>,
    %c1_i32 = arith.constant 1 : i32
    %146 = arith.cmpi eq, %arg1, %c1_i32 : i32
    %147 = arith.extui %146 : i1 to i32
    %c0_i32_66 = arith.constant 0 : i32
    %148 = arith.cmpi ne, %147, %c0_i32_66 : i32
    scf.if %148 {
      %c0_67 = arith.constant 0 : index
      %c0_68 = arith.constant 0 : index
      %149 = vector.load %arg17[%c0_67, %c0_68] : memref<1x128xf32, #tpu.memory_space<vmem>>, vector<1x128xf32>
      %c0_69 = arith.constant 0 : index
      %c0_70 = arith.constant 0 : index
      %150 = vector.load %arg18[%c0_69, %c0_70] : memref<1x128xf32, #tpu.memory_space<vmem>>, vector<1x128xf32>
      %cst_71 = arith.constant dense<0.000000e+00> : vector<8xf32>
      %151 = vector.multi_reduction <add>, %144, %cst_71 [1] : vector<8x128xf32> to vector<8xf32>
      %152 = vector.shape_cast %151 : vector<8xf32> to vector<8x1xf32>
      %cst_72 = arith.constant 1.280000e+02 : f32
      %153 = vector.broadcast %cst_72 : f32 to vector<8x1xf32>
      %154 = arith.divf %152, %153 : vector<8x1xf32>
      %155 = vector.broadcast %154 : vector<8x1xf32> to vector<8x128xf32>
      %156 = arith.subf %144, %155 : vector<8x128xf32>
      %157 = arith.mulf %156, %156 : vector<8x128xf32>
      %cst_73 = arith.constant dense<0.000000e+00> : vector<8xf32>
      %158 = vector.multi_reduction <add>, %157, %cst_73 [1] : vector<8x128xf32> to vector<8xf32>
      %159 = vector.shape_cast %158 : vector<8xf32> to vector<8x1xf32>
      %cst_74 = arith.constant 1.280000e+02 : f32
      %160 = vector.broadcast %cst_74 : f32 to vector<8x1xf32>
      %161 = arith.divf %159, %160 : vector<8x1xf32>
      %162 = vector.broadcast %154 : vector<8x1xf32> to vector<8x128xf32>
      %163 = arith.subf %144, %162 : vector<8x128xf32>
      %cst_75 = arith.constant 9.99999974E-6 : f32
      %164 = vector.broadcast %cst_75 : f32 to vector<8x1xf32>
      %165 = arith.addf %161, %164 : vector<8x1xf32>
      %166 = math.rsqrt %165 : vector<8x1xf32>
      %167 = vector.broadcast %166 : vector<8x1xf32> to vector<8x128xf32>
      %168 = arith.mulf %163, %167 : vector<8x128xf32>
      %169 = vector.broadcast %149 : vector<1x128xf32> to vector<8x128xf32>
      %170 = arith.mulf %168, %169 : vector<8x128xf32>
      %171 = vector.broadcast %150 : vector<1x128xf32> to vector<8x128xf32>
      %172 = arith.addf %170, %171 : vector<8x128xf32>
      %173 = arith.truncf %172 : vector<8x128xf32> to vector<8x128xbf16>
      %c0_76 = arith.constant 0 : index
      %c0_77 = arith.constant 0 : index
      %174 = vector.load %arg19[%c0_76, %c0_77] : memref<128x256xbf16, #tpu.memory_space<vmem>>, vector<128x256xbf16>
      %cst_78 = arith.constant dense<0.000000e+00> : vector<8x256xf32>
      %175 = tpu.matmul %173, %174, %cst_78 {dimension_numbers = #tpu.dot_dimension_numbers<[1], [0], [0], [1], [0, 0, 1, 1], [], []>} : vector<8x128xbf16>, vector<128x256xbf16>, vector<8x256xf32> -> vector<8x256xf32>
      %c0_79 = arith.constant 0 : index
      %c0_80 = arith.constant 0 : index
      %176 = vector.load %arg20[%c0_79, %c0_80] : memref<8x256xf32, #tpu.memory_space<vmem>>, vector<8x256xf32>
      tpu.vector_store %arg20[%c0_79, %c0_80], %175 {strides = array<i32>} : memref<8x256xf32, #tpu.memory_space<vmem>>, vector<8x256xf32>,
    } else {
    }
    return
  }
  func.func @transform_1(%arg0: i32, %arg1: i32, %arg2: memref<2x8xi32, #tpu.memory_space<smem>>) -> (i32, i32) {
    %c0_i32 = arith.constant 0 : i32
    %c0_i32_0 = arith.constant 0 : i32
    %c0_i32_1 = arith.constant 0 : i32
    return %c0_i32, %c0_i32_0 : i32, i32
  }
  func.func @transform_2(%arg0: i32, %arg1: i32, %arg2: memref<2x8xi32, #tpu.memory_space<smem>>) -> (i32, i32, i32) {
    %c0_i32 = arith.constant 0 : i32
    %c0_i32_0 = arith.constant 0 : i32
    %c0_i32_1 = arith.constant 0 : i32
    return %arg1, %c0_i32, %c0_i32_0 : i32, i32, i32
  }
  func.func @transform_3(%arg0: i32, %arg1: i32, %arg2: memref<2x8xi32, #tpu.memory_space<smem>>) -> (i32, i32, i32) {
    %c0_i32 = arith.constant 0 : i32
    %c0_i32_0 = arith.constant 0 : i32
    %c0_i32_1 = arith.constant 0 : i32
    return %arg1, %c0_i32, %c0_i32_0 : i32, i32, i32
  }
  func.func @transform_4(%arg0: i32, %arg1: i32, %arg2: memref<2x8xi32, #tpu.memory_space<smem>>) -> (i32, i32, i32) {
    %c0_i32 = arith.constant 0 : i32
    %c0_i32_0 = arith.constant 0 : i32
    %c0_i32_1 = arith.constant 0 : i32
    return %arg1, %c0_i32, %c0_i32_0 : i32, i32, i32
  }
  func.func @transform_5(%arg0: i32, %arg1: i32, %arg2: memref<2x8xi32, #tpu.memory_space<smem>>) -> (i32, i32, i32) {
    %c0_i32 = arith.constant 0 : i32
    %c0_i32_0 = arith.constant 0 : i32
    %c0_i32_1 = arith.constant 0 : i32
    return %arg1, %c0_i32, %c0_i32_0 : i32, i32, i32
  }
  func.func @transform_6(%arg0: i32, %arg1: i32, %arg2: memref<2x8xi32, #tpu.memory_space<smem>>) -> (i32, i32, i32) {
    %c0_i32 = arith.constant 0 : i32
    %c0_i32_0 = arith.constant 0 : i32
    %c0_i32_1 = arith.constant 0 : i32
    return %arg1, %c0_i32, %c0_i32_0 : i32, i32, i32
  }
  func.func @transform_7(%arg0: i32, %arg1: i32, %arg2: memref<2x8xi32, #tpu.memory_space<smem>>) -> (i32, i32, i32) {
    %c0_i32 = arith.constant 0 : i32
    %c0_i32_0 = arith.constant 0 : i32
    %c0_i32_1 = arith.constant 0 : i32
    return %arg1, %c0_i32, %c0_i32_0 : i32, i32, i32
  }
  func.func @transform_8(%arg0: i32, %arg1: i32, %arg2: memref<2x8xi32, #tpu.memory_space<smem>>) -> (i32, i32, i32) {
    %c0_i32 = arith.constant 0 : i32
    %c0_i32_0 = arith.constant 0 : i32
    %c0_i32_1 = arith.constant 0 : i32
    return %arg1, %c0_i32, %c0_i32_0 : i32, i32, i32
  }
  func.func @transform_9(%arg0: i32, %arg1: i32, %arg2: memref<2x8xi32, #tpu.memory_space<smem>>) -> (i32, i32, i32) {
    %c0_i32 = arith.constant 0 : i32
    %c0_i32_0 = arith.constant 0 : i32
    %c0_i32_1 = arith.constant 0 : i32
    return %arg1, %c0_i32, %c0_i32_0 : i32, i32, i32
  }
  func.func @transform_10(%arg0: i32, %arg1: i32, %arg2: memref<2x8xi32, #tpu.memory_space<smem>>) -> (i32, i32, i32) {
    %c0_i32 = arith.constant 0 : i32
    %c0_i32_0 = arith.constant 0 : i32
    %c0_i32_1 = arith.constant 0 : i32
    return %arg1, %c0_i32, %c0_i32_0 : i32, i32, i32
  }
  func.func @transform_11(%arg0: i32, %arg1: i32, %arg2: memref<2x8xi32, #tpu.memory_space<smem>>) -> (i32, i32, i32) {
    %c0_i32 = arith.constant 0 : i32
    %c0_i32_0 = arith.constant 0 : i32
    %c0_i32_1 = arith.constant 0 : i32
    return %arg1, %c0_i32, %c0_i32_0 : i32, i32, i32
  }
  func.func @transform_12(%arg0: i32, %arg1: i32, %arg2: memref<2x8xi32, #tpu.memory_space<smem>>) -> (i32, i32, i32) {
    %c0_i32 = arith.constant 0 : i32
    %c0_i32_0 = arith.constant 0 : i32
    %c0_i32_1 = arith.constant 0 : i32
    return %arg1, %c0_i32, %c0_i32_0 : i32, i32, i32
  }
  func.func @transform_13(%arg0: i32, %arg1: i32, %arg2: memref<2x8xi32, #tpu.memory_space<smem>>) -> (i32, i32, i32) {
    %c0_i32 = arith.constant 0 : i32
    %c0_i32_0 = arith.constant 0 : i32
    %c0_i32_1 = arith.constant 0 : i32
    return %arg1, %c0_i32, %c0_i32_0 : i32, i32, i32
  }
  func.func @transform_14(%arg0: i32, %arg1: i32, %arg2: memref<2x8xi32, #tpu.memory_space<smem>>) -> (i32, i32) {
    %c0_i32 = arith.constant 0 : i32
    %c0_i32_0 = arith.constant 0 : i32
    %c0_i32_1 = arith.constant 0 : i32
    return %c0_i32, %c0_i32_0 : i32, i32
  }
  func.func @transform_15(%arg0: i32, %arg1: i32, %arg2: memref<2x8xi32, #tpu.memory_space<smem>>) -> (i32, i32) {
    %c0_i32 = arith.constant 0 : i32
    %c0_i32_0 = arith.constant 0 : i32
    %c0_i32_1 = arith.constant 0 : i32
    return %c0_i32, %c0_i32_0 : i32, i32
  }
  func.func @transform_16(%arg0: i32, %arg1: i32, %arg2: memref<2x8xi32, #tpu.memory_space<smem>>) -> (i32, i32) {
    %c0_i32 = arith.constant 0 : i32
    %c0_i32_0 = arith.constant 0 : i32
    %c0_i32_1 = arith.constant 0 : i32
    return %c0_i32, %c0_i32_0 : i32, i32
  }
  func.func @transform_17(%arg0: i32, %arg1: i32, %arg2: memref<2x8xi32, #tpu.memory_space<smem>>) -> (i32, i32) {
    %c0_i32 = arith.constant 0 : i32
    %c0_i32_0 = arith.constant 0 : i32
    return %arg0, %c0_i32 : i32, i32
  }
}

</mosaic_0001>

<llo_original>
// kernel: tpu_custom_call.1
$region0: #{tpu_custom_call.1}
  #allocation0 [shape = 'u32[]', space=smem, size = 0x4, offset = 0x4, fixed_abs, tag = 'smem constant byte address 0x4 - core index']
  #allocation1 [shape = 'u32[144,128]{1,0:T(1,128)}', space=vmem, size = 0x12000, scoped, tag = 'internal scratch']
  #allocation2 [shape = 'f32[8,128]{1,0:T(8,128)}', space=vmem, size = 0x1000, scoped, tag = 'scratch operand']
  #allocation3 [shape = 's32[8]{0}', space=sflag, size = 0x20, scoped, tag = 'scratch operand']
  #allocation4 [shape = 's32[1]{0}', space=sflag, size = 0x4, scoped, tag = 'scoped memory for tpu_custom_call.1']
  #allocation5 [shape = 'u8[1024]{0}', space=smem, size = 0x400, scoped, tag = 'prefetched SMEM operand 0']
  #allocation22 [shape = 's32[]', space=sflag, size = 0x4, offset = 0, fixed_abs, tag = 'sflag constant byte address 0x0 - dummy sync flag']
  #allocation23 [shape = 's32[]', space=sflag, size = 0x4, offset = 0, fixed_abs, tag = 'sflag constant byte address 0x0 - dummy sync flag']
  #allocation24 [shape = 'u32[]', space=smem, size = 0x4, offset = 0x44, fixed_abs, tag = 'smem constant byte address 0x44 - assertion arg 0']
  #allocation25 [shape = 'u32[]', space=smem, size = 0x4, offset = 0x48, fixed_abs, tag = 'smem constant byte address 0x48 - assertion arg 1']
  #allocation26 [shape = 's32[]', space=sflag, size = 0x4, offset = 0, fixed_abs, tag = 'sflag constant byte address 0x0 - dummy sync flag']
  #allocation27 [shape = 's32[]', space=sflag, size = 0x4, offset = 0, fixed_abs, tag = 'sflag constant byte address 0x0 - dummy sync flag']
  #allocation28 [shape = 's32[]', space=sflag, size = 0x4, offset = 0, fixed_abs, tag = 'sflag constant byte address 0x0 - dummy sync flag']
  #allocation29 [shape = 's32[]', space=sflag, size = 0x4, offset = 0, fixed_abs, tag = 'sflag constant byte address 0x0 - dummy sync flag']
  #allocation30 [shape = 's32[]', space=sflag, size = 0x4, offset = 0, fixed_abs, tag = 'sflag constant byte address 0x0 - dummy sync flag']
  #allocation31 [shape = 's32[]', space=sflag, size = 0x4, offset = 0, fixed_abs, tag = 'sflag constant byte address 0x0 - dummy sync flag']
  #allocation32 [shape = 's32[]', space=sflag, size = 0x4, offset = 0, fixed_abs, tag = 'sflag constant byte address 0x0 - dummy sync flag']
  #allocation33 [shape = 's32[]', space=sflag, size = 0x4, offset = 0, fixed_abs, tag = 'sflag constant byte address 0x0 - dummy sync flag']
  #allocation34 [shape = 's32[]', space=sflag, size = 0x4, offset = 0, fixed_abs, tag = 'sflag constant byte address 0x0 - dummy sync flag']
  #allocation35 [shape = 's32[]', space=sflag, size = 0x4, offset = 0, fixed_abs, tag = 'sflag constant byte address 0x0 - dummy sync flag']
  #allocation36 [shape = 's32[]', space=sflag, size = 0x4, offset = 0, fixed_abs, tag = 'sflag constant byte address 0x0 - dummy sync flag']
  #allocation37 [shape = 's32[]', space=sflag, size = 0x4, offset = 0, fixed_abs, tag = 'sflag constant byte address 0x0 - dummy sync flag']
  #allocation38 [shape = 's32[]', space=sflag, size = 0x4, offset = 0, fixed_abs, tag = 'sflag constant byte address 0x0 - dummy sync flag']
  #allocation39 [shape = 's32[]', space=sflag, size = 0x4, offset = 0, fixed_abs, tag = 'sflag constant byte address 0x0 - dummy sync flag']
  %s0 = inlined_call_operand.hbm [shape: s32[2,8], index: 0, kind: input, shape index: {}]
  %s1 = inlined_call_operand.hbm [shape: f32[256,128], index: 1, kind: input, shape index: {}]
  %s2 = inlined_call_operand.hbm [shape: f32[8,128], index: 2, kind: input, shape index: {}]
  %s3 = inlined_call_operand.hbm [shape: bf16[2,128,384], index: 3, kind: input, shape index: {}]
  %s4 = inlined_call_operand.vmem [shape: f32[2,1,384], index: 4, kind: input, shape index: {}]
  %s5 = inlined_call_operand.hbm [shape: bf16[2,128,128], index: 5, kind: input, shape index: {}]
  %s6 = inlined_call_operand.vmem [shape: f32[2,1,128], index: 6, kind: input, shape index: {}]
  %s7 = inlined_call_operand.hbm [shape: f32[2,1,128], index: 7, kind: input, shape index: {}]
  %s8 = inlined_call_operand.hbm [shape: f32[2,1,128], index: 8, kind: input, shape index: {}]
  %s9 = inlined_call_operand.hbm [shape: f32[2,1,128], index: 9, kind: input, shape index: {}]
  %s10 = inlined_call_operand.vmem [shape: f32[2,1,128], index: 10, kind: input, shape index: {}]
  %s11 = inlined_call_operand.hbm [shape: bf16[2,128,512], index: 11, kind: input, shape index: {}]
  %s12 = inlined_call_operand.vmem [shape: f32[2,1,512], index: 12, kind: input, shape index: {}]
  %s13 = inlined_call_operand.hbm [shape: bf16[2,512,128], index: 13, kind: input, shape index: {}]
  %s14 = inlined_call_operand.vmem [shape: f32[2,1,128], index: 14, kind: input, shape index: {}]
  %s15 = inlined_call_operand.vmem [shape: f32[1,128], index: 15, kind: input, shape index: {}]
  %s16 = inlined_call_operand.vmem [shape: f32[1,128], index: 16, kind: input, shape index: {}]
  %s17 = inlined_call_operand.hbm [shape: bf16[128,256], index: 17, kind: input, shape index: {}]
  %s18 = inlined_call_operand.hbm [shape: f32[16,256], index: 18, kind: output, shape index: {}]
  %s19 = sld [smem:[#allocation0]]
  $region173: #{tpu_custom_call.1} parent=0
    _
  %s21 = ssub.s32 1, %s19
  %s22 = scalar_select 0, %s21, %s19
  %24 = dma.hbm_to_smem %s0, 32, [#allocation5], [#allocation4]
  %25 = dma.done [#allocation4], 32
  %26 = sfence
  $region1: #{tpu_custom_call.1} parent=0
    #allocation6 [shape = 'u8[4096]{0}', space=vmem, size = 0x1000, scoped, tag = 'input window, operand 2, single buffered']
    #allocation7 [shape = 's32[2]{0}', space=sflag, size = 0x8, scoped, tag = 'scoped memory for tpu_custom_call.1']
    #allocation8 [shape = 's32[2]{0}', space=sflag, size = 0x8, scoped, tag = 'scoped memory for tpu_custom_call.1']
    #allocation9 [shape = 'u8[196608]{0}', space=vmem, size = 0x30000, scoped, tag = 'input window, operand 3']
    #allocation10 [shape = 's32[2]{0}', space=sflag, size = 0x8, scoped, tag = 'scoped memory for tpu_custom_call.1']
    #allocation11 [shape = 'u8[65536]{0}', space=vmem, size = 0x10000, scoped, tag = 'input window, operand 5']
    #allocation12 [shape = 'u8[1024]{0}', space=vmem, size = 0x400, scoped, tag = 'input window, operand 7']
    #allocation13 [shape = 's32[2]{0}', space=sflag, size = 0x8, scoped, tag = 'scoped memory for tpu_custom_call.1']
    #allocation14 [shape = 'u8[1024]{0}', space=vmem, size = 0x400, scoped, tag = 'input window, operand 8']
    #allocation15 [shape = 'u8[1024]{0}', space=vmem, size = 0x400, scoped, tag = 'input window, operand 9']
    #allocation16 [shape = 's32[2]{0}', space=sflag, size = 0x8, scoped, tag = 'scoped memory for tpu_custom_call.1']
    #allocation17 [shape = 'u8[262144]{0}', space=vmem, size = 0x40000, scoped, tag = 'input window, operand 11']
    #allocation18 [shape = 'u8[262144]{0}', space=vmem, size = 0x40000, scoped, tag = 'input window, operand 13']
    #allocation19 [shape = 's32[2]{0}', space=sflag, size = 0x8, scoped, tag = 'scoped memory for tpu_custom_call.1']
    #allocation20 [shape = 'u8[65536]{0}', space=vmem, size = 0x10000, scoped, tag = 'input window, operand 17, single buffered']
    #allocation21 [shape = 'u8[16384]{0}', space=vmem, size = 0x4000, scoped, tag = 'output window, operand 0']
    %27 = vsyncpa [#allocation7], 0
    %28 = vsyncpa [#allocation10], 0
    %s29 = scalar_lea.sflag [#allocation10], 1
    %30 = vsyncpa %s29, 0
    %31 = vsyncpa [#allocation13], 0
    %s32 = scalar_lea.sflag [#allocation13], 1
    %33 = vsyncpa %s32, 0
    %34 = vsyncpa [#allocation16], 0
    %s35 = scalar_lea.sflag [#allocation16], 1
    %36 = vsyncpa %s35, 0
    %37 = vsyncpa [#allocation19], 0
    %s38 = scalar_lea.sflag [#allocation19], 1
    %39 = vsyncpa %s38, 0
    %40 = vsyncpa [#allocation8], 0
    %s41 = scalar_lea.sflag [#allocation8], 1
    %42 = vsyncpa %s41, 0
    loop: start=0, step=1, limit=6
    $region2: #{tpu_custom_call.1} parent=1 // loop_pre_header
      _
    $region3: #{tpu_custom_call.1} parent=1 // loop_header
      %s44 = sphi 0, %s48
      %p45 = scmp.ge.s32.totalorder %s44, 6
      %s51 = sphi 0, %s63
      %s52 = sphi 0, %s59
      %s53 = sphi 0, %s51
      %s54 = sphi 0, %s52
      %s55 = sphi 0, %s53
      %s56 = sphi 0, %s54
      %s64 = sphi 0, %s64
      %s66 = sphi 0, %s64
      %s67 = sphi 0, %s66
      %s81 = sphi 0, %s67
      %s87 = sphi 0, %s89
      %s90 = sphi 0, %s87
      %s91 = sphi 0, %s90
      %s107 = sphi 0, %s91
      %s113 = sphi 0, %s115
      %s116 = sphi 0, %s113
      %s117 = sphi 0, %s116
      %s133 = sphi 0, %s117
      %s139 = sphi 0, %s141
      %s142 = sphi 0, %s139
      %s143 = sphi 0, %s142
      %s159 = sphi 0, %s143
      %s165 = sphi 0, %s167
      %s168 = sphi 0, %s165
      %s169 = sphi 0, %s168
      %s185 = sphi 0, %s169
      %s191 = sphi 0, %s193
      %s194 = sphi 0, %s191
      %s195 = sphi 0, %s194
      %s211 = sphi 0, %s195
      %s217 = sphi 0, %s219
      %s220 = sphi 0, %s217
      %s221 = sphi 0, %s220
      %s237 = sphi 0, %s221
      %s243 = sphi 0, %s245
      %s246 = sphi 0, %s243
      %s247 = sphi 0, %s246
      %s263 = sphi 0, %s247
      %s269 = sphi 0, %s271
      %s272 = sphi 0, %s269
      %s273 = sphi 0, %s272
      %s289 = sphi 0, %s273
      %s295 = sphi 0, %s297
      %s298 = sphi 0, %s295
      %s299 = sphi 0, %s298
      %s315 = sphi 0, %s299
      %s321 = sphi 0, %s323
      %s324 = sphi 0, %s321
      %s325 = sphi 0, %s324
      %s341 = sphi 0, %s325
      %s347 = sphi 0, %s349
      %s350 = sphi 0, %s347
      %s351 = sphi 0, %s350
      %s367 = sphi 0, %s351
      %s373 = sphi 0, %s375
      %s376 = sphi 0, %s373
      %s377 = sphi 0, %s376
      %s393 = sphi 0, %s377
      %s397 = sphi 0, %s397
      %s399 = sphi 0, %s397
      %s400 = sphi 0, %s399
      %s414 = sphi 0, %s400
      %s418 = sphi 0, %s418
      %s420 = sphi 0, %s418
      %s421 = sphi 0, %s420
      %s435 = sphi 0, %s421
      %s439 = sphi 0, %s439
      %s441 = sphi 0, %s439
      %s442 = sphi 0, %s441
      %s456 = sphi 0, %s442
      %s462 = sphi 0, %s464
      %s465 = sphi 0, %s462
      %s466 = sphi 0, %s465
      %s482 = sphi 0, %s466
    $region4: #{tpu_custom_call.1} parent=1 // loop_header_branch
      %47 = sbr.rel (%p45) target = $region8
    $region5: #{tpu_custom_call.1} parent=1 // loop_body
      %s49 = ssub.s32 %s44, 1
      %s50 = ssub.s32 %s44, 2
      %s57 = sadd.s32 1, %s52
      %p58 = scmp.ge.s32.totalorder %s57, 2
      %s59 = scalar_select %p58, 0, %s57
      %s60 = sadd.s32 1, %s51
      %s61 = scalar_select %p58, %s60, %s51
      %p62 = scmp.ge.s32.totalorder %s61, 2
      %s63 = scalar_select %p62, 0, %s61
      %s65 = sadd.s32 %s64, 1
      %p68 = scmp.eq.s32.totalorder %s44, 3
      %p69 = scmp.ne.s32.totalorder %s64, %s66
      %p70 = scmp.eq.s32.totalorder %s44, 0
      %p71 = por %p69, %p70
      %p72 = scmp.ne.s32.totalorder %s64, %s66
      %p73 = scmp.eq.s32.totalorder %s49, 3
      %p74 = por %p72, %p73
      %p75 = scmp.ne.s32.totalorder %s66, %s67
      %p76 = scmp.eq.s32.totalorder %s49, 0
      %p77 = por %p75, %p76
      %p78 = scmp.ne.s32.totalorder %s66, %s67
      %p79 = scmp.eq.s32.totalorder %s50, 3
      %p80 = por %p78, %p79
      %p82 = scmp.ne.s32.totalorder %s67, %s81
      %p83 = scmp.eq.s32.totalorder %s50, 0
      %p84 = por %p82, %p83
      %s85 = ssub.s32 %s52, %s59
      %p86 = scmp.eq.s32.totalorder %s85, 0
      %s88 = sadd.s32 %s87, 1
      %s89 = scalar_select %p86, %s87, %s88
      %p92 = pneg %p86
      %p93 = scmp.eq.s32.totalorder %s44, 3
      %p94 = por %p92, %p93
      %p95 = scmp.ne.s32.totalorder %s87, %s90
      %p96 = scmp.eq.s32.totalorder %s44, 0
      %p97 = por %p95, %p96
      %p98 = scmp.ne.s32.totalorder %s87, %s90
      %p99 = scmp.eq.s32.totalorder %s49, 3
      %p100 = por %p98, %p99
      %p101 = scmp.ne.s32.totalorder %s90, %s91
      %p102 = scmp.eq.s32.totalorder %s49, 0
      %p103 = por %p101, %p102
      %p104 = scmp.ne.s32.totalorder %s90, %s91
      %p105 = scmp.eq.s32.totalorder %s50, 3
      %p106 = por %p104, %p105
      %p108 = scmp.ne.s32.totalorder %s91, %s107
      %p109 = scmp.eq.s32.totalorder %s50, 0
      %p110 = por %p108, %p109
      %s111 = ssub.s32 %s52, %s59
      %p112 = scmp.eq.s32.totalorder %s111, 0
      %s114 = sadd.s32 %s113, 1
      %s115 = scalar_select %p112, %s113, %s114
      %p118 = pneg %p112
      %p119 = scmp.eq.s32.totalorder %s44, 3
      %p120 = por %p118, %p119
      %p121 = scmp.ne.s32.totalorder %s113, %s116
      %p122 = scmp.eq.s32.totalorder %s44, 0
      %p123 = por %p121, %p122
      %p124 = scmp.ne.s32.totalorder %s113, %s116
      %p125 = scmp.eq.s32.totalorder %s49, 3
      %p126 = por %p124, %p125
      %p127 = scmp.ne.s32.totalorder %s116, %s117
      %p128 = scmp.eq.s32.totalorder %s49, 0
      %p129 = por %p127, %p128
      %p130 = scmp.ne.s32.totalorder %s116, %s117
      %p131 = scmp.eq.s32.totalorder %s50, 3
      %p132 = por %p130, %p131
      %p134 = scmp.ne.s32.totalorder %s117, %s133
      %p135 = scmp.eq.s32.totalorder %s50, 0
      %p136 = por %p134, %p135
      %s137 = ssub.s32 %s52, %s59
      %p138 = scmp.eq.s32.totalorder %s137, 0
      %s140 = sadd.s32 %s139, 1
      %s141 = scalar_select %p138, %s139, %s140
      %p144 = pneg %p138
      %p145 = scmp.eq.s32.totalorder %s44, 3
      %p146 = por %p144, %p145
      %p147 = scmp.ne.s32.totalorder %s139, %s142
      %p148 = scmp.eq.s32.totalorder %s44, 0
      %p149 = por %p147, %p148
      %p150 = scmp.ne.s32.totalorder %s139, %s142
      %p151 = scmp.eq.s32.totalorder %s49, 3
      %p152 = por %p150, %p151
      %p153 = scmp.ne.s32.totalorder %s142, %s143
      %p154 = scmp.eq.s32.totalorder %s49, 0
      %p155 = por %p153, %p154
      %p156 = scmp.ne.s32.totalorder %s142, %s143
      %p157 = scmp.eq.s32.totalorder %s50, 3
      %p158 = por %p156, %p157
      %p160 = scmp.ne.s32.totalorder %s143, %s159
      %p161 = scmp.eq.s32.totalorder %s50, 0
      %p162 = por %p160, %p161
      %s163 = ssub.s32 %s52, %s59
      %p164 = scmp.eq.s32.totalorder %s163, 0
      %s166 = sadd.s32 %s165, 1
      %s167 = scalar_select %p164, %s165, %s166
      %p170 = pneg %p164
      %p171 = scmp.eq.s32.totalorder %s44, 3
      %p172 = por %p170, %p171
      %p173 = scmp.ne.s32.totalorder %s165, %s168
      %p174 = scmp.eq.s32.totalorder %s44, 0
      %p175 = por %p173, %p174
      %p176 = scmp.ne.s32.totalorder %s165, %s168
      %p177 = scmp.eq.s32.totalorder %s49, 3
      %p178 = por %p176, %p177
      %p179 = scmp.ne.s32.totalorder %s168, %s169
      %p180 = scmp.eq.s32.totalorder %s49, 0
      %p181 = por %p179, %p180
      %p182 = scmp.ne.s32.totalorder %s168, %s169
      %p183 = scmp.eq.s32.totalorder %s50, 3
      %p184 = por %p182, %p183
      %p186 = scmp.ne.s32.totalorder %s169, %s185
      %p187 = scmp.eq.s32.totalorder %s50, 0
      %p188 = por %p186, %p187
      %s189 = ssub.s32 %s52, %s59
      %p190 = scmp.eq.s32.totalorder %s189, 0
      %s192 = sadd.s32 %s191, 1
      %s193 = scalar_select %p190, %s191, %s192
      %p196 = pneg %p190
      %p197 = scmp.eq.s32.totalorder %s44, 3
      %p198 = por %p196, %p197
      %p199 = scmp.ne.s32.totalorder %s191, %s194
      %p200 = scmp.eq.s32.totalorder %s44, 0
      %p201 = por %p199, %p200
      %p202 = scmp.ne.s32.totalorder %s191, %s194
      %p203 = scmp.eq.s32.totalorder %s49, 3
      %p204 = por %p202, %p203
      %p205 = scmp.ne.s32.totalorder %s194, %s195
      %p206 = scmp.eq.s32.totalorder %s49, 0
      %p207 = por %p205, %p206
      %p208 = scmp.ne.s32.totalorder %s194, %s195
      %p209 = scmp.eq.s32.totalorder %s50, 3
      %p210 = por %p208, %p209
      %p212 = scmp.ne.s32.totalorder %s195, %s211
      %p213 = scmp.eq.s32.totalorder %s50, 0
      %p214 = por %p212, %p213
      %s215 = ssub.s32 %s52, %s59
      %p216 = scmp.eq.s32.totalorder %s215, 0
      %s218 = sadd.s32 %s217, 1
      %s219 = scalar_select %p216, %s217, %s218
      %p222 = pneg %p216
      %p223 = scmp.eq.s32.totalorder %s44, 3
      %p224 = por %p222, %p223
      %p225 = scmp.ne.s32.totalorder %s217, %s220
      %p226 = scmp.eq.s32.totalorder %s44, 0
      %p227 = por %p225, %p226
      %p228 = scmp.ne.s32.totalorder %s217, %s220
      %p229 = scmp.eq.s32.totalorder %s49, 3
      %p230 = por %p228, %p229
      %p231 = scmp.ne.s32.totalorder %s220, %s221
      %p232 = scmp.eq.s32.totalorder %s49, 0
      %p233 = por %p231, %p232
      %p234 = scmp.ne.s32.totalorder %s220, %s221
      %p235 = scmp.eq.s32.totalorder %s50, 3
      %p236 = por %p234, %p235
      %p238 = scmp.ne.s32.totalorder %s221, %s237
      %p239 = scmp.eq.s32.totalorder %s50, 0
      %p240 = por %p238, %p239
      %s241 = ssub.s32 %s52, %s59
      %p242 = scmp.eq.s32.totalorder %s241, 0
      %s244 = sadd.s32 %s243, 1
      %s245 = scalar_select %p242, %s243, %s244
      %p248 = pneg %p242
      %p249 = scmp.eq.s32.totalorder %s44, 3
      %p250 = por %p248, %p249
      %p251 = scmp.ne.s32.totalorder %s243, %s246
      %p252 = scmp.eq.s32.totalorder %s44, 0
      %p253 = por %p251, %p252
      %p254 = scmp.ne.s32.totalorder %s243, %s246
      %p255 = scmp.eq.s32.totalorder %s49, 3
      %p256 = por %p254, %p255
      %p257 = scmp.ne.s32.totalorder %s246, %s247
      %p258 = scmp.eq.s32.totalorder %s49, 0
      %p259 = por %p257, %p258
      %p260 = scmp.ne.s32.totalorder %s246, %s247
      %p261 = scmp.eq.s32.totalorder %s50, 3
      %p262 = por %p260, %p261
      %p264 = scmp.ne.s32.totalorder %s247, %s263
      %p265 = scmp.eq.s32.totalorder %s50, 0
      %p266 = por %p264, %p265
      %s267 = ssub.s32 %s52, %s59
      %p268 = scmp.eq.s32.totalorder %s267, 0
      %s270 = sadd.s32 %s269, 1
      %s271 = scalar_select %p268, %s269, %s270
      %p274 = pneg %p268
      %p275 = scmp.eq.s32.totalorder %s44, 3
      %p276 = por %p274, %p275
      %p277 = scmp.ne.s32.totalorder %s269, %s272
      %p278 = scmp.eq.s32.totalorder %s44, 0
      %p279 = por %p277, %p278
      %p280 = scmp.ne.s32.totalorder %s269, %s272
      %p281 = scmp.eq.s32.totalorder %s49, 3
      %p282 = por %p280, %p281
      %p283 = scmp.ne.s32.totalorder %s272, %s273
      %p284 = scmp.eq.s32.totalorder %s49, 0
      %p285 = por %p283, %p284
      %p286 = scmp.ne.s32.totalorder %s272, %s273
      %p287 = scmp.eq.s32.totalorder %s50, 3
      %p288 = por %p286, %p287
      %p290 = scmp.ne.s32.totalorder %s273, %s289
      %p291 = scmp.eq.s32.totalorder %s50, 0
      %p292 = por %p290, %p291
      %s293 = ssub.s32 %s52, %s59
      %p294 = scmp.eq.s32.totalorder %s293, 0
      %s296 = sadd.s32 %s295, 1
      %s297 = scalar_select %p294, %s295, %s296
      %p300 = pneg %p294
      %p301 = scmp.eq.s32.totalorder %s44, 3
      %p302 = por %p300, %p301
      %p303 = scmp.ne.s32.totalorder %s295, %s298
      %p304 = scmp.eq.s32.totalorder %s44, 0
      %p305 = por %p303, %p304
      %p306 = scmp.ne.s32.totalorder %s295, %s298
      %p307 = scmp.eq.s32.totalorder %s49, 3
      %p308 = por %p306, %p307
      %p309 = scmp.ne.s32.totalorder %s298, %s299
      %p310 = scmp.eq.s32.totalorder %s49, 0
      %p311 = por %p309, %p310
      %p312 = scmp.ne.s32.totalorder %s298, %s299
      %p313 = scmp.eq.s32.totalorder %s50, 3
      %p314 = por %p312, %p313
      %p316 = scmp.ne.s32.totalorder %s299, %s315
      %p317 = scmp.eq.s32.totalorder %s50, 0
      %p318 = por %p316, %p317
      %s319 = ssub.s32 %s52, %s59
      %p320 = scmp.eq.s32.totalorder %s319, 0
      %s322 = sadd.s32 %s321, 1
      %s323 = scalar_select %p320, %s321, %s322
      %p326 = pneg %p320
      %p327 = scmp.eq.s32.totalorder %s44, 3
      %p328 = por %p326, %p327
      %p329 = scmp.ne.s32.totalorder %s321, %s324
      %p330 = scmp.eq.s32.totalorder %s44, 0
      %p331 = por %p329, %p330
      %p332 = scmp.ne.s32.totalorder %s321, %s324
      %p333 = scmp.eq.s32.totalorder %s49, 3
      %p334 = por %p332, %p333
      %p335 = scmp.ne.s32.totalorder %s324, %s325
      %p336 = scmp.eq.s32.totalorder %s49, 0
      %p337 = por %p335, %p336
      %p338 = scmp.ne.s32.totalorder %s324, %s325
      %p339 = scmp.eq.s32.totalorder %s50, 3
      %p340 = por %p338, %p339
      %p342 = scmp.ne.s32.totalorder %s325, %s341
      %p343 = scmp.eq.s32.totalorder %s50, 0
      %p344 = por %p342, %p343
      %s345 = ssub.s32 %s52, %s59
      %p346 = scmp.eq.s32.totalorder %s345, 0
      %s348 = sadd.s32 %s347, 1
      %s349 = scalar_select %p346, %s347, %s348
      %p352 = pneg %p346
      %p353 = scmp.eq.s32.totalorder %s44, 3
      %p354 = por %p352, %p353
      %p355 = scmp.ne.s32.totalorder %s347, %s350
      %p356 = scmp.eq.s32.totalorder %s44, 0
      %p357 = por %p355, %p356
      %p358 = scmp.ne.s32.totalorder %s347, %s350
      %p359 = scmp.eq.s32.totalorder %s49, 3
      %p360 = por %p358, %p359
      %p361 = scmp.ne.s32.totalorder %s350, %s351
      %p362 = scmp.eq.s32.totalorder %s49, 0
      %p363 = por %p361, %p362
      %p364 = scmp.ne.s32.totalorder %s350, %s351
      %p365 = scmp.eq.s32.totalorder %s50, 3
      %p366 = por %p364, %p365
      %p368 = scmp.ne.s32.totalorder %s351, %s367
      %p369 = scmp.eq.s32.totalorder %s50, 0
      %p370 = por %p368, %p369
      %s371 = ssub.s32 %s52, %s59
      %p372 = scmp.eq.s32.totalorder %s371, 0
      %s374 = sadd.s32 %s373, 1
      %s375 = scalar_select %p372, %s373, %s374
      %p378 = pneg %p372
      %p379 = scmp.eq.s32.totalorder %s44, 3
      %p380 = por %p378, %p379
      %p381 = scmp.ne.s32.totalorder %s373, %s376
      %p382 = scmp.eq.s32.totalorder %s44, 0
      %p383 = por %p381, %p382
      %p384 = scmp.ne.s32.totalorder %s373, %s376
      %p385 = scmp.eq.s32.totalorder %s49, 3
      %p386 = por %p384, %p385
      %p387 = scmp.ne.s32.totalorder %s376, %s377
      %p388 = scmp.eq.s32.totalorder %s49, 0
      %p389 = por %p387, %p388
      %p390 = scmp.ne.s32.totalorder %s376, %s377
      %p391 = scmp.eq.s32.totalorder %s50, 3
      %p392 = por %p390, %p391
      %p394 = scmp.ne.s32.totalorder %s377, %s393
      %p395 = scmp.eq.s32.totalorder %s50, 0
      %p396 = por %p394, %p395
      %s398 = sadd.s32 %s397, 1
      %p401 = scmp.eq.s32.totalorder %s44, 3
      %p402 = scmp.ne.s32.totalorder %s397, %s399
      %p403 = scmp.eq.s32.totalorder %s44, 0
      %p404 = por %p402, %p403
      %p405 = scmp.ne.s32.totalorder %s397, %s399
      %p406 = scmp.eq.s32.totalorder %s49, 3
      %p407 = por %p405, %p406
      %p408 = scmp.ne.s32.totalorder %s399, %s400
      %p409 = scmp.eq.s32.totalorder %s49, 0
      %p410 = por %p408, %p409
      %p411 = scmp.ne.s32.totalorder %s399, %s400
      %p412 = scmp.eq.s32.totalorder %s50, 3
      %p413 = por %p411, %p412
      %p415 = scmp.ne.s32.totalorder %s400, %s414
      %p416 = scmp.eq.s32.totalorder %s50, 0
      %p417 = por %p415, %p416
      %s419 = sadd.s32 %s418, 1
      %p422 = scmp.eq.s32.totalorder %s44, 3
      %p423 = scmp.ne.s32.totalorder %s418, %s420
      %p424 = scmp.eq.s32.totalorder %s44, 0
      %p425 = por %p423, %p424
      %p426 = scmp.ne.s32.totalorder %s418, %s420
      %p427 = scmp.eq.s32.totalorder %s49, 3
      %p428 = por %p426, %p427
      %p429 = scmp.ne.s32.totalorder %s420, %s421
      %p430 = scmp.eq.s32.totalorder %s49, 0
      %p431 = por %p429, %p430
      %p432 = scmp.ne.s32.totalorder %s420, %s421
      %p433 = scmp.eq.s32.totalorder %s50, 3
      %p434 = por %p432, %p433
      %p436 = scmp.ne.s32.totalorder %s421, %s435
      %p437 = scmp.eq.s32.totalorder %s50, 0
      %p438 = por %p436, %p437
      %s440 = sadd.s32 %s439, 1
      %p443 = scmp.eq.s32.totalorder %s44, 3
      %p444 = scmp.ne.s32.totalorder %s439, %s441
      %p445 = scmp.eq.s32.totalorder %s44, 0
      %p446 = por %p444, %p445
      %p447 = scmp.ne.s32.totalorder %s439, %s441
      %p448 = scmp.eq.s32.totalorder %s49, 3
      %p449 = por %p447, %p448
      %p450 = scmp.ne.s32.totalorder %s441, %s442
      %p451 = scmp.eq.s32.totalorder %s49, 0
      %p452 = por %p450, %p451
      %p453 = scmp.ne.s32.totalorder %s441, %s442
      %p454 = scmp.eq.s32.totalorder %s50, 3
      %p455 = por %p453, %p454
      %p457 = scmp.ne.s32.totalorder %s442, %s456
      %p458 = scmp.eq.s32.totalorder %s50, 0
      %p459 = por %p457, %p458
      %s460 = ssub.s32 %s51, %s63
      %p461 = scmp.eq.s32.totalorder %s460, 0
      %s463 = sadd.s32 %s462, 1
      %s464 = scalar_select %p461, %s462, %s463
      %p467 = pneg %p461
      %p468 = scmp.eq.s32.totalorder %s44, 3
      %p469 = por %p467, %p468
      %p470 = scmp.ne.s32.totalorder %s462, %s465
      %p471 = scmp.eq.s32.totalorder %s44, 0
      %p472 = por %p470, %p471
      %p473 = scmp.ne.s32.totalorder %s462, %s465
      %p474 = scmp.eq.s32.totalorder %s49, 3
      %p475 = por %p473, %p474
      %p476 = scmp.ne.s32.totalorder %s465, %s466
      %p477 = scmp.eq.s32.totalorder %s49, 0
      %p478 = por %p476, %p477
      %p479 = scmp.ne.s32.totalorder %s465, %s466
      %p480 = scmp.eq.s32.totalorder %s50, 3
      %p481 = por %p479, %p480
      %p483 = scmp.ne.s32.totalorder %s466, %s482
      %p484 = scmp.eq.s32.totalorder %s50, 0
      %p485 = por %p483, %p484
      %p486 = scmp.le.s32.totalorder 1, %s44
      %p487 = scmp.lt.s32.totalorder %s44, 5
      %p488 = pnand %p486, %p487
      %p489 = pneg %p488
      // Predicated region
      $region9: #{tpu_custom_call.1} parent=5 // pred_check
        _
      $region10: #{tpu_custom_call.1} parent=5 // pred_check_branch
        %491 = sbr.rel (%p488) target = $region12
      $region11: #{tpu_custom_call.1} parent=5 // pred_region
        %s492 = ssub.s32 %s44, 1
        // Predicated region
        $region13: #{tpu_custom_call.1} parent=11 // pred_check
          %p493 = pneg %p77
        $region14: #{tpu_custom_call.1} parent=11 // pred_check_branch
          %495 = sbr.rel (%p493) target = $region16
        $region15: #{tpu_custom_call.1} parent=11 // pred_region
          %s497 = ssub.s32 128, 128
          %498 = vsyncadd [#allocation7], %s497
          %s500 = sshll.u32 [#allocation6], 4
          %s501 = int_to_ptr.vmem [resolvable:$true] %s500
          %503 = dma.hbm_to_vmem [thread:$0]  %s2, 128, %s501, [#allocation7]
        $region16: #{tpu_custom_call.1} parent=11 // pred_fallthru
          _
        // Predicated region
        $region17: #{tpu_custom_call.1} parent=11 // pred_check
          %p504 = pneg %p410
        $region18: #{tpu_custom_call.1} parent=11 // pred_check_branch
          %506 = sbr.rel (%p504) target = $region20
        $region19: #{tpu_custom_call.1} parent=11 // pred_region
          _
        $region20: #{tpu_custom_call.1} parent=11 // pred_fallthru
          _
        // Predicated region
        $region21: #{tpu_custom_call.1} parent=11 // pred_check
          %p507 = pneg %p431
        $region22: #{tpu_custom_call.1} parent=11 // pred_check_branch
          %509 = sbr.rel (%p507) target = $region24
        $region23: #{tpu_custom_call.1} parent=11 // pred_region
          _
        $region24: #{tpu_custom_call.1} parent=11 // pred_fallthru
          _
        // Predicated region
        $region25: #{tpu_custom_call.1} parent=11 // pred_check
          %p510 = pneg %p452
        $region26: #{tpu_custom_call.1} parent=11 // pred_check_branch
          %512 = sbr.rel (%p510) target = $region28
        $region27: #{tpu_custom_call.1} parent=11 // pred_region
          %s514 = ssub.s32 2048, 2048
          %515 = vsyncadd [#allocation19], %s514
          %s516 = sshll.u32 [#allocation20], 4
          %s517 = int_to_ptr.vmem [resolvable:$true] %s516
          %522 = dma.hbm_to_vmem [thread:$0]  %s17, 2048, %s517, [#allocation19], 128, 128, 8
        $region28: #{tpu_custom_call.1} parent=11 // pred_fallthru
          _
      $region12: #{tpu_custom_call.1} parent=5 // pred_fallthru
        _
      %p523 = scmp.lt.s32.totalorder %s44, 4
      // Predicated region
      $region29: #{tpu_custom_call.1} parent=5 // pred_check
        %p524 = pneg %p523
      $region30: #{tpu_custom_call.1} parent=5 // pred_check_branch
        %526 = sbr.rel (%p524) target = $region32
      $region31: #{tpu_custom_call.1} parent=5 // pred_region
        // Predicated region
        $region33: #{tpu_custom_call.1} parent=31 // pred_check
          %p527 = pneg %p97
        $region34: #{tpu_custom_call.1} parent=31 // pred_check_branch
          %529 = sbr.rel (%p527) target = $region36
        $region35: #{tpu_custom_call.1} parent=31 // pred_region
          %s530 = sand.u32 %s44, 1
          %s531 = scalar_lea.sflag [#allocation10], %s530
          %s532 = sand.u32 %s87, 1
          %s533 = smul.addr %s532, 192
          %s534 = scalar_lea.vmem [#allocation9], %s533
          %s536 = ssub.s32 3072, 3072
          %537 = vsyncadd %s531, %s536
          %s538 = smul.addr %s52, 48
          %s539 = smul.addr %s538, 64
          %s540 = scalar_lea.hbm %s3, %s539
          %s541 = sshll.u32 %s534, 4
          %s542 = int_to_ptr.vmem [resolvable:$true] %s541
          %547 = dma.hbm_to_vmem [thread:$0]  %s540, 3072, %s542, %s531, 192, 192, 12
        $region36: #{tpu_custom_call.1} parent=31 // pred_fallthru
          _
        // Predicated region
        $region37: #{tpu_custom_call.1} parent=31 // pred_check
          %p548 = pneg %p123
        $region38: #{tpu_custom_call.1} parent=31 // pred_check_branch
          %550 = sbr.rel (%p548) target = $region40
        $region39: #{tpu_custom_call.1} parent=31 // pred_region
          %p551 = scmp.lt.s32.totalorder %s52, 1
          %s552 = scalar_select %p551, %s52, 1
          %s553 = smul.addr %s552, 3
          %s554 = scalar_lea.vmem %s4, %s553
        $region40: #{tpu_custom_call.1} parent=31 // pred_fallthru
          _
        // Predicated region
        $region41: #{tpu_custom_call.1} parent=31 // pred_check
          %p555 = pneg %p149
        $region42: #{tpu_custom_call.1} parent=31 // pred_check_branch
          %557 = sbr.rel (%p555) target = $region44
        $region43: #{tpu_custom_call.1} parent=31 // pred_region
          %s558 = sand.u32 %s44, 1
          %s559 = scalar_lea.sflag [#allocation10], %s558
          %s560 = sand.u32 %s139, 1
          %s561 = smul.addr %s560, 64
          %s562 = scalar_lea.vmem [#allocation11], %s561
          %s564 = ssub.s32 1024, 1024
          %565 = vsyncadd %s559, %s564
          %s566 = smul.addr %s52, 16
          %s567 = smul.addr %s566, 64
          %s568 = scalar_lea.hbm %s5, %s567
          %s569 = sshll.u32 %s562, 4
          %s570 = int_to_ptr.vmem [resolvable:$true] %s569
          %575 = dma.hbm_to_vmem [thread:$0]  %s568, 1024, %s570, %s559, 64, 64, 4
        $region44: #{tpu_custom_call.1} parent=31 // pred_fallthru
          _
        // Predicated region
        $region45: #{tpu_custom_call.1} parent=31 // pred_check
          %p576 = pneg %p175
        $region46: #{tpu_custom_call.1} parent=31 // pred_check_branch
          %578 = sbr.rel (%p576) target = $region48
        $region47: #{tpu_custom_call.1} parent=31 // pred_region
          %p579 = scmp.lt.s32.totalorder %s52, 1
          %s580 = scalar_select %p579, %s52, 1
          %s581 = scalar_lea.vmem %s6, %s580
        $region48: #{tpu_custom_call.1} parent=31 // pred_fallthru
          _
        // Predicated region
        $region49: #{tpu_custom_call.1} parent=31 // pred_check
          %p582 = pneg %p201
        $region50: #{tpu_custom_call.1} parent=31 // pred_check_branch
          %584 = sbr.rel (%p582) target = $region52
        $region51: #{tpu_custom_call.1} parent=31 // pred_region
          %s585 = sand.u32 %s44, 1
          %s586 = scalar_lea.sflag [#allocation13], %s585
          %s587 = sand.u32 %s191, 1
          %s588 = scalar_lea.vmem [#allocation12], %s587
          %s590 = ssub.s32 16, 16
          %591 = vsyncadd %s586, %s590
          %s592 = smul.addr %s52, 16
          %s593 = scalar_lea.hbm %s7, %s592
          %s595 = sshll.u32 %s588, 4
          %s596 = int_to_ptr.vmem [resolvable:$true] %s595
          %598 = dma.hbm_to_vmem [thread:$0]  %s593, 16, %s596, %s586
        $region52: #{tpu_custom_call.1} parent=31 // pred_fallthru
          _
        // Predicated region
        $region53: #{tpu_custom_call.1} parent=31 // pred_check
          %p599 = pneg %p227
        $region54: #{tpu_custom_call.1} parent=31 // pred_check_branch
          %601 = sbr.rel (%p599) target = $region56
        $region55: #{tpu_custom_call.1} parent=31 // pred_region
          %s602 = sand.u32 %s44, 1
          %s603 = scalar_lea.sflag [#allocation13], %s602
          %s604 = sand.u32 %s217, 1
          %s605 = scalar_lea.vmem [#allocation14], %s604
          %s607 = ssub.s32 16, 16
          %608 = vsyncadd %s603, %s607
          %s609 = smul.addr %s52, 16
          %s610 = scalar_lea.hbm %s8, %s609
          %s612 = sshll.u32 %s605, 4
          %s613 = int_to_ptr.vmem [resolvable:$true] %s612
          %615 = dma.hbm_to_vmem [thread:$0]  %s610, 16, %s613, %s603
        $region56: #{tpu_custom_call.1} parent=31 // pred_fallthru
          _
        // Predicated region
        $region57: #{tpu_custom_call.1} parent=31 // pred_check
          %p616 = pneg %p253
        $region58: #{tpu_custom_call.1} parent=31 // pred_check_branch
          %618 = sbr.rel (%p616) target = $region60
        $region59: #{tpu_custom_call.1} parent=31 // pred_region
          %s619 = sand.u32 %s44, 1
          %s620 = scalar_lea.sflag [#allocation16], %s619
          %s621 = sand.u32 %s243, 1
          %s622 = scalar_lea.vmem [#allocation15], %s621
          %s624 = ssub.s32 16, 16
          %625 = vsyncadd %s620, %s624
          %s626 = smul.addr %s52, 16
          %s627 = scalar_lea.hbm %s9, %s626
          %s629 = sshll.u32 %s622, 4
          %s630 = int_to_ptr.vmem [resolvable:$true] %s629
          %632 = dma.hbm_to_vmem [thread:$0]  %s627, 16, %s630, %s620
        $region60: #{tpu_custom_call.1} parent=31 // pred_fallthru
          _
        // Predicated region
        $region61: #{tpu_custom_call.1} parent=31 // pred_check
          %p633 = pneg %p279
        $region62: #{tpu_custom_call.1} parent=31 // pred_check_branch
          %635 = sbr.rel (%p633) target = $region64
        $region63: #{tpu_custom_call.1} parent=31 // pred_region
          %p636 = scmp.lt.s32.totalorder %s52, 1
          %s637 = scalar_select %p636, %s52, 1
          %s638 = scalar_lea.vmem %s10, %s637
        $region64: #{tpu_custom_call.1} parent=31 // pred_fallthru
          _
        // Predicated region
        $region65: #{tpu_custom_call.1} parent=31 // pred_check
          %p639 = pneg %p305
        $region66: #{tpu_custom_call.1} parent=31 // pred_check_branch
          %641 = sbr.rel (%p639) target = $region68
        $region67: #{tpu_custom_call.1} parent=31 // pred_region
          %s642 = sand.u32 %s44, 1
          %s643 = scalar_lea.sflag [#allocation16], %s642
          %s644 = sand.u32 %s295, 1
          %s645 = smul.addr %s644, 256
          %s646 = scalar_lea.vmem [#allocation17], %s645
          %s648 = ssub.s32 4096, 4096
          %649 = vsyncadd %s643, %s648
          %s650 = smul.addr %s52, 64
          %s651 = smul.addr %s650, 64
          %s652 = scalar_lea.hbm %s11, %s651
          %s653 = sshll.u32 %s646, 4
          %s654 = int_to_ptr.vmem [resolvable:$true] %s653
          %659 = dma.hbm_to_vmem [thread:$0]  %s652, 4096, %s654, %s643, 256, 256, 16
        $region68: #{tpu_custom_call.1} parent=31 // pred_fallthru
          _
        // Predicated region
        $region69: #{tpu_custom_call.1} parent=31 // pred_check
          %p660 = pneg %p331
        $region70: #{tpu_custom_call.1} parent=31 // pred_check_branch
          %662 = sbr.rel (%p660) target = $region72
        $region71: #{tpu_custom_call.1} parent=31 // pred_region
          %p663 = scmp.lt.s32.totalorder %s52, 1
          %s664 = scalar_select %p663, %s52, 1
          %s665 = smul.addr %s664, 4
          %s666 = scalar_lea.vmem %s12, %s665
        $region72: #{tpu_custom_call.1} parent=31 // pred_fallthru
          _
        // Predicated region
        $region73: #{tpu_custom_call.1} parent=31 // pred_check
          %p667 = pneg %p357
        $region74: #{tpu_custom_call.1} parent=31 // pred_check_branch
          %669 = sbr.rel (%p667) target = $region76
        $region75: #{tpu_custom_call.1} parent=31 // pred_region
          %s670 = sand.u32 %s44, 1
          %s671 = scalar_lea.sflag [#allocation19], %s670
          %s672 = sand.u32 %s347, 1
          %s673 = smul.addr %s672, 256
          %s674 = scalar_lea.vmem [#allocation18], %s673
          %s676 = ssub.s32 4096, 4096
          %677 = vsyncadd %s671, %s676
          %s678 = smul.addr %s52, 64
          %s679 = smul.addr %s678, 64
          %s680 = scalar_lea.hbm %s13, %s679
          %s681 = sshll.u32 %s674, 4
          %s682 = int_to_ptr.vmem [resolvable:$true] %s681
          %687 = dma.hbm_to_vmem [thread:$0]  %s680, 4096, %s682, %s671, 64, 64, 4
        $region76: #{tpu_custom_call.1} parent=31 // pred_fallthru
          _
        // Predicated region
        $region77: #{tpu_custom_call.1} parent=31 // pred_check
          %p688 = pneg %p383
        $region78: #{tpu_custom_call.1} parent=31 // pred_check_branch
          %690 = sbr.rel (%p688) target = $region80
        $region79: #{tpu_custom_call.1} parent=31 // pred_region
          %p691 = scmp.lt.s32.totalorder %s52, 1
          %s692 = scalar_select %p691, %s52, 1
          %s693 = scalar_lea.vmem %s14, %s692
        $region80: #{tpu_custom_call.1} parent=31 // pred_fallthru
          _
      $region32: #{tpu_custom_call.1} parent=5 // pred_fallthru
        _
      %p694 = scmp.le.s32.totalorder 1, %s44
      %p695 = scmp.lt.s32.totalorder %s44, 5
      %p696 = pnand %p694, %p695
      %p697 = pneg %p696
      // Predicated region
      $region81: #{tpu_custom_call.1} parent=5 // pred_check
        _
      $region82: #{tpu_custom_call.1} parent=5 // pred_check_branch
        %699 = sbr.rel (%p696) target = $region84
      $region83: #{tpu_custom_call.1} parent=5 // pred_region
        %s700 = ssub.s32 %s44, 1
        // Predicated region
        $region85: #{tpu_custom_call.1} parent=83 // pred_check
          %p701 = pneg %p77
        $region86: #{tpu_custom_call.1} parent=83 // pred_check_branch
          %703 = sbr.rel (%p701) target = $region88
        $region87: #{tpu_custom_call.1} parent=83 // pred_region
          %704 = dma.done [#allocation7], 128
        $region88: #{tpu_custom_call.1} parent=83 // pred_fallthru
          _
        %s705 = sand.u32 %s49, 1
        %s706 = scalar_lea.sflag [#allocation10], %s705
        %s707 = sand.u32 %s90, 1
        %s708 = smul.addr %s707, 192
        %s709 = scalar_lea.vmem [#allocation9], %s708
        // Predicated region
        $region89: #{tpu_custom_call.1} parent=83 // pred_check
          %p710 = pneg %p103
        $region90: #{tpu_custom_call.1} parent=83 // pred_check_branch
          %712 = sbr.rel (%p710) target = $region92
        $region91: #{tpu_custom_call.1} parent=83 // pred_region
          %713 = dma.done %s706, 3072
        $region92: #{tpu_custom_call.1} parent=83 // pred_fallthru
          _
        %s714 = sand.u32 %s49, 1
        %s715 = scalar_lea.sflag [#allocation10], %s714
        %s716 = sand.u32 %s142, 1
        %s717 = smul.addr %s716, 64
        %s718 = scalar_lea.vmem [#allocation11], %s717
        // Predicated region
        $region93: #{tpu_custom_call.1} parent=83 // pred_check
          %p719 = pneg %p155
        $region94: #{tpu_custom_call.1} parent=83 // pred_check_branch
          %721 = sbr.rel (%p719) target = $region96
        $region95: #{tpu_custom_call.1} parent=83 // pred_region
          %722 = dma.done %s715, 1024
        $region96: #{tpu_custom_call.1} parent=83 // pred_fallthru
          _
        %s723 = sand.u32 %s49, 1
        %s724 = scalar_lea.sflag [#allocation13], %s723
        %s725 = sand.u32 %s194, 1
        %s726 = scalar_lea.vmem [#allocation12], %s725
        // Predicated region
        $region97: #{tpu_custom_call.1} parent=83 // pred_check
          %p727 = pneg %p207
        $region98: #{tpu_custom_call.1} parent=83 // pred_check_branch
          %729 = sbr.rel (%p727) target = $region100
        $region99: #{tpu_custom_call.1} parent=83 // pred_region
          %730 = dma.done %s724, 16
        $region100: #{tpu_custom_call.1} parent=83 // pred_fallthru
          _
        %s731 = sand.u32 %s49, 1
        %s732 = scalar_lea.sflag [#allocation13], %s731
        %s733 = sand.u32 %s220, 1
        %s734 = scalar_lea.vmem [#allocation14], %s733
        // Predicated region
        $region101: #{tpu_custom_call.1} parent=83 // pred_check
          %p735 = pneg %p233
        $region102: #{tpu_custom_call.1} parent=83 // pred_check_branch
          %737 = sbr.rel (%p735) target = $region104
        $region103: #{tpu_custom_call.1} parent=83 // pred_region
          %738 = dma.done %s732, 16
        $region104: #{tpu_custom_call.1} parent=83 // pred_fallthru
          _
        %s739 = sand.u32 %s49, 1
        %s740 = scalar_lea.sflag [#allocation16], %s739
        %s741 = sand.u32 %s246, 1
        %s742 = scalar_lea.vmem [#allocation15], %s741
        // Predicated region
        $region105: #{tpu_custom_call.1} parent=83 // pred_check
          %p743 = pneg %p259
        $region106: #{tpu_custom_call.1} parent=83 // pred_check_branch
          %745 = sbr.rel (%p743) target = $region108
        $region107: #{tpu_custom_call.1} parent=83 // pred_region
          %746 = dma.done %s740, 16
        $region108: #{tpu_custom_call.1} parent=83 // pred_fallthru
          _
        %s747 = sand.u32 %s49, 1
        %s748 = scalar_lea.sflag [#allocation16], %s747
        %s749 = sand.u32 %s298, 1
        %s750 = smul.addr %s749, 256
        %s751 = scalar_lea.vmem [#allocation17], %s750
        // Predicated region
        $region109: #{tpu_custom_call.1} parent=83 // pred_check
          %p752 = pneg %p311
        $region110: #{tpu_custom_call.1} parent=83 // pred_check_branch
          %754 = sbr.rel (%p752) target = $region112
        $region111: #{tpu_custom_call.1} parent=83 // pred_region
          %755 = dma.done %s748, 4096
        $region112: #{tpu_custom_call.1} parent=83 // pred_fallthru
          _
        %s756 = sand.u32 %s49, 1
        %s757 = scalar_lea.sflag [#allocation19], %s756
        %s758 = sand.u32 %s350, 1
        %s759 = smul.addr %s758, 256
        %s760 = scalar_lea.vmem [#allocation18], %s759
        // Predicated region
        $region113: #{tpu_custom_call.1} parent=83 // pred_check
          %p761 = pneg %p363
        $region114: #{tpu_custom_call.1} parent=83 // pred_check_branch
          %763 = sbr.rel (%p761) target = $region116
        $region115: #{tpu_custom_call.1} parent=83 // pred_region
          %764 = dma.done %s757, 4096
        $region116: #{tpu_custom_call.1} parent=83 // pred_fallthru
          _
        // Predicated region
        $region117: #{tpu_custom_call.1} parent=83 // pred_check
          %p765 = pneg %p452
        $region118: #{tpu_custom_call.1} parent=83 // pred_check_branch
          %767 = sbr.rel (%p765) target = $region120
        $region119: #{tpu_custom_call.1} parent=83 // pred_region
          %768 = dma.done [#allocation19], 2048
        $region120: #{tpu_custom_call.1} parent=83 // pred_fallthru
          _
        %p769 = pneg %p77
        %p770 = pneg %p74
        %s771 = sand.u32 %s49, 1
        %s772 = scalar_lea.sflag [#allocation10], %s771
        %s773 = sand.u32 %s90, 1
        %s774 = smul.addr %s773, 192
        %s775 = scalar_lea.vmem [#allocation9], %s774
        %p776 = pneg %p103
        %p777 = pneg %p100
        %p778 = scmp.lt.s32.totalorder %s54, 1
        %s779 = scalar_select %p778, %s54, 1
        %s780 = smul.addr %s779, 3
        %s781 = scalar_lea.vmem %s4, %s780
        %p782 = pneg %p129
        %p783 = pneg %p126
        %s784 = sand.u32 %s49, 1
        %s785 = scalar_lea.sflag [#allocation10], %s784
        %s786 = sand.u32 %s142, 1
        %s787 = smul.addr %s786, 64
        %s788 = scalar_lea.vmem [#allocation11], %s787
        %p789 = pneg %p155
        %p790 = pneg %p152
        %p791 = scmp.lt.s32.totalorder %s54, 1
        %s792 = scalar_select %p791, %s54, 1
        %s793 = scalar_lea.vmem %s6, %s792
        %p794 = pneg %p181
        %p795 = pneg %p178
        %s796 = sand.u32 %s49, 1
        %s797 = scalar_lea.sflag [#allocation13], %s796
        %s798 = sand.u32 %s194, 1
        %s799 = scalar_lea.vmem [#allocation12], %s798
        %p800 = pneg %p207
        %p801 = pneg %p204
        %s802 = sand.u32 %s49, 1
        %s803 = scalar_lea.sflag [#allocation13], %s802
        %s804 = sand.u32 %s220, 1
        %s805 = scalar_lea.vmem [#allocation14], %s804
        %p806 = pneg %p233
        %p807 = pneg %p230
        %s808 = sand.u32 %s49, 1
        %s809 = scalar_lea.sflag [#allocation16], %s808
        %s810 = sand.u32 %s246, 1
        %s811 = scalar_lea.vmem [#allocation15], %s810
        %p812 = pneg %p259
        %p813 = pneg %p256
        %p814 = scmp.lt.s32.totalorder %s54, 1
        %s815 = scalar_select %p814, %s54, 1
        %s816 = scalar_lea.vmem %s10, %s815
        %p817 = pneg %p285
        %p818 = pneg %p282
        %s819 = sand.u32 %s49, 1
        %s820 = scalar_lea.sflag [#allocation16], %s819
        %s821 = sand.u32 %s298, 1
        %s822 = smul.addr %s821, 256
        %s823 = scalar_lea.vmem [#allocation17], %s822
        %p824 = pneg %p311
        %p825 = pneg %p308
        %p826 = scmp.lt.s32.totalorder %s54, 1
        %s827 = scalar_select %p826, %s54, 1
        %s828 = smul.addr %s827, 4
        %s829 = scalar_lea.vmem %s12, %s828
        %p830 = pneg %p337
        %p831 = pneg %p334
        %s832 = sand.u32 %s49, 1
        %s833 = scalar_lea.sflag [#allocation19], %s832
        %s834 = sand.u32 %s350, 1
        %s835 = smul.addr %s834, 256
        %s836 = scalar_lea.vmem [#allocation18], %s835
        %p837 = pneg %p363
        %p838 = pneg %p360
        %p839 = scmp.lt.s32.totalorder %s54, 1
        %s840 = scalar_select %p839, %s54, 1
        %s841 = scalar_lea.vmem %s14, %s840
        %p842 = pneg %p389
        %p843 = pneg %p386
        %p844 = pneg %p410
        %p845 = pneg %p407
        %p846 = pneg %p431
        %p847 = pneg %p428
        %p848 = pneg %p452
        %p849 = pneg %p449
        %p850 = pneg %p478
        %p851 = pneg %p475
        %s852 = sand.u32 %s465, 1
        %s853 = scalar_lea.sflag [#allocation8], %s852
        %s854 = sand.u32 %s465, 1
        %s855 = smul.addr %s854, 16
        %s856 = scalar_lea.vmem [#allocation21], %s855
        %p857 = scmp.lt.s32.totalorder %s54, 1
        %s858 = scalar_select %p857, %s54, 1
        %s859 = smul.addr %s858, 3
        %s860 = scalar_lea.vmem %s4, %s859
        %p861 = scmp.lt.s32.totalorder %s54, 1
        %s862 = scalar_select %p861, %s54, 1
        %s863 = scalar_lea.vmem %s6, %s862
        %p864 = scmp.lt.s32.totalorder %s54, 1
        %s865 = scalar_select %p864, %s54, 1
        %s866 = scalar_lea.vmem %s10, %s865
        %p867 = scmp.lt.s32.totalorder %s54, 1
        %s868 = scalar_select %p867, %s54, 1
        %s869 = smul.addr %s868, 4
        %s870 = scalar_lea.vmem %s12, %s869
        %p871 = scmp.lt.s32.totalorder %s54, 1
        %s872 = scalar_select %p871, %s54, 1
        %s873 = scalar_lea.vmem %s14, %s872
        %p875 = scmp.eq.s32.totalorder %s54, 0
        // Predicated region
        $region121: #{tpu_custom_call.1} parent=83 // pred_check
          %p876 = pneg %p875
        $region122: #{tpu_custom_call.1} parent=83 // pred_check_branch
          %878 = sbr.rel (%p876) target = $region124
        $region123: #{tpu_custom_call.1} parent=83 // pred_region
          %s879 = smul.u32 %s53, 128
          %s880 = sld [smem:[#allocation5 + %s879]]
          %s881 = smul.addr %s880, 16
          %s882 = scalar_lea.hbm %s1, %s881
          // Predicated region
          $region125: #{tpu_custom_call.1} parent=123 // pred_check
            _
          $region126: #{tpu_custom_call.1} parent=123 // pred_check_branch
            %884 = sbr.rel target = $region128
          $region127: #{tpu_custom_call.1} parent=123 // pred_region
            %885 = sst [smem:[#allocation24]] [#allocation23]
            %886 = sst [smem:[#allocation25]] [#allocation22]
          $region128: #{tpu_custom_call.1} parent=123 // pred_fallthru
            _
          %888 = shalt.err (0)
          %s890 = sshll.u32 [#allocation2], 4
          %s891 = int_to_ptr.vmem [resolvable:$true] %s890
          %893 = dma.hbm_to_vmem [thread:$0]  %s882, 16, %s891, [#allocation3]
          %s894 = sadd.s32 %s879, 1
          %s895 = sld [smem:[#allocation5 + %s894]]
          %s896 = smul.addr %s895, 16
          %s897 = scalar_lea.hbm %s1, %s896
          %s898 = scalar_lea.vmem [#allocation2], 1
          %s899 = scalar_lea.sflag [#allocation3], 1
          // Predicated region
          $region129: #{tpu_custom_call.1} parent=123 // pred_check
            _
          $region130: #{tpu_custom_call.1} parent=123 // pred_check_branch
            %901 = sbr.rel target = $region132
          $region131: #{tpu_custom_call.1} parent=123 // pred_region
            %902 = sst [smem:[#allocation24]] [#allocation27]
            %903 = sst [smem:[#allocation25]] [#allocation26]
          $region132: #{tpu_custom_call.1} parent=123 // pred_fallthru
            _
          %905 = shalt.err (0)
          %s907 = sshll.u32 %s898, 4
          %s908 = int_to_ptr.vmem [resolvable:$true] %s907
          %910 = dma.hbm_to_vmem [thread:$0]  %s897, 16, %s908, %s899
          %s911 = sadd.s32 %s879, 2
          %s912 = sld [smem:[#allocation5 + %s911]]
          %s913 = smul.addr %s912, 16
          %s914 = scalar_lea.hbm %s1, %s913
          %s915 = scalar_lea.vmem [#allocation2], 2
          %s916 = scalar_lea.sflag [#allocation3], 2
          // Predicated region
          $region133: #{tpu_custom_call.1} parent=123 // pred_check
            _
          $region134: #{tpu_custom_call.1} parent=123 // pred_check_branch
            %918 = sbr.rel target = $region136
          $region135: #{tpu_custom_call.1} parent=123 // pred_region
            %919 = sst [smem:[#allocation24]] [#allocation29]
            %920 = sst [smem:[#allocation25]] [#allocation28]
          $region136: #{tpu_custom_call.1} parent=123 // pred_fallthru
            _
          %922 = shalt.err (0)
          %s924 = sshll.u32 %s915, 4
          %s925 = int_to_ptr.vmem [resolvable:$true] %s924
          %927 = dma.hbm_to_vmem [thread:$0]  %s914, 16, %s925, %s916
          %s928 = sadd.s32 %s879, 3
          %s929 = sld [smem:[#allocation5 + %s928]]
          %s930 = smul.addr %s929, 16
          %s931 = scalar_lea.hbm %s1, %s930
          %s932 = scalar_lea.vmem [#allocation2], 3
          %s933 = scalar_lea.sflag [#allocation3], 3
          // Predicated region
          $region137: #{tpu_custom_call.1} parent=123 // pred_check
            _
          $region138: #{tpu_custom_call.1} parent=123 // pred_check_branch
            %935 = sbr.rel target = $region140
          $region139: #{tpu_custom_call.1} parent=123 // pred_region
            %936 = sst [smem:[#allocation24]] [#allocation31]
            %937 = sst [smem:[#allocation25]] [#allocation30]
          $region140: #{tpu_custom_call.1} parent=123 // pred_fallthru
            _
          %939 = shalt.err (0)
          %s941 = sshll.u32 %s932, 4
          %s942 = int_to_ptr.vmem [resolvable:$true] %s941
          %944 = dma.hbm_to_vmem [thread:$0]  %s931, 16, %s942, %s933
          %s945 = sadd.s32 %s879, 4
          %s946 = sld [smem:[#allocation5 + %s945]]
          %s947 = smul.addr %s946, 16
          %s948 = scalar_lea.hbm %s1, %s947
          %s949 = scalar_lea.vmem [#allocation2], 4
          %s950 = scalar_lea.sflag [#allocation3], 4
          // Predicated region
          $region141: #{tpu_custom_call.1} parent=123 // pred_check
            _
          $region142: #{tpu_custom_call.1} parent=123 // pred_check_branch
            %952 = sbr.rel target = $region144
          $region143: #{tpu_custom_call.1} parent=123 // pred_region
            %953 = sst [smem:[#allocation24]] [#allocation33]
            %954 = sst [smem:[#allocation25]] [#allocation32]
          $region144: #{tpu_custom_call.1} parent=123 // pred_fallthru
            _
          %956 = shalt.err (0)
          %s958 = sshll.u32 %s949, 4
          %s959 = int_to_ptr.vmem [resolvable:$true] %s958
          %961 = dma.hbm_to_vmem [thread:$0]  %s948, 16, %s959, %s950
          %s962 = sadd.s32 %s879, 5
          %s963 = sld [smem:[#allocation5 + %s962]]
          %s964 = smul.addr %s963, 16
          %s965 = scalar_lea.hbm %s1, %s964
          %s966 = scalar_lea.vmem [#allocation2], 5
          %s967 = scalar_lea.sflag [#allocation3], 5
          // Predicated region
          $region145: #{tpu_custom_call.1} parent=123 // pred_check
            _
          $region146: #{tpu_custom_call.1} parent=123 // pred_check_branch
            %969 = sbr.rel target = $region148
          $region147: #{tpu_custom_call.1} parent=123 // pred_region
            %970 = sst [smem:[#allocation24]] [#allocation35]
            %971 = sst [smem:[#allocation25]] [#allocation34]
          $region148: #{tpu_custom_call.1} parent=123 // pred_fallthru
            _
          %973 = shalt.err (0)
          %s975 = sshll.u32 %s966, 4
          %s976 = int_to_ptr.vmem [resolvable:$true] %s975
          %978 = dma.hbm_to_vmem [thread:$0]  %s965, 16, %s976, %s967
          %s979 = sadd.s32 %s879, 6
          %s980 = sld [smem:[#allocation5 + %s979]]
          %s981 = smul.addr %s980, 16
          %s982 = scalar_lea.hbm %s1, %s981
          %s983 = scalar_lea.vmem [#allocation2], 6
          %s984 = scalar_lea.sflag [#allocation3], 6
          // Predicated region
          $region149: #{tpu_custom_call.1} parent=123 // pred_check
            _
          $region150: #{tpu_custom_call.1} parent=123 // pred_check_branch
            %986 = sbr.rel target = $region152
          $region151: #{tpu_custom_call.1} parent=123 // pred_region
            %987 = sst [smem:[#allocation24]] [#allocation37]
            %988 = sst [smem:[#allocation25]] [#allocation36]
          $region152: #{tpu_custom_call.1} parent=123 // pred_fallthru
            _
          %990 = shalt.err (0)
          %s992 = sshll.u32 %s983, 4
          %s993 = int_to_ptr.vmem [resolvable:$true] %s992
          %995 = dma.hbm_to_vmem [thread:$0]  %s982, 16, %s993, %s984
          %s996 = sadd.s32 %s879, 7
          %s997 = sld [smem:[#allocation5 + %s996]]
          %s998 = smul.addr %s997, 16
          %s999 = scalar_lea.hbm %s1, %s998
          %s1000 = scalar_lea.vmem [#allocation2], 7
          %s1001 = scalar_lea.sflag [#allocation3], 7
          // Predicated region
          $region153: #{tpu_custom_call.1} parent=123 // pred_check
            _
          $region154: #{tpu_custom_call.1} parent=123 // pred_check_branch
            %1003 = sbr.rel target = $region156
          $region155: #{tpu_custom_call.1} parent=123 // pred_region
            %1004 = sst [smem:[#allocation24]] [#allocation39]
            %1005 = sst [smem:[#allocation25]] [#allocation38]
          $region156: #{tpu_custom_call.1} parent=123 // pred_fallthru
            _
          %1007 = shalt.err (0)
          %s1009 = sshll.u32 %s1000, 4
          %s1010 = int_to_ptr.vmem [resolvable:$true] %s1009
          %1012 = dma.hbm_to_vmem [thread:$0]  %s999, 16, %s1010, %s1001
          %s1013 = smul.u32 1, 1
          %s1014 = sshll.u32 %s1013, 4
          %1015 = dma.done [#allocation3], %s1014
          %s1016 = sshll.u32 %s1013, 4
          %1017 = dma.done %s899, %s1016
          %s1018 = sshll.u32 %s1013, 4
          %1019 = dma.done %s916, %s1018
          %s1020 = sshll.u32 %s1013, 4
          %1021 = dma.done %s933, %s1020
          %s1022 = sshll.u32 %s1013, 4
          %1023 = dma.done %s950, %s1022
          %s1024 = sshll.u32 %s1013, 4
          %1025 = dma.done %s967, %s1024
          %s1026 = sshll.u32 %s1013, 4
          %1027 = dma.done %s984, %s1026
          %s1028 = sshll.u32 %s1013, 4
          %1029 = dma.done %s1001, %s1028
          %v1030 = vld [vmem:[#allocation2] sm:$0xff]
          %v1031 = vld [vmem:[#allocation6] sm:$0xff]
          %v1032 = vadd.f32 %v1030, %v1031
          %1033 = vst [vmem:[#allocation2] sm:$0xff] %v1032
        $region124: #{tpu_custom_call.1} parent=83 // pred_fallthru
          _
        %v1034 = vld [vmem:[#allocation2] sm:$0xff]
        %v1035 = vlaneseq
        %v1036 = vshrl.u32 %v1035, 7
        %v1037 = vlaneseq
        %v1038 = vand.u32 %v1037, 127
        %vm1039 = vcmp.le.s32.totalorder %v1038, %v1036
        %v1040 = vsel %vm1039, 0.0, -1e+30
        %v1041 = vld [vmem:[%s726] sm:$0x1]
        %v1042 = vld [vmem:[%s734] sm:$0x1]
        %1043 = vadd.xlane.f32.xlu0 %v1034
        %v1044 = vpop.xlane.xlu0 %1043
        %v1045 = vrcp.pop 128.0
        %v1046 = vmul.f32 %v1044, %v1045
        %v1047 = vsub.f32 %v1034, %v1046
        %v1048 = vmul.f32 %v1047, %v1047
        %1049 = vadd.xlane.f32.xlu0 %v1048
        %v1050 = vpop.xlane.xlu0 %1049
        %v1051 = vmul.f32 %v1050, %v1045
        %v1052 = vadd.f32 %v1051, 1e-05
        %v1053 = vrsqrt.pop %v1052
        %v1054 = vmul.f32 %v1047, %v1053
        %v1056 = vlaneseq
        %v1057 = vshrl.u32 %v1056, 7
        %v1058 = vsub.s32 0, %v1057
        %v1059 = vrot.slane %v1041, %v1058
        %v1061 = vmul.f32 %v1054, %v1059
        %v1063 = vlaneseq
        %v1064 = vshrl.u32 %v1063, 7
        %v1065 = vsub.s32 0, %v1064
        %v1066 = vrot.slane %v1042, %v1065
        %v1068 = vadd.f32 %v1061, %v1066
        %v1069 = vpack.c.bf16 %v1068, %v1068
        %v1070 = vld [vmem:[%s709] sm:$0xff]
        %v1071 = vld [vmem:[%s709 + $0x8] sm:$0xf]
        %v1072 = vld [vmem:[%s709 + $0xc] sm:$0xff]
        %v1073 = vld [vmem:[%s709 + $0x14] sm:$0xf]
        %v1074 = vld [vmem:[%s709 + $0x18] sm:$0xff]
        %v1075 = vld [vmem:[%s709 + $0x20] sm:$0xf]
        %v1076 = vld [vmem:[%s709 + $0x24] sm:$0xff]
        %v1077 = vld [vmem:[%s709 + $0x2c] sm:$0xf]
        %v1078 = vld [vmem:[%s709 + $0x30] sm:$0xff]
        %v1079 = vld [vmem:[%s709 + $0x38] sm:$0xf]
        %v1080 = vld [vmem:[%s709 + $0x3c] sm:$0xff]
        %v1081 = vld [vmem:[%s709 + $0x44] sm:$0xf]
        %v1082 = vld [vmem:[%s709 + $0x48] sm:$0xff]
        %v1083 = vld [vmem:[%s709 + $0x50] sm:$0xf]
        %v1084 = vld [vmem:[%s709 + $0x54] sm:$0xff]
        %v1085 = vld [vmem:[%s709 + $0x5c] sm:$0xf]
        %v1086 = vld [vmem:[%s709 + $0x60] sm:$0xff]
        %v1087 = vld [vmem:[%s709 + $0x68] sm:$0xf]
        %v1088 = vld [vmem:[%s709 + $0x6c] sm:$0xff]
        %v1089 = vld [vmem:[%s709 + $0x74] sm:$0xf]
        %v1090 = vld [vmem:[%s709 + $0x78] sm:$0xff]
        %v1091 = vld [vmem:[%s709 + $0x80] sm:$0xf]
        %v1092 = vld [vmem:[%s709 + $0x84] sm:$0xff]
        %v1093 = vld [vmem:[%s709 + $0x8c] sm:$0xf]
        %v1094 = vld [vmem:[%s709 + $0x90] sm:$0xff]
        %v1095 = vld [vmem:[%s709 + $0x98] sm:$0xf]
        %v1096 = vld [vmem:[%s709 + $0x9c] sm:$0xff]
        %v1097 = vld [vmem:[%s709 + $0xa4] sm:$0xf]
        %v1098 = vld [vmem:[%s709 + $0xa8] sm:$0xff]
        %v1099 = vld [vmem:[%s709 + $0xb0] sm:$0xf]
        %v1100 = vld [vmem:[%s709 + $0xb4] sm:$0xff]
        %v1101 = vld [vmem:[%s709 + $0xbc] sm:$0xf]
        %v1102 = vld [vmem:[%s860] sm:$0x7]
        %v1104 = vlaneseq
        %v1105 = vshrl.u32 %v1104, 7
        %v1106 = vsub.s32 0, %v1105
        %v1107 = vrot.slane %v1102, %v1106
        %v1108 = vlaneseq
        %v1109 = vshrl.u32 %v1108, 7
        %v1110 = vsub.s32 1, %v1109
        %v1111 = vrot.slane %v1102, %v1110
        %v1112 = vlaneseq
        %v1113 = vshrl.u32 %v1112, 7
        %v1114 = vsub.s32 2, %v1113
        %v1115 = vrot.slane %v1102, %v1114
        %v1151 = vunpack.c.l.b16 %v1070
        %v1152 = vunpack.c.h.b16 %v1070
        %v1153 = vunpack.c.l.b16 %v1071
        %v1154 = vunpack.c.l.b16 %v1072
        %v1155 = vunpack.c.h.b16 %v1072
        %v1156 = vunpack.c.l.b16 %v1073
        %v1157 = vunpack.c.l.b16 %v1074
        %v1158 = vunpack.c.h.b16 %v1074
        %v1159 = vunpack.c.l.b16 %v1075
        %v1160 = vunpack.c.l.b16 %v1076
        %v1161 = vunpack.c.h.b16 %v1076
        %v1162 = vunpack.c.l.b16 %v1077
        %v1163 = vunpack.c.l.b16 %v1078
        %v1164 = vunpack.c.h.b16 %v1078
        %v1165 = vunpack.c.l.b16 %v1079
        %v1166 = vunpack.c.l.b16 %v1080
        %v1167 = vunpack.c.h.b16 %v1080
        %v1168 = vunpack.c.l.b16 %v1081
        %v1169 = vunpack.c.l.b16 %v1082
        %v1170 = vunpack.c.h.b16 %v1082
        %v1171 = vunpack.c.l.b16 %v1083
        %v1172 = vunpack.c.l.b16 %v1084
        %v1173 = vunpack.c.h.b16 %v1084
        %v1174 = vunpack.c.l.b16 %v1085
        %v1175 = vunpack.c.l.b16 %v1086
        %v1176 = vunpack.c.h.b16 %v1086
        %v1177 = vunpack.c.l.b16 %v1087
        %v1178 = vunpack.c.l.b16 %v1088
        %v1179 = vunpack.c.h.b16 %v1088
        %v1180 = vunpack.c.l.b16 %v1089
        %v1181 = vunpack.c.l.b16 %v1090
        %v1182 = vunpack.c.h.b16 %v1090
        %v1183 = vunpack.c.l.b16 %v1091
        %v1184 = vunpack.c.l.b16 %v1092
        %v1185 = vunpack.c.h.b16 %v1092
        %v1186 = vunpack.c.l.b16 %v1093
        %v1187 = vunpack.c.l.b16 %v1094
        %v1188 = vunpack.c.h.b16 %v1094
        %v1189 = vunpack.c.l.b16 %v1095
        %v1190 = vunpack.c.l.b16 %v1096
        %v1191 = vunpack.c.h.b16 %v1096
        %v1192 = vunpack.c.l.b16 %v1097
        %v1193 = vunpack.c.l.b16 %v1098
        %v1194 = vunpack.c.h.b16 %v1098
        %v1195 = vunpack.c.l.b16 %v1099
        %v1196 = vunpack.c.l.b16 %v1100
        %v1197 = vunpack.c.h.b16 %v1100
        %v1198 = vunpack.c.l.b16 %v1101
        %v1199 = vpack.c.b16 %v1154, %v1151
        %v1200 = vpack.c.b16 %v1155, %v1152
        %v1201 = vpack.c.b16 %v1156, %v1153
        %v1202 = vpack.c.b16 %v1160, %v1157
        %v1203 = vpack.c.b16 %v1161, %v1158
        %v1204 = vpack.c.b16 %v1162, %v1159
        %v1205 = vpack.c.b16 %v1166, %v1163
        %v1206 = vpack.c.b16 %v1167, %v1164
        %v1207 = vpack.c.b16 %v1168, %v1165
        %v1208 = vpack.c.b16 %v1172, %v1169
        %v1209 = vpack.c.b16 %v1173, %v1170
        %v1210 = vpack.c.b16 %v1174, %v1171
        %v1211 = vpack.c.b16 %v1178, %v1175
        %v1212 = vpack.c.b16 %v1179, %v1176
        %v1213 = vpack.c.b16 %v1180, %v1177
        %v1214 = vpack.c.b16 %v1184, %v1181
        %v1215 = vpack.c.b16 %v1185, %v1182
        %v1216 = vpack.c.b16 %v1186, %v1183
        %v1217 = vpack.c.b16 %v1190, %v1187
        %v1218 = vpack.c.b16 %v1191, %v1188
        %v1219 = vpack.c.b16 %v1192, %v1189
        %v1220 = vpack.c.b16 %v1196, %v1193
        %v1221 = vpack.c.b16 %v1197, %v1194
        %v1222 = vpack.c.b16 %v1198, %v1195
        %1247 = vmatprep.subr.bf16.mxu0 %v1221
        %1248 = vmatpush1.bf16.msra.mxu0 %v1220
        %1249 = vmatprep.subr.bf16.mxu0 %v1218
        %1250 = vmatpush1.bf16.msra.mxu0 %v1217
        %1251 = vmatprep.subr.bf16.mxu0 %v1215
        %1252 = vmatpush1.bf16.msra.mxu0 %v1214
        %1253 = vmatprep.subr.bf16.mxu0 %v1212
        %1254 = vmatpush1.bf16.msra.mxu0 %v1211
        %1255 = vmatprep.subr.bf16.mxu0 %v1209
        %1256 = vmatpush1.bf16.msra.mxu0 %v1208
        %1257 = vmatprep.subr.bf16.mxu0 %v1206
        %1258 = vmatpush1.bf16.msra.mxu0 %v1205
        %1259 = vmatprep.subr.bf16.mxu0 %v1203
        %1260 = vmatpush1.bf16.msra.mxu0 %v1202
        %1261 = vmatprep.subr.bf16.mxu0 %v1200
        %1262 = vmatpush1.bf16.msra.mxu0 %v1199
        %1263 = vmatprep.subr.bf16.mxu0 0
        %1264 = vmatpush2.bf16.msra.mxu0 0
        %1265 = vmatprep.subr.bf16.mxu0 0
        %1266 = vmatpush2.bf16.msra.mxu0 0
        %1267 = vmatprep.subr.bf16.mxu0 0
        %1268 = vmatpush2.bf16.msra.mxu0 0
        %1269 = vmatprep.subr.bf16.mxu0 0
        %1270 = vmatpush2.bf16.msra.mxu0 0
        %1271 = vmatprep.subr.bf16.mxu0 0
        %1272 = vmatpush2.bf16.msra.mxu0 0
        %1273 = vmatprep.subr.bf16.mxu0 0
        %1274 = vmatpush2.bf16.msra.mxu0 0
        %1275 = vmatprep.subr.bf16.mxu0 0
        %1276 = vmatpush2.bf16.msra.mxu0 0
        %1277 = vmatprep.subr.bf16.mxu0 0
        %1278 = vmatpush2.bf16.msra.mxu0 0
        %1279 = vmatprep.mubr.bf16.mxu0 0
        %1280 = vmatmul.mubr.bf16.gmra.mxu0 %v1069
        %v1281 = vpop.f32.mrf.mxu0
        %v1282 = vadd.f32 %v1107, %v1281
        %v1283 = vpop.f32.mrf.mxu0
        %v1284 = vadd.f32 %v1111, %v1283
        %v1285 = vpop.f32.mrf.mxu0
        %v1286 = vpop.f32.mrf.mxu0
        %1287 = vdwg.mxu0
        %1288 = vmatprep.subr.bf16.mxu0 0
        %1289 = vmatpush1.bf16.msra.mxu0 %v1222
        %1290 = vmatprep.subr.bf16.mxu0 0
        %1291 = vmatpush1.bf16.msra.mxu0 %v1219
        %1292 = vmatprep.subr.bf16.mxu0 0
        %1293 = vmatpush1.bf16.msra.mxu0 %v1216
        %1294 = vmatprep.subr.bf16.mxu0 0
        %1295 = vmatpush1.bf16.msra.mxu0 %v1213
        %1296 = vmatprep.subr.bf16.mxu0 0
        %1297 = vmatpush1.bf16.msra.mxu0 %v1210
        %1298 = vmatprep.subr.bf16.mxu0 0
        %1299 = vmatpush1.bf16.msra.mxu0 %v1207
        %1300 = vmatprep.subr.bf16.mxu0 0
        %1301 = vmatpush1.bf16.msra.mxu0 %v1204
        %1302 = vmatprep.subr.bf16.mxu0 0
        %1303 = vmatpush1.bf16.msra.mxu0 %v1201
        %1304 = vmatprep.subr.bf16.mxu0 0
        %1305 = vmatpush2.bf16.msra.mxu0 0
        %1306 = vmatprep.subr.bf16.mxu0 0
        %1307 = vmatpush2.bf16.msra.mxu0 0
        %1308 = vmatprep.subr.bf16.mxu0 0
        %1309 = vmatpush2.bf16.msra.mxu0 0
        %1310 = vmatprep.subr.bf16.mxu0 0
        %1311 = vmatpush2.bf16.msra.mxu0 0
        %1312 = vmatprep.subr.bf16.mxu0 0
        %1313 = vmatpush2.bf16.msra.mxu0 0
        %1314 = vmatprep.subr.bf16.mxu0 0
        %1315 = vmatpush2.bf16.msra.mxu0 0
        %1316 = vmatprep.subr.bf16.mxu0 0
        %1317 = vmatpush2.bf16.msra.mxu0 0
        %1318 = vmatprep.subr.bf16.mxu0 0
        %1319 = vmatpush2.bf16.msra.mxu0 0
        %1320 = vmatprep.mubr.bf16.mxu0 0
        %1321 = vmatmul.mubr.bf16.gmra.mxu0 %v1069
        %v1322 = vpop.f32.mrf.mxu0
        %v1323 = vadd.f32 %v1115, %v1322
        %v1324 = vpop.f32.mrf.mxu0
        %v1325 = vpop.f32.mrf.mxu0
        %v1326 = vpop.f32.mrf.mxu0
        %1327 = vdwg.mxu0
        %v1328 = vpack.c.bf16 %v1282, %v1282
        %v1329 = vpack.c.bf16 %v1284, %v1284
        %vm1330 = vcmask 523264
        %v1332 = vsel %vm1330, %v1328, 0
        %v1335 = vsel %vm1330, %v1329, 0
        %1337 = vmatprep.subr.bf16.mxu0 0
        %1338 = vmatpush1.bf16.xpose.msra.mxu0 0
        %1339 = vmatprep.subr.bf16.mxu0 0
        %1340 = vmatpush1.bf16.xpose.msra.mxu0 0
        %1341 = vmatprep.subr.bf16.mxu0 0
        %1342 = vmatpush1.bf16.xpose.msra.mxu0 0
        %1343 = vmatprep.subr.bf16.mxu0 0
        %1344 = vmatpush1.bf16.xpose.msra.mxu0 0
        %1345 = vmatprep.subr.bf16.mxu0 0
        %1346 = vmatpush1.bf16.xpose.msra.mxu0 0
        %1347 = vmatprep.subr.bf16.mxu0 0
        %1348 = vmatpush1.bf16.xpose.msra.mxu0 0
        %1349 = vmatprep.subr.bf16.mxu0 0
        %1350 = vmatpush1.bf16.xpose.msra.mxu0 0
        %1351 = vmatprep.subr.bf16.mxu0 0
        %1352 = vmatpush1.bf16.xpose.msra.mxu0 %v1335
        %1353 = vmatprep.subr.bf16.mxu0 0
        %1354 = vmatpush2.bf16.xpose.msra.mxu0 0
        %1355 = vmatprep.subr.bf16.mxu0 0
        %1356 = vmatpush2.bf16.xpose.msra.mxu0 0
        %1357 = vmatprep.subr.bf16.mxu0 0
        %1358 = vmatpush2.bf16.xpose.msra.mxu0 0
        %1359 = vmatprep.subr.bf16.mxu0 0
        %1360 = vmatpush2.bf16.xpose.msra.mxu0 0
        %1361 = vmatprep.subr.bf16.mxu0 0
        %1362 = vmatpush2.bf16.xpose.msra.mxu0 0
        %1363 = vmatprep.subr.bf16.mxu0 0
        %1364 = vmatpush2.bf16.xpose.msra.mxu0 0
        %1365 = vmatprep.subr.bf16.mxu0 0
        %1366 = vmatpush2.bf16.xpose.msra.mxu0 0
        %1367 = vmatprep.subr.bf16.mxu0 0
        %1368 = vmatpush2.bf16.xpose.msra.mxu0 0
        %1369 = vmatprep.mubr.bf16.mxu0 0
        %1370 = vmatmul.mubr.bf16.gmra.mxu0 %v1332
        %v1371 = vpop.f32.mrf.mxu0
        %v1372 = vadd.f32 %v1040, %v1371
        %v1373 = vpop.f32.mrf.mxu0
        %v1374 = vpop.f32.mrf.mxu0
        %v1375 = vpop.f32.mrf.mxu0
        %1376 = vdwg.mxu0
        %vm1377 = vcmask 64512
        %v1378 = vsel %vm1377, %v1372, -inf
        %1379 = vmax.xlane.f32.xlu0 %v1378
        %v1380 = vpop.xlane.xlu0 %1379
        %v1381 = vsub.f32 %v1372, %v1380
        %v1382 = vmul.f32 %v1381, 1.442695
        %v1383 = vpow.pop %v1382
        %v1384 = vsel %vm1377, %v1383, 0.0
        %1385 = vadd.xlane.f32.xlu0 %v1384
        %v1386 = vpop.xlane.xlu0 %1385
        %v1387 = vrcp.pop %v1386
        %v1388 = vmul.f32 %v1383, %v1387
        %v1389 = vpack.c.bf16 %v1388, %v1388
        %v1390 = vpack.c.bf16 %v1323, %v1323
        %v1392 = vsel %vm1377, %v1389, 0
        %vm1394 = vcmask 1043456
        %v1396 = vsel %vm1394, %v1390, 0
        %1398 = vmatprep.subr.bf16.mxu0 0
        %1399 = vmatpush1.bf16.msra.mxu0 0
        %1400 = vmatprep.subr.bf16.mxu0 0
        %1401 = vmatpush1.bf16.msra.mxu0 0
        %1402 = vmatprep.subr.bf16.mxu0 0
        %1403 = vmatpush1.bf16.msra.mxu0 0
        %1404 = vmatprep.subr.bf16.mxu0 0
        %1405 = vmatpush1.bf16.msra.mxu0 0
        %1406 = vmatprep.subr.bf16.mxu0 0
        %1407 = vmatpush1.bf16.msra.mxu0 0
        %1408 = vmatprep.subr.bf16.mxu0 0
        %1409 = vmatpush1.bf16.msra.mxu0 0
        %1410 = vmatprep.subr.bf16.mxu0 0
        %1411 = vmatpush1.bf16.msra.mxu0 0
        %1412 = vmatprep.subr.bf16.mxu0 0
        %1413 = vmatpush1.bf16.msra.mxu0 %v1396
        %1414 = vmatprep.subr.bf16.mxu0 0
        %1415 = vmatpush2.bf16.msra.mxu0 0
        %1416 = vmatprep.subr.bf16.mxu0 0
        %1417 = vmatpush2.bf16.msra.mxu0 0
        %1418 = vmatprep.subr.bf16.mxu0 0
        %1419 = vmatpush2.bf16.msra.mxu0 0
        %1420 = vmatprep.subr.bf16.mxu0 0
        %1421 = vmatpush2.bf16.msra.mxu0 0
        %1422 = vmatprep.subr.bf16.mxu0 0
        %1423 = vmatpush2.bf16.msra.mxu0 0
        %1424 = vmatprep.subr.bf16.mxu0 0
        %1425 = vmatpush2.bf16.msra.mxu0 0
        %1426 = vmatprep.subr.bf16.mxu0 0
        %1427 = vmatpush2.bf16.msra.mxu0 0
        %1428 = vmatprep.subr.bf16.mxu0 0
        %1429 = vmatpush2.bf16.msra.mxu0 0
        %1430 = vmatprep.mubr.bf16.mxu0 0
        %1431 = vmatmul.mubr.bf16.gmra.mxu0 %v1392
        %v1432 = vpop.f32.mrf.mxu0
        %v1433 = vadd.f32 0.0, %v1432
        %v1434 = vpop.f32.mrf.mxu0
        %v1435 = vpop.f32.mrf.mxu0
        %v1436 = vpop.f32.mrf.mxu0
        %1437 = vdwg.mxu0
        %1439 = vrot.lane.b32.xlu0 %v1328, 64
        %v1440 = vpop.permute.xlu0 %1439
        %1442 = vrot.lane.b32.xlu0 %v1329, 64
        %v1443 = vpop.permute.xlu0 %1442
        %v1445 = vsel %vm1330, %v1440, 0
        %v1448 = vsel %vm1330, %v1443, 0
        %1450 = vmatprep.subr.bf16.mxu0 0
        %1451 = vmatpush1.bf16.xpose.msra.mxu0 0
        %1452 = vmatprep.subr.bf16.mxu0 0
        %1453 = vmatpush1.bf16.xpose.msra.mxu0 0
        %1454 = vmatprep.subr.bf16.mxu0 0
        %1455 = vmatpush1.bf16.xpose.msra.mxu0 0
        %1456 = vmatprep.subr.bf16.mxu0 0
        %1457 = vmatpush1.bf16.xpose.msra.mxu0 0
        %1458 = vmatprep.subr.bf16.mxu0 0
        %1459 = vmatpush1.bf16.xpose.msra.mxu0 0
        %1460 = vmatprep.subr.bf16.mxu0 0
        %1461 = vmatpush1.bf16.xpose.msra.mxu0 0
        %1462 = vmatprep.subr.bf16.mxu0 0
        %1463 = vmatpush1.bf16.xpose.msra.mxu0 0
        %1464 = vmatprep.subr.bf16.mxu0 0
        %1465 = vmatpush1.bf16.xpose.msra.mxu0 %v1448
        %1466 = vmatprep.subr.bf16.mxu0 0
        %1467 = vmatpush2.bf16.xpose.msra.mxu0 0
        %1468 = vmatprep.subr.bf16.mxu0 0
        %1469 = vmatpush2.bf16.xpose.msra.mxu0 0
        %1470 = vmatprep.subr.bf16.mxu0 0
        %1471 = vmatpush2.bf16.xpose.msra.mxu0 0
        %1472 = vmatprep.subr.bf16.mxu0 0
        %1473 = vmatpush2.bf16.xpose.msra.mxu0 0
        %1474 = vmatprep.subr.bf16.mxu0 0
        %1475 = vmatpush2.bf16.xpose.msra.mxu0 0
        %1476 = vmatprep.subr.bf16.mxu0 0
        %1477 = vmatpush2.bf16.xpose.msra.mxu0 0
        %1478 = vmatprep.subr.bf16.mxu0 0
        %1479 = vmatpush2.bf16.xpose.msra.mxu0 0
        %1480 = vmatprep.subr.bf16.mxu0 0
        %1481 = vmatpush2.bf16.xpose.msra.mxu0 0
        %1482 = vmatprep.mubr.bf16.mxu0 0
        %1483 = vmatmul.mubr.bf16.gmra.mxu0 %v1445
        %v1484 = vpop.f32.mrf.mxu0
        %v1485 = vadd.f32 %v1040, %v1484
        %v1486 = vpop.f32.mrf.mxu0
        %v1487 = vpop.f32.mrf.mxu0
        %v1488 = vpop.f32.mrf.mxu0
        %1489 = vdwg.mxu0
        %v1490 = vsel %vm1377, %v1485, -inf
        %1491 = vmax.xlane.f32.xlu0 %v1490
        %v1492 = vpop.xlane.xlu0 %1491
        %v1493 = vsub.f32 %v1485, %v1492
        %v1494 = vmul.f32 %v1493, 1.442695
        %v1495 = vpow.pop %v1494
        %v1496 = vsel %vm1377, %v1495, 0.0
        %1497 = vadd.xlane.f32.xlu0 %v1496
        %v1498 = vpop.xlane.xlu0 %1497
        %v1499 = vrcp.pop %v1498
        %v1500 = vmul.f32 %v1495, %v1499
        %v1501 = vpack.c.bf16 %v1500, %v1500
        %1503 = vrot.lane.b32.xlu0 %v1390, 64
        %v1504 = vpop.permute.xlu0 %1503
        %v1506 = vsel %vm1377, %v1501, 0
        %v1509 = vsel %vm1394, %v1504, 0
        %1511 = vmatprep.subr.bf16.mxu0 0
        %1512 = vmatpush1.bf16.msra.mxu0 0
        %1513 = vmatprep.subr.bf16.mxu0 0
        %1514 = vmatpush1.bf16.msra.mxu0 0
        %1515 = vmatprep.subr.bf16.mxu0 0
        %1516 = vmatpush1.bf16.msra.mxu0 0
        %1517 = vmatprep.subr.bf16.mxu0 0
        %1518 = vmatpush1.bf16.msra.mxu0 0
        %1519 = vmatprep.subr.bf16.mxu0 0
        %1520 = vmatpush1.bf16.msra.mxu0 0
        %1521 = vmatprep.subr.bf16.mxu0 0
        %1522 = vmatpush1.bf16.msra.mxu0 0
        %1523 = vmatprep.subr.bf16.mxu0 0
        %1524 = vmatpush1.bf16.msra.mxu0 0
        %1525 = vmatprep.subr.bf16.mxu0 0
        %1526 = vmatpush1.bf16.msra.mxu0 %v1509
        %1527 = vmatprep.subr.bf16.mxu0 0
        %1528 = vmatpush2.bf16.msra.mxu0 0
        %1529 = vmatprep.subr.bf16.mxu0 0
        %1530 = vmatpush2.bf16.msra.mxu0 0
        %1531 = vmatprep.subr.bf16.mxu0 0
        %1532 = vmatpush2.bf16.msra.mxu0 0
        %1533 = vmatprep.subr.bf16.mxu0 0
        %1534 = vmatpush2.bf16.msra.mxu0 0
        %1535 = vmatprep.subr.bf16.mxu0 0
        %1536 = vmatpush2.bf16.msra.mxu0 0
        %1537 = vmatprep.subr.bf16.mxu0 0
        %1538 = vmatpush2.bf16.msra.mxu0 0
        %1539 = vmatprep.subr.bf16.mxu0 0
        %1540 = vmatpush2.bf16.msra.mxu0 0
        %1541 = vmatprep.subr.bf16.mxu0 0
        %1542 = vmatpush2.bf16.msra.mxu0 0
        %1543 = vmatprep.mubr.bf16.mxu0 0
        %1544 = vmatmul.mubr.bf16.gmra.mxu0 %v1506
        %v1545 = vpop.f32.mrf.mxu0
        %v1546 = vadd.f32 0.0, %v1545
        %v1547 = vpop.f32.mrf.mxu0
        %v1548 = vpop.f32.mrf.mxu0
        %v1549 = vpop.f32.mrf.mxu0
        %1550 = vdwg.mxu0
        %1552 = vrot.lane.b32.xlu0 %v1546, 64
        %v1553 = vpop.permute.xlu0 %1552
        %v1555 = vsel %vm1330, %v1433, %v1553
        %v1556 = vpack.c.bf16 %v1555, %v1555
        %v1557 = vld [vmem:[%s718] sm:$0xf]
        %v1558 = vld [vmem:[%s718 + $0x4] sm:$0xf]
        %v1559 = vld [vmem:[%s718 + $0x8] sm:$0xf]
        %v1560 = vld [vmem:[%s718 + $0xc] sm:$0xf]
        %v1561 = vld [vmem:[%s718 + $0x10] sm:$0xf]
        %v1562 = vld [vmem:[%s718 + $0x14] sm:$0xf]
        %v1563 = vld [vmem:[%s718 + $0x18] sm:$0xf]
        %v1564 = vld [vmem:[%s718 + $0x1c] sm:$0xf]
        %v1565 = vld [vmem:[%s718 + $0x20] sm:$0xf]
        %v1566 = vld [vmem:[%s718 + $0x24] sm:$0xf]
        %v1567 = vld [vmem:[%s718 + $0x28] sm:$0xf]
        %v1568 = vld [vmem:[%s718 + $0x2c] sm:$0xf]
        %v1569 = vld [vmem:[%s718 + $0x30] sm:$0xf]
        %v1570 = vld [vmem:[%s718 + $0x34] sm:$0xf]
        %v1571 = vld [vmem:[%s718 + $0x38] sm:$0xf]
        %v1572 = vld [vmem:[%s718 + $0x3c] sm:$0xf]
        %v1573 = vld [vmem:[%s863] sm:$0x1]
        %v1575 = vlaneseq
        %v1576 = vshrl.u32 %v1575, 7
        %v1577 = vsub.s32 0, %v1576
        %v1578 = vrot.slane %v1573, %v1577
        %v1596 = vunpack.c.l.b16 %v1557
        %v1597 = vunpack.c.l.b16 %v1558
        %v1598 = vunpack.c.l.b16 %v1559
        %v1599 = vunpack.c.l.b16 %v1560
        %v1600 = vunpack.c.l.b16 %v1561
        %v1601 = vunpack.c.l.b16 %v1562
        %v1602 = vunpack.c.l.b16 %v1563
        %v1603 = vunpack.c.l.b16 %v1564
        %v1604 = vunpack.c.l.b16 %v1565
        %v1605 = vunpack.c.l.b16 %v1566
        %v1606 = vunpack.c.l.b16 %v1567
        %v1607 = vunpack.c.l.b16 %v1568
        %v1608 = vunpack.c.l.b16 %v1569
        %v1609 = vunpack.c.l.b16 %v1570
        %v1610 = vunpack.c.l.b16 %v1571
        %v1611 = vunpack.c.l.b16 %v1572
        %v1612 = vpack.c.b16 %v1597, %v1596
        %v1613 = vpack.c.b16 %v1599, %v1598
        %v1614 = vpack.c.b16 %v1601, %v1600
        %v1615 = vpack.c.b16 %v1603, %v1602
        %v1616 = vpack.c.b16 %v1605, %v1604
        %v1617 = vpack.c.b16 %v1607, %v1606
        %v1618 = vpack.c.b16 %v1609, %v1608
        %v1619 = vpack.c.b16 %v1611, %v1610
        %1628 = vmatprep.subr.bf16.mxu0 0
        %1629 = vmatpush1.bf16.msra.mxu0 %v1619
        %1630 = vmatprep.subr.bf16.mxu0 0
        %1631 = vmatpush1.bf16.msra.mxu0 %v1618
        %1632 = vmatprep.subr.bf16.mxu0 0
        %1633 = vmatpush1.bf16.msra.mxu0 %v1617
        %1634 = vmatprep.subr.bf16.mxu0 0
        %1635 = vmatpush1.bf16.msra.mxu0 %v1616
        %1636 = vmatprep.subr.bf16.mxu0 0
        %1637 = vmatpush1.bf16.msra.mxu0 %v1615
        %1638 = vmatprep.subr.bf16.mxu0 0
        %1639 = vmatpush1.bf16.msra.mxu0 %v1614
        %1640 = vmatprep.subr.bf16.mxu0 0
        %1641 = vmatpush1.bf16.msra.mxu0 %v1613
        %1642 = vmatprep.subr.bf16.mxu0 0
        %1643 = vmatpush1.bf16.msra.mxu0 %v1612
        %1644 = vmatprep.subr.bf16.mxu0 0
        %1645 = vmatpush2.bf16.msra.mxu0 0
        %1646 = vmatprep.subr.bf16.mxu0 0
        %1647 = vmatpush2.bf16.msra.mxu0 0
        %1648 = vmatprep.subr.bf16.mxu0 0
        %1649 = vmatpush2.bf16.msra.mxu0 0
        %1650 = vmatprep.subr.bf16.mxu0 0
        %1651 = vmatpush2.bf16.msra.mxu0 0
        %1652 = vmatprep.subr.bf16.mxu0 0
        %1653 = vmatpush2.bf16.msra.mxu0 0
        %1654 = vmatprep.subr.bf16.mxu0 0
        %1655 = vmatpush2.bf16.msra.mxu0 0
        %1656 = vmatprep.subr.bf16.mxu0 0
        %1657 = vmatpush2.bf16.msra.mxu0 0
        %1658 = vmatprep.subr.bf16.mxu0 0
        %1659 = vmatpush2.bf16.msra.mxu0 0
        %1660 = vmatprep.mubr.bf16.mxu0 0
        %1661 = vmatmul.mubr.bf16.gmra.mxu0 %v1556
        %v1662 = vpop.f32.mrf.mxu0
        %v1663 = vadd.f32 %v1578, %v1662
        %v1664 = vpop.f32.mrf.mxu0
        %v1665 = vpop.f32.mrf.mxu0
        %v1666 = vpop.f32.mrf.mxu0
        %1667 = vdwg.mxu0
        %v1668 = vadd.f32 %v1034, %v1663
        %v1669 = vld [vmem:[%s742] sm:$0x1]
        %v1670 = vld [vmem:[%s866] sm:$0x1]
        %1671 = vadd.xlane.f32.xlu0 %v1668
        %v1672 = vpop.xlane.xlu0 %1671
        %v1673 = vmul.f32 %v1672, %v1045
        %v1674 = vsub.f32 %v1668, %v1673
        %v1675 = vmul.f32 %v1674, %v1674
        %1676 = vadd.xlane.f32.xlu0 %v1675
        %v1677 = vpop.xlane.xlu0 %1676
        %v1678 = vmul.f32 %v1677, %v1045
        %v1679 = vadd.f32 %v1678, 1e-05
        %v1680 = vrsqrt.pop %v1679
        %v1681 = vmul.f32 %v1674, %v1680
        %v1683 = vlaneseq
        %v1684 = vshrl.u32 %v1683, 7
        %v1685 = vsub.s32 0, %v1684
        %v1686 = vrot.slane %v1669, %v1685
        %v1688 = vmul.f32 %v1681, %v1686
        %v1690 = vlaneseq
        %v1691 = vshrl.u32 %v1690, 7
        %v1692 = vsub.s32 0, %v1691
        %v1693 = vrot.slane %v1670, %v1692
        %v1695 = vadd.f32 %v1688, %v1693
        %v1696 = vpack.c.bf16 %v1695, %v1695
        %v1697 = vld [vmem:[%s751] sm:$0xff]
        %v1698 = vld [vmem:[%s751 + $0x8] sm:$0xff]
        %v1699 = vld [vmem:[%s751 + $0x10] sm:$0xff]
        %v1700 = vld [vmem:[%s751 + $0x18] sm:$0xff]
        %v1701 = vld [vmem:[%s751 + $0x20] sm:$0xff]
        %v1702 = vld [vmem:[%s751 + $0x28] sm:$0xff]
        %v1703 = vld [vmem:[%s751 + $0x30] sm:$0xff]
        %v1704 = vld [vmem:[%s751 + $0x38] sm:$0xff]
        %v1705 = vld [vmem:[%s751 + $0x40] sm:$0xff]
        %v1706 = vld [vmem:[%s751 + $0x48] sm:$0xff]
        %v1707 = vld [vmem:[%s751 + $0x50] sm:$0xff]
        %v1708 = vld [vmem:[%s751 + $0x58] sm:$0xff]
        %v1709 = vld [vmem:[%s751 + $0x60] sm:$0xff]
        %v1710 = vld [vmem:[%s751 + $0x68] sm:$0xff]
        %v1711 = vld [vmem:[%s751 + $0x70] sm:$0xff]
        %v1712 = vld [vmem:[%s751 + $0x78] sm:$0xff]
        %v1713 = vld [vmem:[%s751 + $0x80] sm:$0xff]
        %v1714 = vld [vmem:[%s751 + $0x88] sm:$0xff]
        %v1715 = vld [vmem:[%s751 + $0x90] sm:$0xff]
        %v1716 = vld [vmem:[%s751 + $0x98] sm:$0xff]
        %v1717 = vld [vmem:[%s751 + $0xa0] sm:$0xff]
        %v1718 = vld [vmem:[%s751 + $0xa8] sm:$0xff]
        %v1719 = vld [vmem:[%s751 + $0xb0] sm:$0xff]
        %v1720 = vld [vmem:[%s751 + $0xb8] sm:$0xff]
        %v1721 = vld [vmem:[%s751 + $0xc0] sm:$0xff]
        %v1722 = vld [vmem:[%s751 + $0xc8] sm:$0xff]
        %v1723 = vld [vmem:[%s751 + $0xd0] sm:$0xff]
        %v1724 = vld [vmem:[%s751 + $0xd8] sm:$0xff]
        %v1725 = vld [vmem:[%s751 + $0xe0] sm:$0xff]
        %v1726 = vld [vmem:[%s751 + $0xe8] sm:$0xff]
        %v1727 = vld [vmem:[%s751 + $0xf0] sm:$0xff]
        %v1728 = vld [vmem:[%s751 + $0xf8] sm:$0xff]
        %v1729 = vld [vmem:[%s870] sm:$0xf]
        %v1731 = vlaneseq
        %v1732 = vshrl.u32 %v1731, 7
        %v1733 = vsub.s32 0, %v1732
        %v1734 = vrot.slane %v1729, %v1733
        %v1735 = vlaneseq
        %v1736 = vshrl.u32 %v1735, 7
        %v1737 = vsub.s32 1, %v1736
        %v1738 = vrot.slane %v1729, %v1737
        %v1739 = vlaneseq
        %v1740 = vshrl.u32 %v1739, 7
        %v1741 = vsub.s32 2, %v1740
        %v1742 = vrot.slane %v1729, %v1741
        %v1743 = vlaneseq
        %v1744 = vshrl.u32 %v1743, 7
        %v1745 = vsub.s32 3, %v1744
        %v1746 = vrot.slane %v1729, %v1745
        %v1783 = vunpack.c.l.b16 %v1697
        %v1784 = vunpack.c.h.b16 %v1697
        %v1785 = vunpack.c.l.b16 %v1698
        %v1786 = vunpack.c.h.b16 %v1698
        %v1787 = vunpack.c.l.b16 %v1699
        %v1788 = vunpack.c.h.b16 %v1699
        %v1789 = vunpack.c.l.b16 %v1700
        %v1790 = vunpack.c.h.b16 %v1700
        %v1791 = vunpack.c.l.b16 %v1701
        %v1792 = vunpack.c.h.b16 %v1701
        %v1793 = vunpack.c.l.b16 %v1702
        %v1794 = vunpack.c.h.b16 %v1702
        %v1795 = vunpack.c.l.b16 %v1703
        %v1796 = vunpack.c.h.b16 %v1703
        %v1797 = vunpack.c.l.b16 %v1704
        %v1798 = vunpack.c.h.b16 %v1704
        %v1799 = vunpack.c.l.b16 %v1705
        %v1800 = vunpack.c.h.b16 %v1705
        %v1801 = vunpack.c.l.b16 %v1706
        %v1802 = vunpack.c.h.b16 %v1706
        %v1803 = vunpack.c.l.b16 %v1707
        %v1804 = vunpack.c.h.b16 %v1707
        %v1805 = vunpack.c.l.b16 %v1708
        %v1806 = vunpack.c.h.b16 %v1708
        %v1807 = vunpack.c.l.b16 %v1709
        %v1808 = vunpack.c.h.b16 %v1709
        %v1809 = vunpack.c.l.b16 %v1710
        %v1810 = vunpack.c.h.b16 %v1710
        %v1811 = vunpack.c.l.b16 %v1711
        %v1812 = vunpack.c.h.b16 %v1711
        %v1813 = vunpack.c.l.b16 %v1712
        %v1814 = vunpack.c.h.b16 %v1712
        %v1815 = vunpack.c.l.b16 %v1713
        %v1816 = vunpack.c.h.b16 %v1713
        %v1817 = vunpack.c.l.b16 %v1714
        %v1818 = vunpack.c.h.b16 %v1714
        %v1819 = vunpack.c.l.b16 %v1715
        %v1820 = vunpack.c.h.b16 %v1715
        %v1821 = vunpack.c.l.b16 %v1716
        %v1822 = vunpack.c.h.b16 %v1716
        %v1823 = vunpack.c.l.b16 %v1717
        %v1824 = vunpack.c.h.b16 %v1717
        %v1825 = vunpack.c.l.b16 %v1718
        %v1826 = vunpack.c.h.b16 %v1718
        %v1827 = vunpack.c.l.b16 %v1719
        %v1828 = vunpack.c.h.b16 %v1719
        %v1829 = vunpack.c.l.b16 %v1720
        %v1830 = vunpack.c.h.b16 %v1720
        %v1831 = vunpack.c.l.b16 %v1721
        %v1832 = vunpack.c.h.b16 %v1721
        %v1833 = vunpack.c.l.b16 %v1722
        %v1834 = vunpack.c.h.b16 %v1722
        %v1835 = vunpack.c.l.b16 %v1723
        %v1836 = vunpack.c.h.b16 %v1723
        %v1837 = vunpack.c.l.b16 %v1724
        %v1838 = vunpack.c.h.b16 %v1724
        %v1839 = vunpack.c.l.b16 %v1725
        %v1840 = vunpack.c.h.b16 %v1725
        %v1841 = vunpack.c.l.b16 %v1726
        %v1842 = vunpack.c.h.b16 %v1726
        %v1843 = vunpack.c.l.b16 %v1727
        %v1844 = vunpack.c.h.b16 %v1727
        %v1845 = vunpack.c.l.b16 %v1728
        %v1846 = vunpack.c.h.b16 %v1728
        %v1847 = vpack.c.b16 %v1787, %v1783
        %v1848 = vpack.c.b16 %v1788, %v1784
        %v1849 = vpack.c.b16 %v1789, %v1785
        %v1850 = vpack.c.b16 %v1790, %v1786
        %v1851 = vpack.c.b16 %v1795, %v1791
        %v1852 = vpack.c.b16 %v1796, %v1792
        %v1853 = vpack.c.b16 %v1797, %v1793
        %v1854 = vpack.c.b16 %v1798, %v1794
        %v1855 = vpack.c.b16 %v1803, %v1799
        %v1856 = vpack.c.b16 %v1804, %v1800
        %v1857 = vpack.c.b16 %v1805, %v1801
        %v1858 = vpack.c.b16 %v1806, %v1802
        %v1859 = vpack.c.b16 %v1811, %v1807
        %v1860 = vpack.c.b16 %v1812, %v1808
        %v1861 = vpack.c.b16 %v1813, %v1809
        %v1862 = vpack.c.b16 %v1814, %v1810
        %v1863 = vpack.c.b16 %v1819, %v1815
        %v1864 = vpack.c.b16 %v1820, %v1816
        %v1865 = vpack.c.b16 %v1821, %v1817
        %v1866 = vpack.c.b16 %v1822, %v1818
        %v1867 = vpack.c.b16 %v1827, %v1823
        %v1868 = vpack.c.b16 %v1828, %v1824
        %v1869 = vpack.c.b16 %v1829, %v1825
        %v1870 = vpack.c.b16 %v1830, %v1826
        %v1871 = vpack.c.b16 %v1835, %v1831
        %v1872 = vpack.c.b16 %v1836, %v1832
        %v1873 = vpack.c.b16 %v1837, %v1833
        %v1874 = vpack.c.b16 %v1838, %v1834
        %v1875 = vpack.c.b16 %v1843, %v1839
        %v1876 = vpack.c.b16 %v1844, %v1840
        %v1877 = vpack.c.b16 %v1845, %v1841
        %v1878 = vpack.c.b16 %v1846, %v1842
        %1911 = vmatprep.subr.bf16.mxu0 %v1876
        %1912 = vmatpush1.bf16.msra.mxu0 %v1875
        %1913 = vmatprep.subr.bf16.mxu0 %v1872
        %1914 = vmatpush1.bf16.msra.mxu0 %v1871
        %1915 = vmatprep.subr.bf16.mxu0 %v1868
        %1916 = vmatpush1.bf16.msra.mxu0 %v1867
        %1917 = vmatprep.subr.bf16.mxu0 %v1864
        %1918 = vmatpush1.bf16.msra.mxu0 %v1863
        %1919 = vmatprep.subr.bf16.mxu0 %v1860
        %1920 = vmatpush1.bf16.msra.mxu0 %v1859
        %1921 = vmatprep.subr.bf16.mxu0 %v1856
        %1922 = vmatpush1.bf16.msra.mxu0 %v1855
        %1923 = vmatprep.subr.bf16.mxu0 %v1852
        %1924 = vmatpush1.bf16.msra.mxu0 %v1851
        %1925 = vmatprep.subr.bf16.mxu0 %v1848
        %1926 = vmatpush1.bf16.msra.mxu0 %v1847
        %1927 = vmatprep.subr.bf16.mxu0 0
        %1928 = vmatpush2.bf16.msra.mxu0 0
        %1929 = vmatprep.subr.bf16.mxu0 0
        %1930 = vmatpush2.bf16.msra.mxu0 0
        %1931 = vmatprep.subr.bf16.mxu0 0
        %1932 = vmatpush2.bf16.msra.mxu0 0
        %1933 = vmatprep.subr.bf16.mxu0 0
        %1934 = vmatpush2.bf16.msra.mxu0 0
        %1935 = vmatprep.subr.bf16.mxu0 0
        %1936 = vmatpush2.bf16.msra.mxu0 0
        %1937 = vmatprep.subr.bf16.mxu0 0
        %1938 = vmatpush2.bf16.msra.mxu0 0
        %1939 = vmatprep.subr.bf16.mxu0 0
        %1940 = vmatpush2.bf16.msra.mxu0 0
        %1941 = vmatprep.subr.bf16.mxu0 0
        %1942 = vmatpush2.bf16.msra.mxu0 0
        %1943 = vmatprep.mubr.bf16.mxu0 0
        %1944 = vmatmul.mubr.bf16.gmra.mxu0 %v1696
        %v1945 = vpop.f32.mrf.mxu0
        %v1946 = vadd.f32 %v1734, %v1945
        %v1947 = vpop.f32.mrf.mxu0
        %v1948 = vadd.f32 %v1738, %v1947
        %v1949 = vpop.f32.mrf.mxu0
        %v1950 = vpop.f32.mrf.mxu0
        %1951 = vdwg.mxu0
        %1952 = vmatprep.subr.bf16.mxu0 %v1878
        %1953 = vmatpush1.bf16.msra.mxu0 %v1877
        %1954 = vmatprep.subr.bf16.mxu0 %v1874
        %1955 = vmatpush1.bf16.msra.mxu0 %v1873
        %1956 = vmatprep.subr.bf16.mxu0 %v1870
        %1957 = vmatpush1.bf16.msra.mxu0 %v1869
        %1958 = vmatprep.subr.bf16.mxu0 %v1866
        %1959 = vmatpush1.bf16.msra.mxu0 %v1865
        %1960 = vmatprep.subr.bf16.mxu0 %v1862
        %1961 = vmatpush1.bf16.msra.mxu0 %v1861
        %1962 = vmatprep.subr.bf16.mxu0 %v1858
        %1963 = vmatpush1.bf16.msra.mxu0 %v1857
        %1964 = vmatprep.subr.bf16.mxu0 %v1854
        %1965 = vmatpush1.bf16.msra.mxu0 %v1853
        %1966 = vmatprep.subr.bf16.mxu0 %v1850
        %1967 = vmatpush1.bf16.msra.mxu0 %v1849
        %1968 = vmatprep.subr.bf16.mxu0 0
        %1969 = vmatpush2.bf16.msra.mxu0 0
        %1970 = vmatprep.subr.bf16.mxu0 0
        %1971 = vmatpush2.bf16.msra.mxu0 0
        %1972 = vmatprep.subr.bf16.mxu0 0
        %1973 = vmatpush2.bf16.msra.mxu0 0
        %1974 = vmatprep.subr.bf16.mxu0 0
        %1975 = vmatpush2.bf16.msra.mxu0 0
        %1976 = vmatprep.subr.bf16.mxu0 0
        %1977 = vmatpush2.bf16.msra.mxu0 0
        %1978 = vmatprep.subr.bf16.mxu0 0
        %1979 = vmatpush2.bf16.msra.mxu0 0
        %1980 = vmatprep.subr.bf16.mxu0 0
        %1981 = vmatpush2.bf16.msra.mxu0 0
        %1982 = vmatprep.subr.bf16.mxu0 0
        %1983 = vmatpush2.bf16.msra.mxu0 0
        %1984 = vmatprep.mubr.bf16.mxu0 0
        %1985 = vmatmul.mubr.bf16.gmra.mxu0 %v1696
        %v1986 = vpop.f32.mrf.mxu0
        %v1987 = vadd.f32 %v1742, %v1986
        %v1988 = vpop.f32.mrf.mxu0
        %v1989 = vadd.f32 %v1746, %v1988
        %v1990 = vpop.f32.mrf.mxu0
        %v1991 = vpop.f32.mrf.mxu0
        %1992 = vdwg.mxu0
        %v1993 = vmul.f32 %v1946, 0.5
        %v1994 = vmul.f32 %v1948, 0.5
        %v1995 = vmul.f32 %v1987, 0.5
        %v1996 = vmul.f32 %v1989, 0.5
        %v1997 = vmul.f32 %v1946, 0.70710677
        %v1998 = vmul.f32 %v1948, 0.70710677
        %v1999 = vmul.f32 %v1987, 0.70710677
        %v2000 = vmul.f32 %v1989, 0.70710677
        %v2001 = verf.f32.pop %v1997
        %v2002 = verf.f32.pop %v1998
        %v2003 = verf.f32.pop %v1999
        %v2004 = verf.f32.pop %v2000
        %v2005 = vadd.f32 %v2001, 1.0
        %v2006 = vadd.f32 %v2002, 1.0
        %v2007 = vadd.f32 %v2003, 1.0
        %v2008 = vadd.f32 %v2004, 1.0
        %v2009 = vmul.f32 %v1993, %v2005
        %v2010 = vmul.f32 %v1994, %v2006
        %v2011 = vmul.f32 %v1995, %v2007
        %v2012 = vmul.f32 %v1996, %v2008
        %v2013 = vpack.c.bf16 %v2009, %v2009
        %v2014 = vpack.c.bf16 %v2010, %v2010
        %v2015 = vpack.c.bf16 %v2011, %v2011
        %v2016 = vpack.c.bf16 %v2012, %v2012
        %v2017 = vld [vmem:[%s760] sm:$0xf]
        %v2018 = vld [vmem:[%s760 + $0x4] sm:$0xf]
        %v2019 = vld [vmem:[%s760 + $0x8] sm:$0xf]
        %v2020 = vld [vmem:[%s760 + $0xc] sm:$0xf]
        %v2021 = vld [vmem:[%s760 + $0x10] sm:$0xf]
        %v2022 = vld [vmem:[%s760 + $0x14] sm:$0xf]
        %v2023 = vld [vmem:[%s760 + $0x18] sm:$0xf]
        %v2024 = vld [vmem:[%s760 + $0x1c] sm:$0xf]
        %v2025 = vld [vmem:[%s760 + $0x20] sm:$0xf]
        %v2026 = vld [vmem:[%s760 + $0x24] sm:$0xf]
        %v2027 = vld [vmem:[%s760 + $0x28] sm:$0xf]
        %v2028 = vld [vmem:[%s760 + $0x2c] sm:$0xf]
        %v2029 = vld [vmem:[%s760 + $0x30] sm:$0xf]
        %v2030 = vld [vmem:[%s760 + $0x34] sm:$0xf]
        %v2031 = vld [vmem:[%s760 + $0x38] sm:$0xf]
        %v2032 = vld [vmem:[%s760 + $0x3c] sm:$0xf]
        %v2033 = vld [vmem:[%s760 + $0x40] sm:$0xf]
        %v2034 = vld [vmem:[%s760 + $0x44] sm:$0xf]
        %v2035 = vld [vmem:[%s760 + $0x48] sm:$0xf]
        %v2036 = vld [vmem:[%s760 + $0x4c] sm:$0xf]
        %v2037 = vld [vmem:[%s760 + $0x50] sm:$0xf]
        %v2038 = vld [vmem:[%s760 + $0x54] sm:$0xf]
        %v2039 = vld [vmem:[%s760 + $0x58] sm:$0xf]
        %v2040 = vld [vmem:[%s760 + $0x5c] sm:$0xf]
        %v2041 = vld [vmem:[%s760 + $0x60] sm:$0xf]
        %v2042 = vld [vmem:[%s760 + $0x64] sm:$0xf]
        %v2043 = vld [vmem:[%s760 + $0x68] sm:$0xf]
        %v2044 = vld [vmem:[%s760 + $0x6c] sm:$0xf]
        %v2045 = vld [vmem:[%s760 + $0x70] sm:$0xf]
        %v2046 = vld [vmem:[%s760 + $0x74] sm:$0xf]
        %v2047 = vld [vmem:[%s760 + $0x78] sm:$0xf]
        %v2048 = vld [vmem:[%s760 + $0x7c] sm:$0xf]
        %v2049 = vld [vmem:[%s760 + $0x80] sm:$0xf]
        %v2050 = vld [vmem:[%s760 + $0x84] sm:$0xf]
        %v2051 = vld [vmem:[%s760 + $0x88] sm:$0xf]
        %v2052 = vld [vmem:[%s760 + $0x8c] sm:$0xf]
        %v2053 = vld [vmem:[%s760 + $0x90] sm:$0xf]
        %v2054 = vld [vmem:[%s760 + $0x94] sm:$0xf]
        %v2055 = vld [vmem:[%s760 + $0x98] sm:$0xf]
        %v2056 = vld [vmem:[%s760 + $0x9c] sm:$0xf]
        %v2057 = vld [vmem:[%s760 + $0xa0] sm:$0xf]
        %v2058 = vld [vmem:[%s760 + $0xa4] sm:$0xf]
        %v2059 = vld [vmem:[%s760 + $0xa8] sm:$0xf]
        %v2060 = vld [vmem:[%s760 + $0xac] sm:$0xf]
        %v2061 = vld [vmem:[%s760 + $0xb0] sm:$0xf]
        %v2062 = vld [vmem:[%s760 + $0xb4] sm:$0xf]
        %v2063 = vld [vmem:[%s760 + $0xb8] sm:$0xf]
        %v2064 = vld [vmem:[%s760 + $0xbc] sm:$0xf]
        %v2065 = vld [vmem:[%s760 + $0xc0] sm:$0xf]
        %v2066 = vld [vmem:[%s760 + $0xc4] sm:$0xf]
        %v2067 = vld [vmem:[%s760 + $0xc8] sm:$0xf]
        %v2068 = vld [vmem:[%s760 + $0xcc] sm:$0xf]
        %v2069 = vld [vmem:[%s760 + $0xd0] sm:$0xf]
        %v2070 = vld [vmem:[%s760 + $0xd4] sm:$0xf]
        %v2071 = vld [vmem:[%s760 + $0xd8] sm:$0xf]
        %v2072 = vld [vmem:[%s760 + $0xdc] sm:$0xf]
        %v2073 = vld [vmem:[%s760 + $0xe0] sm:$0xf]
        %v2074 = vld [vmem:[%s760 + $0xe4] sm:$0xf]
        %v2075 = vld [vmem:[%s760 + $0xe8] sm:$0xf]
        %v2076 = vld [vmem:[%s760 + $0xec] sm:$0xf]
        %v2077 = vld [vmem:[%s760 + $0xf0] sm:$0xf]
        %v2078 = vld [vmem:[%s760 + $0xf4] sm:$0xf]
        %v2079 = vld [vmem:[%s760 + $0xf8] sm:$0xf]
        %v2080 = vld [vmem:[%s760 + $0xfc] sm:$0xf]
        %v2081 = vld [vmem:[%s873] sm:$0x1]
        %v2083 = vlaneseq
        %v2084 = vshrl.u32 %v2083, 7
        %v2085 = vsub.s32 0, %v2084
        %v2086 = vrot.slane %v2081, %v2085
        %v2152 = vunpack.c.l.b16 %v2017
        %v2153 = vunpack.c.l.b16 %v2018
        %v2154 = vunpack.c.l.b16 %v2019
        %v2155 = vunpack.c.l.b16 %v2020
        %v2156 = vunpack.c.l.b16 %v2021
        %v2157 = vunpack.c.l.b16 %v2022
        %v2158 = vunpack.c.l.b16 %v2023
        %v2159 = vunpack.c.l.b16 %v2024
        %v2160 = vunpack.c.l.b16 %v2025
        %v2161 = vunpack.c.l.b16 %v2026
        %v2162 = vunpack.c.l.b16 %v2027
        %v2163 = vunpack.c.l.b16 %v2028
        %v2164 = vunpack.c.l.b16 %v2029
        %v2165 = vunpack.c.l.b16 %v2030
        %v2166 = vunpack.c.l.b16 %v2031
        %v2167 = vunpack.c.l.b16 %v2032
        %v2168 = vunpack.c.l.b16 %v2033
        %v2169 = vunpack.c.l.b16 %v2034
        %v2170 = vunpack.c.l.b16 %v2035
        %v2171 = vunpack.c.l.b16 %v2036
        %v2172 = vunpack.c.l.b16 %v2037
        %v2173 = vunpack.c.l.b16 %v2038
        %v2174 = vunpack.c.l.b16 %v2039
        %v2175 = vunpack.c.l.b16 %v2040
        %v2176 = vunpack.c.l.b16 %v2041
        %v2177 = vunpack.c.l.b16 %v2042
        %v2178 = vunpack.c.l.b16 %v2043
        %v2179 = vunpack.c.l.b16 %v2044
        %v2180 = vunpack.c.l.b16 %v2045
        %v2181 = vunpack.c.l.b16 %v2046
        %v2182 = vunpack.c.l.b16 %v2047
        %v2183 = vunpack.c.l.b16 %v2048
        %v2184 = vunpack.c.l.b16 %v2049
        %v2185 = vunpack.c.l.b16 %v2050
        %v2186 = vunpack.c.l.b16 %v2051
        %v2187 = vunpack.c.l.b16 %v2052
        %v2188 = vunpack.c.l.b16 %v2053
        %v2189 = vunpack.c.l.b16 %v2054
        %v2190 = vunpack.c.l.b16 %v2055
        %v2191 = vunpack.c.l.b16 %v2056
        %v2192 = vunpack.c.l.b16 %v2057
        %v2193 = vunpack.c.l.b16 %v2058
        %v2194 = vunpack.c.l.b16 %v2059
        %v2195 = vunpack.c.l.b16 %v2060
        %v2196 = vunpack.c.l.b16 %v2061
        %v2197 = vunpack.c.l.b16 %v2062
        %v2198 = vunpack.c.l.b16 %v2063
        %v2199 = vunpack.c.l.b16 %v2064
        %v2200 = vunpack.c.l.b16 %v2065
        %v2201 = vunpack.c.l.b16 %v2066
        %v2202 = vunpack.c.l.b16 %v2067
        %v2203 = vunpack.c.l.b16 %v2068
        %v2204 = vunpack.c.l.b16 %v2069
        %v2205 = vunpack.c.l.b16 %v2070
        %v2206 = vunpack.c.l.b16 %v2071
        %v2207 = vunpack.c.l.b16 %v2072
        %v2208 = vunpack.c.l.b16 %v2073
        %v2209 = vunpack.c.l.b16 %v2074
        %v2210 = vunpack.c.l.b16 %v2075
        %v2211 = vunpack.c.l.b16 %v2076
        %v2212 = vunpack.c.l.b16 %v2077
        %v2213 = vunpack.c.l.b16 %v2078
        %v2214 = vunpack.c.l.b16 %v2079
        %v2215 = vunpack.c.l.b16 %v2080
        %v2216 = vpack.c.b16 %v2153, %v2152
        %v2217 = vpack.c.b16 %v2155, %v2154
        %v2218 = vpack.c.b16 %v2157, %v2156
        %v2219 = vpack.c.b16 %v2159, %v2158
        %v2220 = vpack.c.b16 %v2161, %v2160
        %v2221 = vpack.c.b16 %v2163, %v2162
        %v2222 = vpack.c.b16 %v2165, %v2164
        %v2223 = vpack.c.b16 %v2167, %v2166
        %v2224 = vpack.c.b16 %v2169, %v2168
        %v2225 = vpack.c.b16 %v2171, %v2170
        %v2226 = vpack.c.b16 %v2173, %v2172
        %v2227 = vpack.c.b16 %v2175, %v2174
        %v2228 = vpack.c.b16 %v2177, %v2176
        %v2229 = vpack.c.b16 %v2179, %v2178
        %v2230 = vpack.c.b16 %v2181, %v2180
        %v2231 = vpack.c.b16 %v2183, %v2182
        %v2232 = vpack.c.b16 %v2185, %v2184
        %v2233 = vpack.c.b16 %v2187, %v2186
        %v2234 = vpack.c.b16 %v2189, %v2188
        %v2235 = vpack.c.b16 %v2191, %v2190
        %v2236 = vpack.c.b16 %v2193, %v2192
        %v2237 = vpack.c.b16 %v2195, %v2194
        %v2238 = vpack.c.b16 %v2197, %v2196
        %v2239 = vpack.c.b16 %v2199, %v2198
        %v2240 = vpack.c.b16 %v2201, %v2200
        %v2241 = vpack.c.b16 %v2203, %v2202
        %v2242 = vpack.c.b16 %v2205, %v2204
        %v2243 = vpack.c.b16 %v2207, %v2206
        %v2244 = vpack.c.b16 %v2209, %v2208
        %v2245 = vpack.c.b16 %v2211, %v2210
        %v2246 = vpack.c.b16 %v2213, %v2212
        %v2247 = vpack.c.b16 %v2215, %v2214
        %2280 = vmatprep.subr.bf16.mxu0 0
        %2281 = vmatpush1.bf16.msra.mxu0 %v2223
        %2282 = vmatprep.subr.bf16.mxu0 0
        %2283 = vmatpush1.bf16.msra.mxu0 %v2222
        %2284 = vmatprep.subr.bf16.mxu0 0
        %2285 = vmatpush1.bf16.msra.mxu0 %v2221
        %2286 = vmatprep.subr.bf16.mxu0 0
        %2287 = vmatpush1.bf16.msra.mxu0 %v2220
        %2288 = vmatprep.subr.bf16.mxu0 0
        %2289 = vmatpush1.bf16.msra.mxu0 %v2219
        %2290 = vmatprep.subr.bf16.mxu0 0
        %2291 = vmatpush1.bf16.msra.mxu0 %v2218
        %2292 = vmatprep.subr.bf16.mxu0 0
        %2293 = vmatpush1.bf16.msra.mxu0 %v2217
        %2294 = vmatprep.subr.bf16.mxu0 0
        %2295 = vmatpush1.bf16.msra.mxu0 %v2216
        %2296 = vmatprep.subr.bf16.mxu0 0
        %2297 = vmatpush2.bf16.msra.mxu0 %v2231
        %2298 = vmatprep.subr.bf16.mxu0 0
        %2299 = vmatpush2.bf16.msra.mxu0 %v2230
        %2300 = vmatprep.subr.bf16.mxu0 0
        %2301 = vmatpush2.bf16.msra.mxu0 %v2229
        %2302 = vmatprep.subr.bf16.mxu0 0
        %2303 = vmatpush2.bf16.msra.mxu0 %v2228
        %2304 = vmatprep.subr.bf16.mxu0 0
        %2305 = vmatpush2.bf16.msra.mxu0 %v2227
        %2306 = vmatprep.subr.bf16.mxu0 0
        %2307 = vmatpush2.bf16.msra.mxu0 %v2226
        %2308 = vmatprep.subr.bf16.mxu0 0
        %2309 = vmatpush2.bf16.msra.mxu0 %v2225
        %2310 = vmatprep.subr.bf16.mxu0 0
        %2311 = vmatpush2.bf16.msra.mxu0 %v2224
        %2312 = vmatprep.mubr.bf16.mxu0 %v2014
        %2313 = vmatmul.mubr.bf16.gmra.mxu0 %v2013
        %v2314 = vpop.f32.mrf.mxu0
        %v2315 = vadd.f32 %v2086, %v2314
        %v2316 = vpop.f32.mrf.mxu0
        %v2317 = vpop.f32.mrf.mxu0
        %v2318 = vpop.f32.mrf.mxu0
        %2319 = vdwg.mxu0
        %2320 = vmatprep.subr.bf16.mxu0 0
        %2321 = vmatpush1.bf16.msra.mxu0 %v2239
        %2322 = vmatprep.subr.bf16.mxu0 0
        %2323 = vmatpush1.bf16.msra.mxu0 %v2238
        %2324 = vmatprep.subr.bf16.mxu0 0
        %2325 = vmatpush1.bf16.msra.mxu0 %v2237
        %2326 = vmatprep.subr.bf16.mxu0 0
        %2327 = vmatpush1.bf16.msra.mxu0 %v2236
        %2328 = vmatprep.subr.bf16.mxu0 0
        %2329 = vmatpush1.bf16.msra.mxu0 %v2235
        %2330 = vmatprep.subr.bf16.mxu0 0
        %2331 = vmatpush1.bf16.msra.mxu0 %v2234
        %2332 = vmatprep.subr.bf16.mxu0 0
        %2333 = vmatpush1.bf16.msra.mxu0 %v2233
        %2334 = vmatprep.subr.bf16.mxu0 0
        %2335 = vmatpush1.bf16.msra.mxu0 %v2232
        %2336 = vmatprep.subr.bf16.mxu0 0
        %2337 = vmatpush2.bf16.msra.mxu0 %v2247
        %2338 = vmatprep.subr.bf16.mxu0 0
        %2339 = vmatpush2.bf16.msra.mxu0 %v2246
        %2340 = vmatprep.subr.bf16.mxu0 0
        %2341 = vmatpush2.bf16.msra.mxu0 %v2245
        %2342 = vmatprep.subr.bf16.mxu0 0
        %2343 = vmatpush2.bf16.msra.mxu0 %v2244
        %2344 = vmatprep.subr.bf16.mxu0 0
        %2345 = vmatpush2.bf16.msra.mxu0 %v2243
        %2346 = vmatprep.subr.bf16.mxu0 0
        %2347 = vmatpush2.bf16.msra.mxu0 %v2242
        %2348 = vmatprep.subr.bf16.mxu0 0
        %2349 = vmatpush2.bf16.msra.mxu0 %v2241
        %2350 = vmatprep.subr.bf16.mxu0 0
        %2351 = vmatpush2.bf16.msra.mxu0 %v2240
        %2352 = vmatprep.mubr.bf16.mxu0 %v2016
        %2353 = vmatmul.mubr.bf16.gmra.mxu0 %v2015
        %v2354 = vpop.f32.mrf.mxu0
        %v2355 = vadd.f32 %v2315, %v2354
        %v2356 = vpop.f32.mrf.mxu0
        %v2357 = vpop.f32.mrf.mxu0
        %v2358 = vpop.f32.mrf.mxu0
        %2359 = vdwg.mxu0
        %v2360 = vadd.f32 %v1668, %v2355
        %2361 = vst [vmem:[#allocation2] sm:$0xff] %v2360
        %p2362 = scmp.eq.s32.totalorder %s54, 1
        // Predicated region
        $region157: #{tpu_custom_call.1} parent=83 // pred_check
          %p2363 = pneg %p2362
        $region158: #{tpu_custom_call.1} parent=83 // pred_check_branch
          %2365 = sbr.rel (%p2363) target = $region160
        $region159: #{tpu_custom_call.1} parent=83 // pred_region
          %v2366 = vld [vmem:[%s15] sm:$0x1]
          %v2367 = vld [vmem:[%s16] sm:$0x1]
          %2368 = vadd.xlane.f32.xlu0 %v2360
          %v2369 = vpop.xlane.xlu0 %2368
          %v2370 = vmul.f32 %v2369, %v1045
          %v2371 = vsub.f32 %v2360, %v2370
          %v2372 = vmul.f32 %v2371, %v2371
          %2373 = vadd.xlane.f32.xlu0 %v2372
          %v2374 = vpop.xlane.xlu0 %2373
          %v2375 = vmul.f32 %v2374, %v1045
          %v2376 = vadd.f32 %v2375, 1e-05
          %v2377 = vrsqrt.pop %v2376
          %v2378 = vmul.f32 %v2371, %v2377
          %v2380 = vlaneseq
          %v2381 = vshrl.u32 %v2380, 7
          %v2382 = vsub.s32 0, %v2381
          %v2383 = vrot.slane %v2366, %v2382
          %v2385 = vmul.f32 %v2378, %v2383
          %v2387 = vlaneseq
          %v2388 = vshrl.u32 %v2387, 7
          %v2389 = vsub.s32 0, %v2388
          %v2390 = vrot.slane %v2367, %v2389
          %v2392 = vadd.f32 %v2385, %v2390
          %v2393 = vpack.c.bf16 %v2392, %v2392
          %v2394 = vld [vmem:[#allocation20] sm:$0xff]
          %v2395 = vld [vmem:[#allocation20 + $0x8] sm:$0xff]
          %v2396 = vld [vmem:[#allocation20 + $0x10] sm:$0xff]
          %v2397 = vld [vmem:[#allocation20 + $0x18] sm:$0xff]
          %v2398 = vld [vmem:[#allocation20 + $0x20] sm:$0xff]
          %v2399 = vld [vmem:[#allocation20 + $0x28] sm:$0xff]
          %v2400 = vld [vmem:[#allocation20 + $0x30] sm:$0xff]
          %v2401 = vld [vmem:[#allocation20 + $0x38] sm:$0xff]
          %v2402 = vld [vmem:[#allocation20 + $0x40] sm:$0xff]
          %v2403 = vld [vmem:[#allocation20 + $0x48] sm:$0xff]
          %v2404 = vld [vmem:[#allocation20 + $0x50] sm:$0xff]
          %v2405 = vld [vmem:[#allocation20 + $0x58] sm:$0xff]
          %v2406 = vld [vmem:[#allocation20 + $0x60] sm:$0xff]
          %v2407 = vld [vmem:[#allocation20 + $0x68] sm:$0xff]
          %v2408 = vld [vmem:[#allocation20 + $0x70] sm:$0xff]
          %v2409 = vld [vmem:[#allocation20 + $0x78] sm:$0xff]
          %v2426 = vunpack.c.l.b16 %v2394
          %v2427 = vunpack.c.h.b16 %v2394
          %v2428 = vunpack.c.l.b16 %v2395
          %v2429 = vunpack.c.h.b16 %v2395
          %v2430 = vunpack.c.l.b16 %v2396
          %v2431 = vunpack.c.h.b16 %v2396
          %v2432 = vunpack.c.l.b16 %v2397
          %v2433 = vunpack.c.h.b16 %v2397
          %v2434 = vunpack.c.l.b16 %v2398
          %v2435 = vunpack.c.h.b16 %v2398
          %v2436 = vunpack.c.l.b16 %v2399
          %v2437 = vunpack.c.h.b16 %v2399
          %v2438 = vunpack.c.l.b16 %v2400
          %v2439 = vunpack.c.h.b16 %v2400
          %v2440 = vunpack.c.l.b16 %v2401
          %v2441 = vunpack.c.h.b16 %v2401
          %v2442 = vunpack.c.l.b16 %v2402
          %v2443 = vunpack.c.h.b16 %v2402
          %v2444 = vunpack.c.l.b16 %v2403
          %v2445 = vunpack.c.h.b16 %v2403
          %v2446 = vunpack.c.l.b16 %v2404
          %v2447 = vunpack.c.h.b16 %v2404
          %v2448 = vunpack.c.l.b16 %v2405
          %v2449 = vunpack.c.h.b16 %v2405
          %v2450 = vunpack.c.l.b16 %v2406
          %v2451 = vunpack.c.h.b16 %v2406
          %v2452 = vunpack.c.l.b16 %v2407
          %v2453 = vunpack.c.h.b16 %v2407
          %v2454 = vunpack.c.l.b16 %v2408
          %v2455 = vunpack.c.h.b16 %v2408
          %v2456 = vunpack.c.l.b16 %v2409
          %v2457 = vunpack.c.h.b16 %v2409
          %v2458 = vpack.c.b16 %v2428, %v2426
          %v2459 = vpack.c.b16 %v2429, %v2427
          %v2460 = vpack.c.b16 %v2432, %v2430
          %v2461 = vpack.c.b16 %v2433, %v2431
          %v2462 = vpack.c.b16 %v2436, %v2434
          %v2463 = vpack.c.b16 %v2437, %v2435
          %v2464 = vpack.c.b16 %v2440, %v2438
          %v2465 = vpack.c.b16 %v2441, %v2439
          %v2466 = vpack.c.b16 %v2444, %v2442
          %v2467 = vpack.c.b16 %v2445, %v2443
          %v2468 = vpack.c.b16 %v2448, %v2446
          %v2469 = vpack.c.b16 %v2449, %v2447
          %v2470 = vpack.c.b16 %v2452, %v2450
          %v2471 = vpack.c.b16 %v2453, %v2451
          %v2472 = vpack.c.b16 %v2456, %v2454
          %v2473 = vpack.c.b16 %v2457, %v2455
          %2490 = vmatprep.subr.bf16.mxu0 %v2473
          %2491 = vmatpush1.bf16.msra.mxu0 %v2472
          %2492 = vmatprep.subr.bf16.mxu0 %v2471
          %2493 = vmatpush1.bf16.msra.mxu0 %v2470
          %2494 = vmatprep.subr.bf16.mxu0 %v2469
          %2495 = vmatpush1.bf16.msra.mxu0 %v2468
          %2496 = vmatprep.subr.bf16.mxu0 %v2467
          %2497 = vmatpush1.bf16.msra.mxu0 %v2466
          %2498 = vmatprep.subr.bf16.mxu0 %v2465
          %2499 = vmatpush1.bf16.msra.mxu0 %v2464
          %2500 = vmatprep.subr.bf16.mxu0 %v2463
          %2501 = vmatpush1.bf16.msra.mxu0 %v2462
          %2502 = vmatprep.subr.bf16.mxu0 %v2461
          %2503 = vmatpush1.bf16.msra.mxu0 %v2460
          %2504 = vmatprep.subr.bf16.mxu0 %v2459
          %2505 = vmatpush1.bf16.msra.mxu0 %v2458
          %2506 = vmatprep.subr.bf16.mxu0 0
          %2507 = vmatpush2.bf16.msra.mxu0 0
          %2508 = vmatprep.subr.bf16.mxu0 0
          %2509 = vmatpush2.bf16.msra.mxu0 0
          %2510 = vmatprep.subr.bf16.mxu0 0
          %2511 = vmatpush2.bf16.msra.mxu0 0
          %2512 = vmatprep.subr.bf16.mxu0 0
          %2513 = vmatpush2.bf16.msra.mxu0 0
          %2514 = vmatprep.subr.bf16.mxu0 0
          %2515 = vmatpush2.bf16.msra.mxu0 0
          %2516 = vmatprep.subr.bf16.mxu0 0
          %2517 = vmatpush2.bf16.msra.mxu0 0
          %2518 = vmatprep.subr.bf16.mxu0 0
          %2519 = vmatpush2.bf16.msra.mxu0 0
          %2520 = vmatprep.subr.bf16.mxu0 0
          %2521 = vmatpush2.bf16.msra.mxu0 0
          %2522 = vmatprep.mubr.bf16.mxu0 0
          %2523 = vmatmul.mubr.bf16.gmra.mxu0 %v2393
          %v2524 = vpop.f32.mrf.mxu0
          %v2525 = vadd.f32 0.0, %v2524
          %v2526 = vpop.f32.mrf.mxu0
          %v2527 = vadd.f32 0.0, %v2526
          %v2528 = vpop.f32.mrf.mxu0
          %v2529 = vpop.f32.mrf.mxu0
          %2530 = vdwg.mxu0
          %2531 = vst [vmem:[%s856] sm:$0xff] %v2525
          %2532 = vst [vmem:[%s856 + $0x8] sm:$0xff] %v2527
        $region160: #{tpu_custom_call.1} parent=83 // pred_fallthru
          _
        %s2533 = sand.u32 %s465, 1
        %s2534 = scalar_lea.sflag [#allocation8], %s2533
        %s2535 = sand.u32 %s465, 1
        %s2536 = smul.addr %s2535, 16
        %s2537 = scalar_lea.vmem [#allocation21], %s2536
        // Predicated region
        $region161: #{tpu_custom_call.1} parent=83 // pred_check
          %p2538 = pneg %p475
        $region162: #{tpu_custom_call.1} parent=83 // pred_check_branch
          %2540 = sbr.rel (%p2538) target = $region164
        $region163: #{tpu_custom_call.1} parent=83 // pred_region
          %s2542 = ssub.s32 256, 256
          %2543 = vsyncadd %s2534, %s2542
          %s2544 = smul.addr %s53, 2
          %s2545 = smul.addr %s2544, 128
          %s2546 = scalar_lea.hbm %s18, %s2545
          %s2548 = sshll.u32 %s2537, 4
          %s2549 = int_to_ptr.vmem [resolvable:$true] %s2548
          %2551 = dma.vmem_to_hbm [thread:$0]  %s2549, 256, %s2546, %s2534
        $region164: #{tpu_custom_call.1} parent=83 // pred_fallthru
          _
      $region84: #{tpu_custom_call.1} parent=5 // pred_fallthru
        _
      %p2552 = scmp.le.s32.totalorder 2, %s44
      // Predicated region
      $region165: #{tpu_custom_call.1} parent=5 // pred_check
        %p2553 = pneg %p2552
      $region166: #{tpu_custom_call.1} parent=5 // pred_check_branch
        %2555 = sbr.rel (%p2553) target = $region168
      $region167: #{tpu_custom_call.1} parent=5 // pred_region
        %s2556 = ssub.s32 %s44, 2
        // Predicated region
        $region169: #{tpu_custom_call.1} parent=167 // pred_check
          %p2557 = pneg %p481
        $region170: #{tpu_custom_call.1} parent=167 // pred_check_branch
          %2559 = sbr.rel (%p2557) target = $region172
        $region171: #{tpu_custom_call.1} parent=167 // pred_region
          %s2560 = sand.u32 %s466, 1
          %s2561 = scalar_lea.sflag [#allocation8], %s2560
          %s2562 = sand.u32 %s466, 1
          %s2563 = smul.addr %s2562, 16
          %s2564 = scalar_lea.vmem [#allocation21], %s2563
          %2565 = dma.done %s2561, 256
        $region172: #{tpu_custom_call.1} parent=167 // pred_fallthru
          _
      $region168: #{tpu_custom_call.1} parent=5 // pred_fallthru
        _
    $region6: #{tpu_custom_call.1} parent=1 // loop_footer
      %s48 = sadd.s32 1, %s44
    $region7: #{tpu_custom_call.1} parent=1 // loop_footer_branch
      %43 = sbr.rel target = $region3
    $region8: #{tpu_custom_call.1} parent=1 // loop_exit
      _
    %2566 = vsyncpa [#allocation7], 1
    %s2567 = scalar_lea.sflag [#allocation7], 1
    %2568 = vsyncpa %s2567, 1
    %2569 = vsyncpa [#allocation10], 1
    %s2570 = scalar_lea.sflag [#allocation10], 1
    %2571 = vsyncpa %s2570, 1
    %2572 = vsyncpa [#allocation13], 1
    %s2573 = scalar_lea.sflag [#allocation13], 1
    %2574 = vsyncpa %s2573, 1
    %2575 = vsyncpa [#allocation16], 1
    %s2576 = scalar_lea.sflag [#allocation16], 1
    %2577 = vsyncpa %s2576, 1
    %2578 = vsyncpa [#allocation19], 1
    %s2579 = scalar_lea.sflag [#allocation19], 1
    %2580 = vsyncpa %s2579, 1
    %2581 = vsyncpa [#allocation8], 1
    %s2582 = scalar_lea.sflag [#allocation8], 1
    %2583 = vsyncpa %s2582, 1
  %2584 = vsyncmov [#allocation3]
  %s2585 = vpop.sfrf %2584
  %p2586 = scmp.eq.s32.totalorder %s2585, 0
  %p2587 = pneg %p2586
  %2589 = shalt.err (%p2587)
  %s2590 = scalar_lea.sflag [#allocation3], 1
  %2591 = vsyncmov %s2590
  %s2592 = vpop.sfrf %2591
  %p2593 = scmp.eq.s32.totalorder %s2592, 0
  %p2594 = pneg %p2593
  %2596 = shalt.err (%p2594)
  %s2597 = scalar_lea.sflag [#allocation3], 2
  %2598 = vsyncmov %s2597
  %s2599 = vpop.sfrf %2598
  %p2600 = scmp.eq.s32.totalorder %s2599, 0
  %p2601 = pneg %p2600
  %2603 = shalt.err (%p2601)
  %s2604 = scalar_lea.sflag [#allocation3], 3
  %2605 = vsyncmov %s2604
  %s2606 = vpop.sfrf %2605
  %p2607 = scmp.eq.s32.totalorder %s2606, 0
  %p2608 = pneg %p2607
  %2610 = shalt.err (%p2608)
  %s2611 = scalar_lea.sflag [#allocation3], 4
  %2612 = vsyncmov %s2611
  %s2613 = vpop.sfrf %2612
  %p2614 = scmp.eq.s32.totalorder %s2613, 0
  %p2615 = pneg %p2614
  %2617 = shalt.err (%p2615)
  %s2618 = scalar_lea.sflag [#allocation3], 5
  %2619 = vsyncmov %s2618
  %s2620 = vpop.sfrf %2619
  %p2621 = scmp.eq.s32.totalorder %s2620, 0
  %p2622 = pneg %p2621
  %2624 = shalt.err (%p2622)
  %s2625 = scalar_lea.sflag [#allocation3], 6
  %2626 = vsyncmov %s2625
  %s2627 = vpop.sfrf %2626
  %p2628 = scmp.eq.s32.totalorder %s2627, 0
  %p2629 = pneg %p2628
  %2631 = shalt.err (%p2629)
  %s2632 = scalar_lea.sflag [#allocation3], 7
  %2633 = vsyncmov %s2632
  %s2634 = vpop.sfrf %2633
  %p2635 = scmp.eq.s32.totalorder %s2634, 0
  %p2636 = pneg %p2635
  %2638 = shalt.err (%p2636)

</llo_original>
